<compile_context>
chip_gen: v7x
topology: tpu7x:2x2x1
jax: 0.10.0
libtpu: 0.0.40
codegen_flags: <defaults>
</compile_context>

<pallas_src>
import math

import jax
import jax.numpy as jnp
from jax.experimental import pallas as pl
from jax.experimental.pallas import tpu as pltpu


def _round_up(a: int, b: int) -> int:
    return ((a + b - 1) // b) * b


def _cdiv(a: int, b: int) -> int:
    return -(-a // b)


def _vmem_capacity_bytes() -> int:
    try:
        return int(pltpu.get_tpu_info().vmem_capacity_bytes)
    except Exception:
        return 64 * 1024 * 1024  # conservative: v7x per-TC VMEM


# ---------------------------------------------------------------------------
# Feed_Forward Pallas kernels (resident-weights and streaming variants)
# ---------------------------------------------------------------------------
def _make_ffn_kernel(multi_chunk: bool, with_residual: bool):
    """Builds y = relu(x@W1+b1) @ W2 + b2 (+ residual) kernel.

    multi_chunk=False : 1-D grid over row tiles, weights fully VMEM-resident,
                        no accumulator scratch, direct o_ref write.
    multi_chunk=True  : 2-D grid (row tiles, d_ff chunks); d_ff is the
                        reduction axis (last); f32 VMEM accumulator with
                        pl.when init/finalize; b2 / residual added once.
    """

    def kernel(*refs):
        if multi_chunk:
            if with_residual:
                (x_ref, w1_ref, b1_ref, w2_ref, b2_ref, r_ref,
                 o_ref, acc_ref) = refs
            else:
                (x_ref, w1_ref, b1_ref, w2_ref, b2_ref,
                 o_ref, acc_ref) = refs
                r_ref = None
            kk = pl.program_id(1)

            @pl.when(kk == 0)
            def _init():
                acc_ref[...] = jnp.zeros_like(acc_ref)

            x = x_ref[...].astype(w1_ref.dtype)           # in-kernel f32->bf16
            h = jnp.dot(x, w1_ref[...], preferred_element_type=jnp.float32)
            h = jnp.maximum(h + b1_ref[...], 0.0)         # bias + ReLU in f32
            acc_ref[...] += jnp.dot(h.astype(w2_ref.dtype), w2_ref[...],
                                    preferred_element_type=jnp.float32)

            @pl.when(kk == pl.num_programs(1) - 1)
            def _finalize():
                y = acc_ref[...] + b2_ref[...]
                if r_ref is not None:
                    y = y + r_ref[...]
                o_ref[...] = y.astype(o_ref.dtype)
        else:
            if with_residual:
                (x_ref, w1_ref, b1_ref, w2_ref, b2_ref, r_ref, o_ref) = refs
            else:
                (x_ref, w1_ref, b1_ref, w2_ref, b2_ref, o_ref) = refs
                r_ref = None
            x = x_ref[...].astype(w1_ref.dtype)           # in-kernel f32->bf16
            h = jnp.dot(x, w1_ref[...], preferred_element_type=jnp.float32)
            h = jnp.maximum(h + b1_ref[...], 0.0)
            y = jnp.dot(h.astype(w2_ref.dtype), w2_ref[...],
                        preferred_element_type=jnp.float32) + b2_ref[...]
            if r_ref is not None:
                y = y + r_ref[...]
            o_ref[...] = y.astype(o_ref.dtype)

    return kernel


def prepare_ffn_weights(w1, b1, w2, b2, compute_dtype=jnp.bfloat16):
    """One-time weight prep (hoisted out of the per-call path).

    W1:(d_model,d_ff), W2:(d_ff,d_model) stored (in,out) — transposed w.r.t.
    PyTorch nn.Linear storage, so row @ W + b == PyTorch's x @ W.T + b.
    d_ff is padded to a multiple of 128 (zero columns/rows contribute 0).
    """
    d_model, d_ff = w1.shape
    d_ff_pad = _round_up(d_ff, 128)
    w1c = w1.astype(compute_dtype)
    w2c = w2.astype(compute_dtype)
    b1_2d = b1.reshape(1, d_ff).astype(jnp.float32)
    if d_ff_pad != d_ff:
        w1c = jnp.pad(w1c, ((0, 0), (0, d_ff_pad - d_ff)))
        b1_2d = jnp.pad(b1_2d, ((0, 0), (0, d_ff_pad - d_ff)))
        w2c = jnp.pad(w2c, ((0, d_ff_pad - d_ff), (0, 0)))
    b2_2d = b2.reshape(1, d_model).astype(jnp.float32)
    return dict(w1=w1c, b1=b1_2d, w2=w2c, b2=b2_2d,
                d_model=d_model, d_ff_pad=d_ff_pad)


def feed_forward(x, ffn, residual=None, *, tm=512, tk_cap=None):
    """Transformer FFN (+ optional fused residual add) via Pallas on TPU.

    x        : (..., d_model) activations (kept f32; cast in-kernel).
    ffn      : dict from prepare_ffn_weights.
    residual : optional tensor with x's shape, added in the kernel epilogue.
    tm       : max row-tile size; small inputs are split into 2 tiles so the
               'parallel' axis can use both v7x TensorCores.
    tk_cap   : optional cap on the d_ff chunk width (forces streaming).
    """
    orig_shape = x.shape
    orig_dtype = x.dtype
    d_model = ffn["d_model"]
    d_ff_pad = ffn["d_ff_pad"]
    assert orig_shape[-1] == d_model

    x2d = x.reshape(-1, d_model)
    n_rows = x2d.shape[0]
    x_bytes = jnp.dtype(x2d.dtype).itemsize
    out_bytes = jnp.dtype(orig_dtype).itemsize
    w_bytes = jnp.dtype(ffn["w1"].dtype).itemsize
    r_bytes = jnp.dtype(residual.dtype).itemsize if residual is not None else 0

    # --- row tiling: >=2 row tiles for small inputs (v7x has 2 TCs) ---------
    if n_rows <= tm:
        n_tiles = 2 if n_rows > 8 else 1
    else:
        n_tiles = _cdiv(n_rows, tm)
    tm_eff = _round_up(_cdiv(n_rows, n_tiles), 8)
    n_pad = n_tiles * tm_eff
    if n_pad != n_rows:
        x2d = jnp.pad(x2d, ((0, n_pad - n_rows), (0, 0)))

    r2d = None
    if residual is not None:
        r2d = residual.reshape(-1, d_model)
        if n_pad != n_rows:
            r2d = jnp.pad(r2d, ((0, n_pad - n_rows), (0, 0)))

    # --- d_ff chunking: keep W1/W2 fully VMEM-resident whenever they fit ----
    def vmem_estimate(tk, n_chunks):
        per_buf = (tm_eff * d_model * x_bytes            # x row tile (f32)
                   + d_model * tk * w_bytes              # W1 chunk (bf16)
                   + 8 * tk * 4                          # b1 (sublane-padded)
                   + tk * d_model * w_bytes              # W2 chunk (bf16)
                   + 8 * d_model * 4                     # b2
                   + tm_eff * d_model * r_bytes          # residual tile
                   + tm_eff * d_model * out_bytes)       # output tile
        total = 2 * per_buf                              # double buffering
        if n_chunks > 1:
            total += tm_eff * d_model * 4                # f32 accumulator
        return total

    vmem_cap = _vmem_capacity_bytes()
    budget = int(vmem_cap * 0.7)
    n_lane_blocks = d_ff_pad // 128
    tk, n_chunks = d_ff_pad, 1
    for cand in range(1, n_lane_blocks + 1):
        if n_lane_blocks % cand:
            continue
        cand_tk = (n_lane_blocks // cand) * 128
        if tk_cap is not None and cand_tk > tk_cap and cand != n_lane_blocks:
            continue
        if vmem_estimate(cand_tk, cand) <= budget or cand == n_lane_blocks:
            tk, n_chunks = cand_tk, cand
            break

    multi_chunk = n_chunks > 1
    with_residual = residual is not None

    # Only override the default scoped-VMEM limit when we actually need more.
    est = vmem_estimate(tk, n_chunks)
    need = int(est * 1.5) + (2 << 20)
    vmem_limit = None
    if need > (32 << 20):
        vmem_limit = min(need, int(vmem_cap * 0.85))

    kernel = _make_ffn_kernel(multi_chunk, with_residual)

    if multi_chunk:
        grid = (n_tiles, n_chunks)
        in_specs = [
            pl.BlockSpec((tm_eff, d_model), lambda i, kk: (i, 0)),   # x rows
            pl.BlockSpec((d_model, tk),     lambda i, kk: (0, kk)),  # W1 chunk
            pl.BlockSpec((1, tk),           lambda i, kk: (0, kk)),  # b1 chunk
            pl.BlockSpec((tk, d_model),     lambda i, kk: (kk, 0)),  # W2 chunk
            pl.BlockSpec((1, d_model),      lambda i, kk: (0, 0)),   # b2
        ]
        if with_residual:
            in_specs.append(pl.BlockSpec((tm_eff, d_model),
                                         lambda i, kk: (i, 0)))      # residual
        out_spec = pl.BlockSpec((tm_eff, d_model), lambda i, kk: (i, 0))
        scratch = [pltpu.VMEM((tm_eff, d_model), jnp.float32)]
        dims = ("parallel", "arbitrary")
    else:
        grid = (n_tiles,)
        in_specs = [
            pl.BlockSpec((tm_eff, d_model), lambda i: (i, 0)),       # x rows
            pl.BlockSpec((d_model, tk),     lambda i: (0, 0)),       # W1 (resident)
            pl.BlockSpec((1, tk),           lambda i: (0, 0)),       # b1 (resident)
            pl.BlockSpec((tk, d_model),     lambda i: (0, 0)),       # W2 (resident)
            pl.BlockSpec((1, d_model),      lambda i: (0, 0)),       # b2 (resident)
        ]
        if with_residual:
            in_specs.append(pl.BlockSpec((tm_eff, d_model),
                                         lambda i: (i, 0)))          # residual
        out_spec = pl.BlockSpec((tm_eff, d_model), lambda i: (i, 0))
        scratch = []
        dims = ("parallel",)

    args = [x2d, ffn["w1"], ffn["b1"], ffn["w2"], ffn["b2"]]
    if with_residual:
        args.append(r2d)

    out = pl.pallas_call(
        kernel,
        out_shape=jax.ShapeDtypeStruct((n_pad, d_model), orig_dtype),
        grid_spec=pltpu.PrefetchScalarGridSpec(
            num_scalar_prefetch=0,
            grid=grid,
            in_specs=in_specs,
            out_specs=out_spec,
            scratch_shapes=scratch,
        ),
        compiler_params=pltpu.CompilerParams(
            dimension_semantics=dims,
            vmem_limit_bytes=vmem_limit,
        ),
    )(*args)

    if n_pad != n_rows:
        out = out[:n_rows]
    return out.reshape(orig_shape)


def feed_forward_ref(x, w1, b1, w2, b2, residual=None,
                     *, compute_dtype=jnp.bfloat16):
    """Pure-JAX reference with the same dtype policy as the Pallas kernel."""
    shape = x.shape
    x2d = x.reshape(-1, shape[-1]).astype(compute_dtype)
    h = jnp.dot(x2d, w1.astype(compute_dtype),
                preferred_element_type=jnp.float32) + b1.astype(jnp.float32)
    h = jnp.maximum(h, 0.0).astype(compute_dtype)
    y = jnp.dot(h, w2.astype(compute_dtype),
                preferred_element_type=jnp.float32) + b2.astype(jnp.float32)
    if residual is not None:
        y = y + residual.reshape(-1, shape[-1]).astype(jnp.float32)
    return y.astype(x.dtype).reshape(shape)


# ---------------------------------------------------------------------------
# Intra_Transformer glue (plain JAX; forward semantics of the PyTorch module)
# ---------------------------------------------------------------------------
def positional_encoding(max_len, d_model):
    # Matches the PyTorch module: sin uses exponent even/d, cos uses odd/d.
    pos = jnp.arange(max_len, dtype=jnp.float32)[:, None]
    even = jnp.arange(0, d_model, 2, dtype=jnp.float32)
    odd = jnp.arange(1, d_model, 2, dtype=jnp.float32)
    pe = jnp.zeros((max_len, d_model), jnp.float32)
    pe = pe.at[:, 0::2].set(jnp.sin(pos / 10000.0 ** (even / d_model)))
    pe = pe.at[:, 1::2].set(jnp.cos(pos / 10000.0 ** (odd / d_model)))
    return pe


def layer_norm_global(x, gamma, beta, eps=1e-5):
    # nn.LayerNorm((num_chunks, chunk_size, channels)): normalize last 3 dims.
    mean = jnp.mean(x, axis=(1, 2, 3), keepdims=True)
    var = jnp.mean(jnp.square(x - mean), axis=(1, 2, 3), keepdims=True)
    return (x - mean) * jax.lax.rsqrt(var + eps) * gamma + beta


def multi_head_attention(x, p, *, h, mask=None):
    # x: (B, num_chunks, chunk_size, d_model)
    B, N, S, d_model = x.shape
    q = x @ p["wq"] + p["bq"]
    k = x @ p["wk"] + p["bk"]
    v = x @ p["wv"] + p["bv"]
    q = q.reshape(B, N, S, d_model, h).transpose(4, 0, 1, 2, 3)   # (h,B,N,S,d)
    k = k.reshape(B, N, S, d_model, h).transpose(4, 0, 1, 3, 2)   # (h,B,N,d,S)
    v = v.reshape(B, N, S, d_model, h).transpose(4, 0, 1, 2, 3)   # (h,B,N,S,d)
    scores = jnp.matmul(q, k) / math.sqrt(d_model)                # (h,B,N,S,S)
    if mask is not None:
        scores = scores + mask
    attn = jax.nn.softmax(scores, axis=-1)
    out = jnp.matmul(attn, v)                                     # (h,B,N,S,d)
    out = out.transpose(1, 2, 3, 4, 0).reshape(B, N, S, d_model * h)
    return out @ p["wo"] + p["bo"]


def intra_transformer_forward(x, params, *, k, ffn_fn, mask=None):
    """x: (batch, channels, chunk_size, num_chunks), same as the PyTorch module.

    ffn_fn(t, residual) must return feed_forward(t) + residual (the residual
    add is fused into the Pallas kernel epilogue).
    """
    xp = jnp.transpose(x, (0, 3, 2, 1))           # (B, num_chunks, chunk_size, C)
    S = xp.shape[2]
    x_prime = xp + params["pe"][:S]               # positional encoding
    for _ in range(k):
        x2 = layer_norm_global(x_prime, params["ln_gamma"], params["ln_beta"])
        x2 = multi_head_attention(x2, params["mha"], h=8, mask=mask) + x_prime
        x3 = layer_norm_global(x2, params["ln_gamma"], params["ln_beta"])
        x_prime = ffn_fn(x3, x2)                  # FFN + residual (fused)
    out = x_prime + xp
    return jnp.transpose(out, (0, 3, 2, 1))


def _init_linear(key, fan_in, fan_out):
    kw, kb = jax.random.split(key)
    bound = 1.0 / math.sqrt(fan_in)
    w = jax.random.uniform(kw, (fan_in, fan_out), jnp.float32, -bound, bound)
    b = jax.random.uniform(kb, (fan_out,), jnp.float32, -bound, bound)
    return w, b


def init_intra_transformer_params(key, channels, chunk_size, num_chunks, h=8):
    keys = jax.random.split(key, 6)
    wq, bq = _init_linear(keys[0], channels, channels * h)
    wk, bk = _init_linear(keys[1], channels, channels * h)
    wv, bv = _init_linear(keys[2], channels, channels * h)
    wo, bo = _init_linear(keys[3], channels * h, channels)
    w1, b1 = _init_linear(keys[4], channels, channels * 4)
    w2, b2 = _init_linear(keys[5], channels * 4, channels)
    return {
        "pe": positional_encoding(chunk_size, channels),
        "ln_gamma": jnp.ones((num_chunks, chunk_size, channels), jnp.float32),
        "ln_beta": jnp.zeros((num_chunks, chunk_size, channels), jnp.float32),
        "mha": dict(wq=wq, bq=bq, wk=wk, bk=bk, wv=wv, bv=bv, wo=wo, bo=bo),
        "ffn": dict(w1=w1, b1=b1, w2=w2, b2=b2),
    }


if __name__ == "__main__":
    key = jax.random.PRNGKey(0)

    # --- 1) standalone FFN: resident-weights path (1-D grid, no accumulator) -
    d_model = 256
    k1, k2 = jax.random.split(key)
    xf = jax.random.normal(k1, (5, 120, d_model), jnp.float32)      # 600 rows
    wf1, bf1 = _init_linear(jax.random.fold_in(k2, 0), d_model, 4 * d_model)
    wf2, bf2 = _init_linear(jax.random.fold_in(k2, 1), 4 * d_model, d_model)
    ffn_p_standalone = prepare_ffn_weights(wf1, bf1, wf2, bf2)
    y = jax.block_until_ready(feed_forward(xf, ffn_p_standalone, tm=512))
    y_ref = feed_forward_ref(xf, wf1, bf1, wf2, bf2)
    assert y.shape == xf.shape and y.dtype == xf.dtype
    assert jnp.allclose(y, y_ref, atol=2e-3, rtol=2e-3), \
        float(jnp.max(jnp.abs(y - y_ref)))

    # --- 2) standalone FFN: forced d_ff streaming path (2-D grid + acc) ------
    y2 = jax.block_until_ready(feed_forward(xf, ffn_p_standalone,
                                            tm=512, tk_cap=128))
    assert jnp.allclose(y2, y_ref, atol=2e-3, rtol=2e-3), \
        float(jnp.max(jnp.abs(y2 - y_ref)))

    # --- 3) full Intra_Transformer forward (jit; Pallas FFN + fused residual) -
    batch, channels, chunk_size, num_chunks = 2, 128, 16, 4
    k_iters = 2   # module default is k=8; a small k keeps the demo quick
    kx, kp = jax.random.split(jax.random.fold_in(key, 1))
    x = jax.random.normal(kx, (batch, channels, chunk_size, num_chunks),
                          jnp.float32)
    params = init_intra_transformer_params(kp, channels, chunk_size, num_chunks)
    fp = params["ffn"]
    ffn_prepped = prepare_ffn_weights(fp["w1"], fp["b1"], fp["w2"], fp["b2"])

    ffn_pallas = lambda t, r: feed_forward(t, ffn_prepped, residual=r)
    ffn_jax = lambda t, r: feed_forward_ref(t, fp["w1"], fp["b1"],
                                            fp["w2"], fp["b2"], residual=r)

    fwd_pallas = jax.jit(lambda xx: intra_transformer_forward(
        xx, params, k=k_iters, ffn_fn=ffn_pallas))
    out = jax.block_until_ready(fwd_pallas(x))
    out_ref = intra_transformer_forward(x, params, k=k_iters, ffn_fn=ffn_jax)
    assert out.shape == x.shape and out.dtype == x.dtype
    assert jnp.allclose(out, out_ref, atol=2e-2, rtol=2e-2), \
        float(jnp.max(jnp.abs(out - out_ref)))

    print("KERNEL_OK")
</pallas_src>

<mosaic_0001>
module attributes {stable_mosaic.version = 11 : i64} {
  func.func @kernel(%arg0: i32, %arg1: memref<304x256xf32, #tpu.memory_space<vmem>>, %arg2: memref<256x1024xbf16, #tpu.memory_space<vmem>>, %arg3: memref<1x1024xf32, #tpu.memory_space<vmem>>, %arg4: memref<1024x256xbf16, #tpu.memory_space<vmem>>, %arg5: memref<1x256xf32, #tpu.memory_space<vmem>>, %arg6: memref<304x256xf32, #tpu.memory_space<vmem>>) attributes {dimension_semantics = [#tpu.dimension_semantics<parallel>], iteration_bounds = array<i64: 2>, scalar_prefetch = 0 : i64, scratch_operands = 0 : i64, tpu.core_type = #tpu.core_type<tc>, window_params = [{transform_indices = @transform_0, window_bounds = array<i64: 304, 256>}, {pipeline_mode = #tpu.pipeline_mode<synchronous>, transform_indices = @transform_1, window_bounds = array<i64: 256, 1024>}, {pipeline_mode = #tpu.pipeline_mode<synchronous>, transform_indices = @transform_2, window_bounds = array<i64: 1, 1024>}, {pipeline_mode = #tpu.pipeline_mode<synchronous>, transform_indices = @transform_3, window_bounds = array<i64: 1024, 256>}, {pipeline_mode = #tpu.pipeline_mode<synchronous>, transform_indices = @transform_4, window_bounds = array<i64: 1, 256>}, {transform_indices = @transform_5, window_bounds = array<i64: 304, 256>}]} {
    %c0 = arith.constant 0 : index
    %c0_0 = arith.constant 0 : index
    %0 = vector.load %arg1[%c0, %c0_0] : memref<304x256xf32, #tpu.memory_space<vmem>>, vector<304x256xf32>
    %1 = arith.truncf %0 : vector<304x256xf32> to vector<304x256xbf16>
    %c0_1 = arith.constant 0 : index
    %c0_2 = arith.constant 0 : index
    %2 = vector.load %arg2[%c0_1, %c0_2] : memref<256x1024xbf16, #tpu.memory_space<vmem>>, vector<256x1024xbf16>
    %cst = arith.constant dense<0.000000e+00> : vector<304x1024xf32>
    %3 = tpu.matmul %1, %2, %cst {dimension_numbers = #tpu.dot_dimension_numbers<[1], [0], [0], [1], [0, 0, 1, 1], [], []>} : vector<304x256xbf16>, vector<256x1024xbf16>, vector<304x1024xf32> -> vector<304x1024xf32>
    %c0_3 = arith.constant 0 : index
    %c0_4 = arith.constant 0 : index
    %4 = vector.load %arg3[%c0_3, %c0_4] : memref<1x1024xf32, #tpu.memory_space<vmem>>, vector<1x1024xf32>
    %5 = vector.broadcast %4 : vector<1x1024xf32> to vector<304x1024xf32>
    %6 = arith.addf %3, %5 : vector<304x1024xf32>
    %cst_5 = arith.constant 0.000000e+00 : f32
    %7 = vector.broadcast %cst_5 : f32 to vector<304x1024xf32>
    %8 = arith.maximumf %6, %7 : vector<304x1024xf32>
    %9 = arith.truncf %8 : vector<304x1024xf32> to vector<304x1024xbf16>
    %c0_6 = arith.constant 0 : index
    %c0_7 = arith.constant 0 : index
    %10 = vector.load %arg4[%c0_6, %c0_7] : memref<1024x256xbf16, #tpu.memory_space<vmem>>, vector<1024x256xbf16>
    %cst_8 = arith.constant dense<0.000000e+00> : vector<304x256xf32>
    %11 = tpu.matmul %9, %10, %cst_8 {dimension_numbers = #tpu.dot_dimension_numbers<[1], [0], [0], [1], [0, 0, 1, 1], [], []>} : vector<304x1024xbf16>, vector<1024x256xbf16>, vector<304x256xf32> -> vector<304x256xf32>
    %c0_9 = arith.constant 0 : index
    %c0_10 = arith.constant 0 : index
    %12 = vector.load %arg5[%c0_9, %c0_10] : memref<1x256xf32, #tpu.memory_space<vmem>>, vector<1x256xf32>
    %13 = vector.broadcast %12 : vector<1x256xf32> to vector<304x256xf32>
    %14 = arith.addf %11, %13 : vector<304x256xf32>
    %c0_11 = arith.constant 0 : index
    %c0_12 = arith.constant 0 : index
    %15 = vector.load %arg6[%c0_11, %c0_12] : memref<304x256xf32, #tpu.memory_space<vmem>>, vector<304x256xf32>
    tpu.vector_store %arg6[%c0_11, %c0_12], %14 {strides = array<i32>} : memref<304x256xf32, #tpu.memory_space<vmem>>, vector<304x256xf32>,
    return
  }
  func.func @transform_0(%arg0: i32) -> (i32, i32) {
    %c0_i32 = arith.constant 0 : i32
    %c0_i32_0 = arith.constant 0 : i32
    return %arg0, %c0_i32 : i32, i32
  }
  func.func @transform_1(%arg0: i32) -> (i32, i32) {
    %c0_i32 = arith.constant 0 : i32
    %c0_i32_0 = arith.constant 0 : i32
    %c0_i32_1 = arith.constant 0 : i32
    return %c0_i32, %c0_i32_0 : i32, i32
  }
  func.func @transform_2(%arg0: i32) -> (i32, i32) {
    %c0_i32 = arith.constant 0 : i32
    %c0_i32_0 = arith.constant 0 : i32
    %c0_i32_1 = arith.constant 0 : i32
    return %c0_i32, %c0_i32_0 : i32, i32
  }
  func.func @transform_3(%arg0: i32) -> (i32, i32) {
    %c0_i32 = arith.constant 0 : i32
    %c0_i32_0 = arith.constant 0 : i32
    %c0_i32_1 = arith.constant 0 : i32
    return %c0_i32, %c0_i32_0 : i32, i32
  }
  func.func @transform_4(%arg0: i32) -> (i32, i32) {
    %c0_i32 = arith.constant 0 : i32
    %c0_i32_0 = arith.constant 0 : i32
    %c0_i32_1 = arith.constant 0 : i32
    return %c0_i32, %c0_i32_0 : i32, i32
  }
  func.func @transform_5(%arg0: i32) -> (i32, i32) {
    %c0_i32 = arith.constant 0 : i32
    %c0_i32_0 = arith.constant 0 : i32
    return %arg0, %c0_i32 : i32, i32
  }
}

</mosaic_0001>

<llo_original>
// kernel: tpu_custom_call.1
$region0: #{tpu_custom_call.1}
  #allocation0 [shape = 'u32[]', space=smem, size = 0x4, offset = 0x4, fixed_abs, tag = 'smem constant byte address 0x4 - core index']
  #allocation1 [shape = 'u32[144,128]{1,0:T(1,128)}', space=vmem, size = 0x12000, scoped, tag = 'internal scratch']
  %s0 = inlined_call_operand.hbm [shape: f32[608,256], index: 0, kind: input, shape index: {}]
  %s1 = inlined_call_operand.hbm [shape: bf16[256,1024], index: 1, kind: input, shape index: {}]
  %s2 = inlined_call_operand.hbm [shape: f32[1,1024], index: 2, kind: input, shape index: {}]
  %s3 = inlined_call_operand.hbm [shape: bf16[1024,256], index: 3, kind: input, shape index: {}]
  %s4 = inlined_call_operand.vmem [shape: f32[1,256], index: 4, kind: input, shape index: {}]
  %s5 = inlined_call_operand.hbm [shape: f32[608,256], index: 5, kind: output, shape index: {}]
  %s6 = sld [smem:[#allocation0]]
  $region69: #{tpu_custom_call.1} parent=0
    _
  %s8 = ssub.s32 1, %s6
  %s9 = scalar_select 0, %s8, %s6
  $region1: #{tpu_custom_call.1} parent=0
    #allocation2 [shape = 'u8[622592]{0}', space=vmem, size = 0x98000, scoped, tag = 'input window, operand 0']
    #allocation3 [shape = 's32[2]{0}', space=sflag, size = 0x8, scoped, tag = 'scoped memory for tpu_custom_call.1']
    #allocation4 [shape = 's32[2]{0}', space=sflag, size = 0x8, scoped, tag = 'scoped memory for tpu_custom_call.1']
    #allocation5 [shape = 'u8[524288]{0}', space=vmem, size = 0x80000, scoped, tag = 'input window, operand 1, single buffered']
    #allocation6 [shape = 's32[1]{0}', space=sflag, size = 0x4, scoped, tag = 'scoped memory for tpu_custom_call.1']
    #allocation7 [shape = 'u8[4096]{0}', space=vmem, size = 0x1000, scoped, tag = 'input window, operand 2, single buffered']
    #allocation8 [shape = 'u8[524288]{0}', space=vmem, size = 0x80000, scoped, tag = 'input window, operand 3, single buffered']
    #allocation9 [shape = 's32[1]{0}', space=sflag, size = 0x4, scoped, tag = 'scoped memory for tpu_custom_call.1']
    #allocation10 [shape = 'u8[622592]{0}', space=vmem, size = 0x98000, scoped, tag = 'output window, operand 0']
    %10 = vsyncpa [#allocation3], 0
    %s11 = scalar_lea.sflag [#allocation3], 1
    %12 = vsyncpa %s11, 0
    %13 = vsyncpa [#allocation6], 0
    %14 = vsyncpa [#allocation9], 0
    %15 = vsyncpa [#allocation4], 0
    %s16 = scalar_lea.sflag [#allocation4], 1
    %17 = vsyncpa %s16, 0
    loop: start=0, step=1, limit=4
    $region2: #{tpu_custom_call.1} parent=1 // loop_pre_header
      _
    $region3: #{tpu_custom_call.1} parent=1 // loop_header
      %s19 = sphi 0, %s23
      %p20 = scmp.ge.s32.totalorder %s19, 4
      %s29 = sphi 0, %s31
      %s32 = sphi 0, %s29
      %s33 = sphi 0, %s32
      %s49 = sphi 0, %s33
      %s53 = sphi 0, %s53
      %s55 = sphi 0, %s53
      %s56 = sphi 0, %s55
      %s70 = sphi 0, %s56
      %s74 = sphi 0, %s74
      %s76 = sphi 0, %s74
      %s77 = sphi 0, %s76
      %s91 = sphi 0, %s77
      %s95 = sphi 0, %s95
      %s97 = sphi 0, %s95
      %s98 = sphi 0, %s97
      %s112 = sphi 0, %s98
      %s116 = sphi 0, %s116
      %s118 = sphi 0, %s116
      %s119 = sphi 0, %s118
      %s133 = sphi 0, %s119
      %s139 = sphi 0, %s141
      %s142 = sphi 0, %s139
      %s143 = sphi 0, %s142
      %s159 = sphi 0, %s143
    $region4: #{tpu_custom_call.1} parent=1 // loop_header_branch
      %22 = sbr.rel (%p20) target = $region8
    $region5: #{tpu_custom_call.1} parent=1 // loop_body
      %s24 = ssub.s32 %s19, 1
      %s25 = ssub.s32 %s19, 2
      %s26 = sadd.s32 %s19, 1
      %s27 = ssub.s32 %s19, %s26
      %p28 = scmp.eq.s32.totalorder %s27, 0
      %s30 = sadd.s32 %s29, 1
      %s31 = scalar_select %p28, %s29, %s30
      %p34 = pneg %p28
      %p35 = scmp.eq.s32.totalorder %s19, 1
      %p36 = por %p34, %p35
      %p37 = scmp.ne.s32.totalorder %s29, %s32
      %p38 = scmp.eq.s32.totalorder %s19, 0
      %p39 = por %p37, %p38
      %p40 = scmp.ne.s32.totalorder %s29, %s32
      %p41 = scmp.eq.s32.totalorder %s24, 1
      %p42 = por %p40, %p41
      %p43 = scmp.ne.s32.totalorder %s32, %s33
      %p44 = scmp.eq.s32.totalorder %s24, 0
      %p45 = por %p43, %p44
      %p46 = scmp.ne.s32.totalorder %s32, %s33
      %p47 = scmp.eq.s32.totalorder %s25, 1
      %p48 = por %p46, %p47
      %p50 = scmp.ne.s32.totalorder %s33, %s49
      %p51 = scmp.eq.s32.totalorder %s25, 0
      %p52 = por %p50, %p51
      %s54 = sadd.s32 %s53, 1
      %p57 = scmp.eq.s32.totalorder %s19, 1
      %p58 = scmp.ne.s32.totalorder %s53, %s55
      %p59 = scmp.eq.s32.totalorder %s19, 0
      %p60 = por %p58, %p59
      %p61 = scmp.ne.s32.totalorder %s53, %s55
      %p62 = scmp.eq.s32.totalorder %s24, 1
      %p63 = por %p61, %p62
      %p64 = scmp.ne.s32.totalorder %s55, %s56
      %p65 = scmp.eq.s32.totalorder %s24, 0
      %p66 = por %p64, %p65
      %p67 = scmp.ne.s32.totalorder %s55, %s56
      %p68 = scmp.eq.s32.totalorder %s25, 1
      %p69 = por %p67, %p68
      %p71 = scmp.ne.s32.totalorder %s56, %s70
      %p72 = scmp.eq.s32.totalorder %s25, 0
      %p73 = por %p71, %p72
      %s75 = sadd.s32 %s74, 1
      %p78 = scmp.eq.s32.totalorder %s19, 1
      %p79 = scmp.ne.s32.totalorder %s74, %s76
      %p80 = scmp.eq.s32.totalorder %s19, 0
      %p81 = por %p79, %p80
      %p82 = scmp.ne.s32.totalorder %s74, %s76
      %p83 = scmp.eq.s32.totalorder %s24, 1
      %p84 = por %p82, %p83
      %p85 = scmp.ne.s32.totalorder %s76, %s77
      %p86 = scmp.eq.s32.totalorder %s24, 0
      %p87 = por %p85, %p86
      %p88 = scmp.ne.s32.totalorder %s76, %s77
      %p89 = scmp.eq.s32.totalorder %s25, 1
      %p90 = por %p88, %p89
      %p92 = scmp.ne.s32.totalorder %s77, %s91
      %p93 = scmp.eq.s32.totalorder %s25, 0
      %p94 = por %p92, %p93
      %s96 = sadd.s32 %s95, 1
      %p99 = scmp.eq.s32.totalorder %s19, 1
      %p100 = scmp.ne.s32.totalorder %s95, %s97
      %p101 = scmp.eq.s32.totalorder %s19, 0
      %p102 = por %p100, %p101
      %p103 = scmp.ne.s32.totalorder %s95, %s97
      %p104 = scmp.eq.s32.totalorder %s24, 1
      %p105 = por %p103, %p104
      %p106 = scmp.ne.s32.totalorder %s97, %s98
      %p107 = scmp.eq.s32.totalorder %s24, 0
      %p108 = por %p106, %p107
      %p109 = scmp.ne.s32.totalorder %s97, %s98
      %p110 = scmp.eq.s32.totalorder %s25, 1
      %p111 = por %p109, %p110
      %p113 = scmp.ne.s32.totalorder %s98, %s112
      %p114 = scmp.eq.s32.totalorder %s25, 0
      %p115 = por %p113, %p114
      %s117 = sadd.s32 %s116, 1
      %p120 = scmp.eq.s32.totalorder %s19, 1
      %p121 = scmp.ne.s32.totalorder %s116, %s118
      %p122 = scmp.eq.s32.totalorder %s19, 0
      %p123 = por %p121, %p122
      %p124 = scmp.ne.s32.totalorder %s116, %s118
      %p125 = scmp.eq.s32.totalorder %s24, 1
      %p126 = por %p124, %p125
      %p127 = scmp.ne.s32.totalorder %s118, %s119
      %p128 = scmp.eq.s32.totalorder %s24, 0
      %p129 = por %p127, %p128
      %p130 = scmp.ne.s32.totalorder %s118, %s119
      %p131 = scmp.eq.s32.totalorder %s25, 1
      %p132 = por %p130, %p131
      %p134 = scmp.ne.s32.totalorder %s119, %s133
      %p135 = scmp.eq.s32.totalorder %s25, 0
      %p136 = por %p134, %p135
      %s137 = ssub.s32 %s19, %s26
      %p138 = scmp.eq.s32.totalorder %s137, 0
      %s140 = sadd.s32 %s139, 1
      %s141 = scalar_select %p138, %s139, %s140
      %p144 = pneg %p138
      %p145 = scmp.eq.s32.totalorder %s19, 1
      %p146 = por %p144, %p145
      %p147 = scmp.ne.s32.totalorder %s139, %s142
      %p148 = scmp.eq.s32.totalorder %s19, 0
      %p149 = por %p147, %p148
      %p150 = scmp.ne.s32.totalorder %s139, %s142
      %p151 = scmp.eq.s32.totalorder %s24, 1
      %p152 = por %p150, %p151
      %p153 = scmp.ne.s32.totalorder %s142, %s143
      %p154 = scmp.eq.s32.totalorder %s24, 0
      %p155 = por %p153, %p154
      %p156 = scmp.ne.s32.totalorder %s142, %s143
      %p157 = scmp.eq.s32.totalorder %s25, 1
      %p158 = por %p156, %p157
      %p160 = scmp.ne.s32.totalorder %s143, %s159
      %p161 = scmp.eq.s32.totalorder %s25, 0
      %p162 = por %p160, %p161
      %p163 = scmp.le.s32.totalorder 1, %s19
      %p164 = scmp.lt.s32.totalorder %s19, 3
      %p165 = pnand %p163, %p164
      %p166 = pneg %p165
      // Predicated region
      $region9: #{tpu_custom_call.1} parent=5 // pred_check
        _
      $region10: #{tpu_custom_call.1} parent=5 // pred_check_branch
        %168 = sbr.rel (%p165) target = $region12
      $region11: #{tpu_custom_call.1} parent=5 // pred_region
        %s169 = ssub.s32 %s19, 1
        // Predicated region
        $region13: #{tpu_custom_call.1} parent=11 // pred_check
          %p170 = pneg %p66
        $region14: #{tpu_custom_call.1} parent=11 // pred_check_branch
          %172 = sbr.rel (%p170) target = $region16
        $region15: #{tpu_custom_call.1} parent=11 // pred_region
          %s174 = ssub.s32 16384, 16384
          %175 = vsyncadd [#allocation6], %s174
          %s176 = sshll.u32 [#allocation5], 4
          %s177 = int_to_ptr.vmem [resolvable:$true] %s176
          %182 = dma.hbm_to_vmem [thread:$0]  %s1, 16384, %s177, [#allocation6], 512, 512, 32
        $region16: #{tpu_custom_call.1} parent=11 // pred_fallthru
          _
        // Predicated region
        $region17: #{tpu_custom_call.1} parent=11 // pred_check
          %p183 = pneg %p87
        $region18: #{tpu_custom_call.1} parent=11 // pred_check_branch
          %185 = sbr.rel (%p183) target = $region20
        $region19: #{tpu_custom_call.1} parent=11 // pred_region
          %s187 = ssub.s32 128, 128
          %188 = vsyncadd [#allocation6], %s187
          %s190 = sshll.u32 [#allocation7], 4
          %s191 = int_to_ptr.vmem [resolvable:$true] %s190
          %193 = dma.hbm_to_vmem [thread:$0]  %s2, 128, %s191, [#allocation6]
        $region20: #{tpu_custom_call.1} parent=11 // pred_fallthru
          _
        // Predicated region
        $region21: #{tpu_custom_call.1} parent=11 // pred_check
          %p194 = pneg %p108
        $region22: #{tpu_custom_call.1} parent=11 // pred_check_branch
          %196 = sbr.rel (%p194) target = $region24
        $region23: #{tpu_custom_call.1} parent=11 // pred_region
          %s198 = ssub.s32 16384, 16384
          %199 = vsyncadd [#allocation9], %s198
          %s200 = sshll.u32 [#allocation8], 4
          %s201 = int_to_ptr.vmem [resolvable:$true] %s200
          %206 = dma.hbm_to_vmem [thread:$0]  %s3, 16384, %s201, [#allocation9], 128, 128, 8
        $region24: #{tpu_custom_call.1} parent=11 // pred_fallthru
          _
        // Predicated region
        $region25: #{tpu_custom_call.1} parent=11 // pred_check
          %p207 = pneg %p129
        $region26: #{tpu_custom_call.1} parent=11 // pred_check_branch
          %209 = sbr.rel (%p207) target = $region28
        $region27: #{tpu_custom_call.1} parent=11 // pred_region
          _
        $region28: #{tpu_custom_call.1} parent=11 // pred_fallthru
          _
      $region12: #{tpu_custom_call.1} parent=5 // pred_fallthru
        _
      %p210 = scmp.lt.s32.totalorder %s19, 2
      // Predicated region
      $region29: #{tpu_custom_call.1} parent=5 // pred_check
        %p211 = pneg %p210
      $region30: #{tpu_custom_call.1} parent=5 // pred_check_branch
        %213 = sbr.rel (%p211) target = $region32
      $region31: #{tpu_custom_call.1} parent=5 // pred_region
        // Predicated region
        $region33: #{tpu_custom_call.1} parent=31 // pred_check
          %p214 = pneg %p39
        $region34: #{tpu_custom_call.1} parent=31 // pred_check_branch
          %216 = sbr.rel (%p214) target = $region36
        $region35: #{tpu_custom_call.1} parent=31 // pred_region
          %s217 = sand.u32 %s29, 1
          %s218 = scalar_lea.sflag [#allocation3], %s217
          %s219 = sand.u32 %s29, 1
          %s220 = smul.addr %s219, 608
          %s221 = scalar_lea.vmem [#allocation2], %s220
          %s222 = smul.u32 38, %s19
          %s224 = ssub.s32 9728, 9728
          %225 = vsyncadd %s218, %s224
          %s226 = smul.addr %s222, 2
          %s227 = smul.addr %s226, 128
          %s228 = scalar_lea.hbm %s0, %s227
          %s229 = sshll.u32 %s221, 4
          %s230 = int_to_ptr.vmem [resolvable:$true] %s229
          %235 = dma.hbm_to_vmem [thread:$0]  %s228, 9728, %s230, %s218, 256, 256, 16
        $region36: #{tpu_custom_call.1} parent=31 // pred_fallthru
          _
      $region32: #{tpu_custom_call.1} parent=5 // pred_fallthru
        _
      %p236 = scmp.le.s32.totalorder 1, %s19
      %p237 = scmp.lt.s32.totalorder %s19, 3
      %p238 = pnand %p236, %p237
      %p239 = pneg %p238
      // Predicated region
      $region37: #{tpu_custom_call.1} parent=5 // pred_check
        _
      $region38: #{tpu_custom_call.1} parent=5 // pred_check_branch
        %241 = sbr.rel (%p238) target = $region40
      $region39: #{tpu_custom_call.1} parent=5 // pred_region
        %s242 = ssub.s32 %s19, 1
        %s243 = sand.u32 %s32, 1
        %s244 = scalar_lea.sflag [#allocation3], %s243
        %s245 = sand.u32 %s32, 1
        %s246 = smul.addr %s245, 608
        %s247 = scalar_lea.vmem [#allocation2], %s246
        // Predicated region
        $region41: #{tpu_custom_call.1} parent=39 // pred_check
          %p248 = pneg %p45
        $region42: #{tpu_custom_call.1} parent=39 // pred_check_branch
          %250 = sbr.rel (%p248) target = $region44
        $region43: #{tpu_custom_call.1} parent=39 // pred_region
          %251 = dma.done %s244, 9728
        $region44: #{tpu_custom_call.1} parent=39 // pred_fallthru
          _
        // Predicated region
        $region45: #{tpu_custom_call.1} parent=39 // pred_check
          %p252 = pneg %p66
        $region46: #{tpu_custom_call.1} parent=39 // pred_check_branch
          %254 = sbr.rel (%p252) target = $region48
        $region47: #{tpu_custom_call.1} parent=39 // pred_region
          %255 = dma.done [#allocation6], 16384
        $region48: #{tpu_custom_call.1} parent=39 // pred_fallthru
          _
        // Predicated region
        $region49: #{tpu_custom_call.1} parent=39 // pred_check
          %p256 = pneg %p87
        $region50: #{tpu_custom_call.1} parent=39 // pred_check_branch
          %258 = sbr.rel (%p256) target = $region52
        $region51: #{tpu_custom_call.1} parent=39 // pred_region
          %259 = dma.done [#allocation6], 128
        $region52: #{tpu_custom_call.1} parent=39 // pred_fallthru
          _
        // Predicated region
        $region53: #{tpu_custom_call.1} parent=39 // pred_check
          %p260 = pneg %p108
        $region54: #{tpu_custom_call.1} parent=39 // pred_check_branch
          %262 = sbr.rel (%p260) target = $region56
        $region55: #{tpu_custom_call.1} parent=39 // pred_region
          %263 = dma.done [#allocation9], 16384
        $region56: #{tpu_custom_call.1} parent=39 // pred_fallthru
          _
        %s264 = sand.u32 %s32, 1
        %s265 = scalar_lea.sflag [#allocation3], %s264
        %s266 = sand.u32 %s32, 1
        %s267 = smul.addr %s266, 608
        %s268 = scalar_lea.vmem [#allocation2], %s267
        %p269 = pneg %p45
        %p270 = pneg %p42
        %p271 = pneg %p66
        %p272 = pneg %p63
        %p273 = pneg %p87
        %p274 = pneg %p84
        %p275 = pneg %p108
        %p276 = pneg %p105
        %p277 = pneg %p129
        %p278 = pneg %p126
        %p279 = pneg %p155
        %p280 = pneg %p152
        %s281 = sand.u32 %s142, 1
        %s282 = scalar_lea.sflag [#allocation4], %s281
        %s283 = sand.u32 %s142, 1
        %s284 = smul.addr %s283, 608
        %s285 = scalar_lea.vmem [#allocation10], %s284
        %s286 = smul.u32 38, %s24
        %s287 = smul.u32 38, %s24
        %v288 = vld [vmem:[%s247] sm:$0xff]
        %v289 = vld [vmem:[%s247 + $0x8] sm:$0xff]
        %v290 = vld [vmem:[%s247 + $0x10] sm:$0xff]
        %v291 = vld [vmem:[%s247 + $0x18] sm:$0xff]
        %v292 = vld [vmem:[%s247 + $0x20] sm:$0xff]
        %v293 = vld [vmem:[%s247 + $0x28] sm:$0xff]
        %v294 = vld [vmem:[%s247 + $0x30] sm:$0xff]
        %v295 = vld [vmem:[%s247 + $0x38] sm:$0xff]
        %v296 = vld [vmem:[%s247 + $0x40] sm:$0xff]
        %v297 = vld [vmem:[%s247 + $0x48] sm:$0xff]
        %v298 = vld [vmem:[%s247 + $0x50] sm:$0xff]
        %v299 = vld [vmem:[%s247 + $0x58] sm:$0xff]
        %v300 = vld [vmem:[%s247 + $0x60] sm:$0xff]
        %v301 = vld [vmem:[%s247 + $0x68] sm:$0xff]
        %v302 = vld [vmem:[%s247 + $0x70] sm:$0xff]
        %v303 = vld [vmem:[%s247 + $0x78] sm:$0xff]
        %v304 = vld [vmem:[%s247 + $0x80] sm:$0xff]
        %v305 = vld [vmem:[%s247 + $0x88] sm:$0xff]
        %v306 = vld [vmem:[%s247 + $0x90] sm:$0xff]
        %v307 = vld [vmem:[%s247 + $0x98] sm:$0xff]
        %v308 = vld [vmem:[%s247 + $0xa0] sm:$0xff]
        %v309 = vld [vmem:[%s247 + $0xa8] sm:$0xff]
        %v310 = vld [vmem:[%s247 + $0xb0] sm:$0xff]
        %v311 = vld [vmem:[%s247 + $0xb8] sm:$0xff]
        %v312 = vld [vmem:[%s247 + $0xc0] sm:$0xff]
        %v313 = vld [vmem:[%s247 + $0xc8] sm:$0xff]
        %v314 = vld [vmem:[%s247 + $0xd0] sm:$0xff]
        %v315 = vld [vmem:[%s247 + $0xd8] sm:$0xff]
        %v316 = vld [vmem:[%s247 + $0xe0] sm:$0xff]
        %v317 = vld [vmem:[%s247 + $0xe8] sm:$0xff]
        %v318 = vld [vmem:[%s247 + $0xf0] sm:$0xff]
        %v319 = vld [vmem:[%s247 + $0xf8] sm:$0xff]
        %v320 = vld [vmem:[%s247 + $0x100] sm:$0xff]
        %v321 = vld [vmem:[%s247 + $0x108] sm:$0xff]
        %v322 = vld [vmem:[%s247 + $0x110] sm:$0xff]
        %v323 = vld [vmem:[%s247 + $0x118] sm:$0xff]
        %v324 = vld [vmem:[%s247 + $0x120] sm:$0xff]
        %v325 = vld [vmem:[%s247 + $0x128] sm:$0xff]
        %v326 = vld [vmem:[%s247 + $0x130] sm:$0xff]
        %v327 = vld [vmem:[%s247 + $0x138] sm:$0xff]
        %v328 = vld [vmem:[%s247 + $0x140] sm:$0xff]
        %v329 = vld [vmem:[%s247 + $0x148] sm:$0xff]
        %v330 = vld [vmem:[%s247 + $0x150] sm:$0xff]
        %v331 = vld [vmem:[%s247 + $0x158] sm:$0xff]
        %v332 = vld [vmem:[%s247 + $0x160] sm:$0xff]
        %v333 = vld [vmem:[%s247 + $0x168] sm:$0xff]
        %v334 = vld [vmem:[%s247 + $0x170] sm:$0xff]
        %v335 = vld [vmem:[%s247 + $0x178] sm:$0xff]
        %v336 = vld [vmem:[%s247 + $0x180] sm:$0xff]
        %v337 = vld [vmem:[%s247 + $0x188] sm:$0xff]
        %v338 = vld [vmem:[%s247 + $0x190] sm:$0xff]
        %v339 = vld [vmem:[%s247 + $0x198] sm:$0xff]
        %v340 = vld [vmem:[%s247 + $0x1a0] sm:$0xff]
        %v341 = vld [vmem:[%s247 + $0x1a8] sm:$0xff]
        %v342 = vld [vmem:[%s247 + $0x1b0] sm:$0xff]
        %v343 = vld [vmem:[%s247 + $0x1b8] sm:$0xff]
        %v344 = vld [vmem:[%s247 + $0x1c0] sm:$0xff]
        %v345 = vld [vmem:[%s247 + $0x1c8] sm:$0xff]
        %v346 = vld [vmem:[%s247 + $0x1d0] sm:$0xff]
        %v347 = vld [vmem:[%s247 + $0x1d8] sm:$0xff]
        %v348 = vld [vmem:[%s247 + $0x1e0] sm:$0xff]
        %v349 = vld [vmem:[%s247 + $0x1e8] sm:$0xff]
        %v350 = vld [vmem:[%s247 + $0x1f0] sm:$0xff]
        %v351 = vld [vmem:[%s247 + $0x1f8] sm:$0xff]
        %v352 = vld [vmem:[%s247 + $0x200] sm:$0xff]
        %v353 = vld [vmem:[%s247 + $0x208] sm:$0xff]
        %v354 = vld [vmem:[%s247 + $0x210] sm:$0xff]
        %v355 = vld [vmem:[%s247 + $0x218] sm:$0xff]
        %v356 = vld [vmem:[%s247 + $0x220] sm:$0xff]
        %v357 = vld [vmem:[%s247 + $0x228] sm:$0xff]
        %v358 = vld [vmem:[%s247 + $0x230] sm:$0xff]
        %v359 = vld [vmem:[%s247 + $0x238] sm:$0xff]
        %v360 = vld [vmem:[%s247 + $0x240] sm:$0xff]
        %v361 = vld [vmem:[%s247 + $0x248] sm:$0xff]
        %v362 = vld [vmem:[%s247 + $0x250] sm:$0xff]
        %v363 = vld [vmem:[%s247 + $0x258] sm:$0xff]
        %v364 = vpack.c.bf16 %v290, %v288
        %v365 = vpack.c.bf16 %v291, %v289
        %v366 = vpack.c.bf16 %v294, %v292
        %v367 = vpack.c.bf16 %v295, %v293
        %v368 = vpack.c.bf16 %v298, %v296
        %v369 = vpack.c.bf16 %v299, %v297
        %v370 = vpack.c.bf16 %v302, %v300
        %v371 = vpack.c.bf16 %v303, %v301
        %v372 = vpack.c.bf16 %v306, %v304
        %v373 = vpack.c.bf16 %v307, %v305
        %v374 = vpack.c.bf16 %v310, %v308
        %v375 = vpack.c.bf16 %v311, %v309
        %v376 = vpack.c.bf16 %v314, %v312
        %v377 = vpack.c.bf16 %v315, %v313
        %v378 = vpack.c.bf16 %v318, %v316
        %v379 = vpack.c.bf16 %v319, %v317
        %v380 = vpack.c.bf16 %v322, %v320
        %v381 = vpack.c.bf16 %v323, %v321
        %v382 = vpack.c.bf16 %v326, %v324
        %v383 = vpack.c.bf16 %v327, %v325
        %v384 = vpack.c.bf16 %v330, %v328
        %v385 = vpack.c.bf16 %v331, %v329
        %v386 = vpack.c.bf16 %v334, %v332
        %v387 = vpack.c.bf16 %v335, %v333
        %v388 = vpack.c.bf16 %v338, %v336
        %v389 = vpack.c.bf16 %v339, %v337
        %v390 = vpack.c.bf16 %v342, %v340
        %v391 = vpack.c.bf16 %v343, %v341
        %v392 = vpack.c.bf16 %v346, %v344
        %v393 = vpack.c.bf16 %v347, %v345
        %v394 = vpack.c.bf16 %v350, %v348
        %v395 = vpack.c.bf16 %v351, %v349
        %v396 = vpack.c.bf16 %v354, %v352
        %v397 = vpack.c.bf16 %v355, %v353
        %v398 = vpack.c.bf16 %v358, %v356
        %v399 = vpack.c.bf16 %v359, %v357
        %v400 = vpack.c.bf16 %v362, %v360
        %v401 = vpack.c.bf16 %v363, %v361
        %v402 = vld [vmem:[#allocation5] sm:$0xff]
        %v403 = vld [vmem:[#allocation5 + $0x8] sm:$0xff]
        %v404 = vld [vmem:[#allocation5 + $0x10] sm:$0xff]
        %v405 = vld [vmem:[#allocation5 + $0x18] sm:$0xff]
        %v406 = vld [vmem:[#allocation5 + $0x20] sm:$0xff]
        %v407 = vld [vmem:[#allocation5 + $0x28] sm:$0xff]
        %v408 = vld [vmem:[#allocation5 + $0x30] sm:$0xff]
        %v409 = vld [vmem:[#allocation5 + $0x38] sm:$0xff]
        %v410 = vld [vmem:[#allocation5 + $0x40] sm:$0xff]
        %v411 = vld [vmem:[#allocation5 + $0x48] sm:$0xff]
        %v412 = vld [vmem:[#allocation5 + $0x50] sm:$0xff]
        %v413 = vld [vmem:[#allocation5 + $0x58] sm:$0xff]
        %v414 = vld [vmem:[#allocation5 + $0x60] sm:$0xff]
        %v415 = vld [vmem:[#allocation5 + $0x68] sm:$0xff]
        %v416 = vld [vmem:[#allocation5 + $0x70] sm:$0xff]
        %v417 = vld [vmem:[#allocation5 + $0x78] sm:$0xff]
        %v418 = vld [vmem:[#allocation5 + $0x80] sm:$0xff]
        %v419 = vld [vmem:[#allocation5 + $0x88] sm:$0xff]
        %v420 = vld [vmem:[#allocation5 + $0x90] sm:$0xff]
        %v421 = vld [vmem:[#allocation5 + $0x98] sm:$0xff]
        %v422 = vld [vmem:[#allocation5 + $0xa0] sm:$0xff]
        %v423 = vld [vmem:[#allocation5 + $0xa8] sm:$0xff]
        %v424 = vld [vmem:[#allocation5 + $0xb0] sm:$0xff]
        %v425 = vld [vmem:[#allocation5 + $0xb8] sm:$0xff]
        %v426 = vld [vmem:[#allocation5 + $0xc0] sm:$0xff]
        %v427 = vld [vmem:[#allocation5 + $0xc8] sm:$0xff]
        %v428 = vld [vmem:[#allocation5 + $0xd0] sm:$0xff]
        %v429 = vld [vmem:[#allocation5 + $0xd8] sm:$0xff]
        %v430 = vld [vmem:[#allocation5 + $0xe0] sm:$0xff]
        %v431 = vld [vmem:[#allocation5 + $0xe8] sm:$0xff]
        %v432 = vld [vmem:[#allocation5 + $0xf0] sm:$0xff]
        %v433 = vld [vmem:[#allocation5 + $0xf8] sm:$0xff]
        %v434 = vld [vmem:[#allocation5 + $0x100] sm:$0xff]
        %v435 = vld [vmem:[#allocation5 + $0x108] sm:$0xff]
        %v436 = vld [vmem:[#allocation5 + $0x110] sm:$0xff]
        %v437 = vld [vmem:[#allocation5 + $0x118] sm:$0xff]
        %v438 = vld [vmem:[#allocation5 + $0x120] sm:$0xff]
        %v439 = vld [vmem:[#allocation5 + $0x128] sm:$0xff]
        %v440 = vld [vmem:[#allocation5 + $0x130] sm:$0xff]
        %v441 = vld [vmem:[#allocation5 + $0x138] sm:$0xff]
        %v442 = vld [vmem:[#allocation5 + $0x140] sm:$0xff]
        %v443 = vld [vmem:[#allocation5 + $0x148] sm:$0xff]
        %v444 = vld [vmem:[#allocation5 + $0x150] sm:$0xff]
        %v445 = vld [vmem:[#allocation5 + $0x158] sm:$0xff]
        %v446 = vld [vmem:[#allocation5 + $0x160] sm:$0xff]
        %v447 = vld [vmem:[#allocation5 + $0x168] sm:$0xff]
        %v448 = vld [vmem:[#allocation5 + $0x170] sm:$0xff]
        %v449 = vld [vmem:[#allocation5 + $0x178] sm:$0xff]
        %v450 = vld [vmem:[#allocation5 + $0x180] sm:$0xff]
        %v451 = vld [vmem:[#allocation5 + $0x188] sm:$0xff]
        %v452 = vld [vmem:[#allocation5 + $0x190] sm:$0xff]
        %v453 = vld [vmem:[#allocation5 + $0x198] sm:$0xff]
        %v454 = vld [vmem:[#allocation5 + $0x1a0] sm:$0xff]
        %v455 = vld [vmem:[#allocation5 + $0x1a8] sm:$0xff]
        %v456 = vld [vmem:[#allocation5 + $0x1b0] sm:$0xff]
        %v457 = vld [vmem:[#allocation5 + $0x1b8] sm:$0xff]
        %v458 = vld [vmem:[#allocation5 + $0x1c0] sm:$0xff]
        %v459 = vld [vmem:[#allocation5 + $0x1c8] sm:$0xff]
        %v460 = vld [vmem:[#allocation5 + $0x1d0] sm:$0xff]
        %v461 = vld [vmem:[#allocation5 + $0x1d8] sm:$0xff]
        %v462 = vld [vmem:[#allocation5 + $0x1e0] sm:$0xff]
        %v463 = vld [vmem:[#allocation5 + $0x1e8] sm:$0xff]
        %v464 = vld [vmem:[#allocation5 + $0x1f0] sm:$0xff]
        %v465 = vld [vmem:[#allocation5 + $0x1f8] sm:$0xff]
        %v466 = vld [vmem:[#allocation5 + $0x200] sm:$0xff]
        %v467 = vld [vmem:[#allocation5 + $0x208] sm:$0xff]
        %v468 = vld [vmem:[#allocation5 + $0x210] sm:$0xff]
        %v469 = vld [vmem:[#allocation5 + $0x218] sm:$0xff]
        %v470 = vld [vmem:[#allocation5 + $0x220] sm:$0xff]
        %v471 = vld [vmem:[#allocation5 + $0x228] sm:$0xff]
        %v472 = vld [vmem:[#allocation5 + $0x230] sm:$0xff]
        %v473 = vld [vmem:[#allocation5 + $0x238] sm:$0xff]
        %v474 = vld [vmem:[#allocation5 + $0x240] sm:$0xff]
        %v475 = vld [vmem:[#allocation5 + $0x248] sm:$0xff]
        %v476 = vld [vmem:[#allocation5 + $0x250] sm:$0xff]
        %v477 = vld [vmem:[#allocation5 + $0x258] sm:$0xff]
        %v478 = vld [vmem:[#allocation5 + $0x260] sm:$0xff]
        %v479 = vld [vmem:[#allocation5 + $0x268] sm:$0xff]
        %v480 = vld [vmem:[#allocation5 + $0x270] sm:$0xff]
        %v481 = vld [vmem:[#allocation5 + $0x278] sm:$0xff]
        %v482 = vld [vmem:[#allocation5 + $0x280] sm:$0xff]
        %v483 = vld [vmem:[#allocation5 + $0x288] sm:$0xff]
        %v484 = vld [vmem:[#allocation5 + $0x290] sm:$0xff]
        %v485 = vld [vmem:[#allocation5 + $0x298] sm:$0xff]
        %v486 = vld [vmem:[#allocation5 + $0x2a0] sm:$0xff]
        %v487 = vld [vmem:[#allocation5 + $0x2a8] sm:$0xff]
        %v488 = vld [vmem:[#allocation5 + $0x2b0] sm:$0xff]
        %v489 = vld [vmem:[#allocation5 + $0x2b8] sm:$0xff]
        %v490 = vld [vmem:[#allocation5 + $0x2c0] sm:$0xff]
        %v491 = vld [vmem:[#allocation5 + $0x2c8] sm:$0xff]
        %v492 = vld [vmem:[#allocation5 + $0x2d0] sm:$0xff]
        %v493 = vld [vmem:[#allocation5 + $0x2d8] sm:$0xff]
        %v494 = vld [vmem:[#allocation5 + $0x2e0] sm:$0xff]
        %v495 = vld [vmem:[#allocation5 + $0x2e8] sm:$0xff]
        %v496 = vld [vmem:[#allocation5 + $0x2f0] sm:$0xff]
        %v497 = vld [vmem:[#allocation5 + $0x2f8] sm:$0xff]
        %v498 = vld [vmem:[#allocation5 + $0x300] sm:$0xff]
        %v499 = vld [vmem:[#allocation5 + $0x308] sm:$0xff]
        %v500 = vld [vmem:[#allocation5 + $0x310] sm:$0xff]
        %v501 = vld [vmem:[#allocation5 + $0x318] sm:$0xff]
        %v502 = vld [vmem:[#allocation5 + $0x320] sm:$0xff]
        %v503 = vld [vmem:[#allocation5 + $0x328] sm:$0xff]
        %v504 = vld [vmem:[#allocation5 + $0x330] sm:$0xff]
        %v505 = vld [vmem:[#allocation5 + $0x338] sm:$0xff]
        %v506 = vld [vmem:[#allocation5 + $0x340] sm:$0xff]
        %v507 = vld [vmem:[#allocation5 + $0x348] sm:$0xff]
        %v508 = vld [vmem:[#allocation5 + $0x350] sm:$0xff]
        %v509 = vld [vmem:[#allocation5 + $0x358] sm:$0xff]
        %v510 = vld [vmem:[#allocation5 + $0x360] sm:$0xff]
        %v511 = vld [vmem:[#allocation5 + $0x368] sm:$0xff]
        %v512 = vld [vmem:[#allocation5 + $0x370] sm:$0xff]
        %v513 = vld [vmem:[#allocation5 + $0x378] sm:$0xff]
        %v514 = vld [vmem:[#allocation5 + $0x380] sm:$0xff]
        %v515 = vld [vmem:[#allocation5 + $0x388] sm:$0xff]
        %v516 = vld [vmem:[#allocation5 + $0x390] sm:$0xff]
        %v517 = vld [vmem:[#allocation5 + $0x398] sm:$0xff]
        %v518 = vld [vmem:[#allocation5 + $0x3a0] sm:$0xff]
        %v519 = vld [vmem:[#allocation5 + $0x3a8] sm:$0xff]
        %v520 = vld [vmem:[#allocation5 + $0x3b0] sm:$0xff]
        %v521 = vld [vmem:[#allocation5 + $0x3b8] sm:$0xff]
        %v522 = vld [vmem:[#allocation5 + $0x3c0] sm:$0xff]
        %v523 = vld [vmem:[#allocation5 + $0x3c8] sm:$0xff]
        %v524 = vld [vmem:[#allocation5 + $0x3d0] sm:$0xff]
        %v525 = vld [vmem:[#allocation5 + $0x3d8] sm:$0xff]
        %v526 = vld [vmem:[#allocation5 + $0x3e0] sm:$0xff]
        %v527 = vld [vmem:[#allocation5 + $0x3e8] sm:$0xff]
        %v528 = vld [vmem:[#allocation5 + $0x3f0] sm:$0xff]
        %v529 = vld [vmem:[#allocation5 + $0x3f8] sm:$0xff]
        %v530 = vld [vmem:[#allocation7] sm:$0xff]
        %v532 = vlaneseq
        %v533 = vshrl.u32 %v532, 7
        %v534 = vsub.s32 0, %v533
        %v535 = vrot.slane %v530, %v534
        %v536 = vlaneseq
        %v537 = vshrl.u32 %v536, 7
        %v538 = vsub.s32 1, %v537
        %v539 = vrot.slane %v530, %v538
        %v540 = vlaneseq
        %v541 = vshrl.u32 %v540, 7
        %v542 = vsub.s32 2, %v541
        %v543 = vrot.slane %v530, %v542
        %v544 = vlaneseq
        %v545 = vshrl.u32 %v544, 7
        %v546 = vsub.s32 3, %v545
        %v547 = vrot.slane %v530, %v546
        %v548 = vlaneseq
        %v549 = vshrl.u32 %v548, 7
        %v550 = vsub.s32 4, %v549
        %v551 = vrot.slane %v530, %v550
        %v552 = vlaneseq
        %v553 = vshrl.u32 %v552, 7
        %v554 = vsub.s32 5, %v553
        %v555 = vrot.slane %v530, %v554
        %v556 = vlaneseq
        %v557 = vshrl.u32 %v556, 7
        %v558 = vsub.s32 6, %v557
        %v559 = vrot.slane %v530, %v558
        %v560 = vlaneseq
        %v561 = vshrl.u32 %v560, 7
        %v562 = vsub.s32 7, %v561
        %v563 = vrot.slane %v530, %v562
        %v700 = vunpack.c.l.b16 %v402
        %v701 = vunpack.c.h.b16 %v402
        %v702 = vunpack.c.l.b16 %v403
        %v703 = vunpack.c.h.b16 %v403
        %v704 = vunpack.c.l.b16 %v404
        %v705 = vunpack.c.h.b16 %v404
        %v706 = vunpack.c.l.b16 %v405
        %v707 = vunpack.c.h.b16 %v405
        %v708 = vunpack.c.l.b16 %v406
        %v709 = vunpack.c.h.b16 %v406
        %v710 = vunpack.c.l.b16 %v407
        %v711 = vunpack.c.h.b16 %v407
        %v712 = vunpack.c.l.b16 %v408
        %v713 = vunpack.c.h.b16 %v408
        %v714 = vunpack.c.l.b16 %v409
        %v715 = vunpack.c.h.b16 %v409
        %v716 = vunpack.c.l.b16 %v410
        %v717 = vunpack.c.h.b16 %v410
        %v718 = vunpack.c.l.b16 %v411
        %v719 = vunpack.c.h.b16 %v411
        %v720 = vunpack.c.l.b16 %v412
        %v721 = vunpack.c.h.b16 %v412
        %v722 = vunpack.c.l.b16 %v413
        %v723 = vunpack.c.h.b16 %v413
        %v724 = vunpack.c.l.b16 %v414
        %v725 = vunpack.c.h.b16 %v414
        %v726 = vunpack.c.l.b16 %v415
        %v727 = vunpack.c.h.b16 %v415
        %v728 = vunpack.c.l.b16 %v416
        %v729 = vunpack.c.h.b16 %v416
        %v730 = vunpack.c.l.b16 %v417
        %v731 = vunpack.c.h.b16 %v417
        %v732 = vunpack.c.l.b16 %v418
        %v733 = vunpack.c.h.b16 %v418
        %v734 = vunpack.c.l.b16 %v419
        %v735 = vunpack.c.h.b16 %v419
        %v736 = vunpack.c.l.b16 %v420
        %v737 = vunpack.c.h.b16 %v420
        %v738 = vunpack.c.l.b16 %v421
        %v739 = vunpack.c.h.b16 %v421
        %v740 = vunpack.c.l.b16 %v422
        %v741 = vunpack.c.h.b16 %v422
        %v742 = vunpack.c.l.b16 %v423
        %v743 = vunpack.c.h.b16 %v423
        %v744 = vunpack.c.l.b16 %v424
        %v745 = vunpack.c.h.b16 %v424
        %v746 = vunpack.c.l.b16 %v425
        %v747 = vunpack.c.h.b16 %v425
        %v748 = vunpack.c.l.b16 %v426
        %v749 = vunpack.c.h.b16 %v426
        %v750 = vunpack.c.l.b16 %v427
        %v751 = vunpack.c.h.b16 %v427
        %v752 = vunpack.c.l.b16 %v428
        %v753 = vunpack.c.h.b16 %v428
        %v754 = vunpack.c.l.b16 %v429
        %v755 = vunpack.c.h.b16 %v429
        %v756 = vunpack.c.l.b16 %v430
        %v757 = vunpack.c.h.b16 %v430
        %v758 = vunpack.c.l.b16 %v431
        %v759 = vunpack.c.h.b16 %v431
        %v760 = vunpack.c.l.b16 %v432
        %v761 = vunpack.c.h.b16 %v432
        %v762 = vunpack.c.l.b16 %v433
        %v763 = vunpack.c.h.b16 %v433
        %v764 = vunpack.c.l.b16 %v434
        %v765 = vunpack.c.h.b16 %v434
        %v766 = vunpack.c.l.b16 %v435
        %v767 = vunpack.c.h.b16 %v435
        %v768 = vunpack.c.l.b16 %v436
        %v769 = vunpack.c.h.b16 %v436
        %v770 = vunpack.c.l.b16 %v437
        %v771 = vunpack.c.h.b16 %v437
        %v772 = vunpack.c.l.b16 %v438
        %v773 = vunpack.c.h.b16 %v438
        %v774 = vunpack.c.l.b16 %v439
        %v775 = vunpack.c.h.b16 %v439
        %v776 = vunpack.c.l.b16 %v440
        %v777 = vunpack.c.h.b16 %v440
        %v778 = vunpack.c.l.b16 %v441
        %v779 = vunpack.c.h.b16 %v441
        %v780 = vunpack.c.l.b16 %v442
        %v781 = vunpack.c.h.b16 %v442
        %v782 = vunpack.c.l.b16 %v443
        %v783 = vunpack.c.h.b16 %v443
        %v784 = vunpack.c.l.b16 %v444
        %v785 = vunpack.c.h.b16 %v444
        %v786 = vunpack.c.l.b16 %v445
        %v787 = vunpack.c.h.b16 %v445
        %v788 = vunpack.c.l.b16 %v446
        %v789 = vunpack.c.h.b16 %v446
        %v790 = vunpack.c.l.b16 %v447
        %v791 = vunpack.c.h.b16 %v447
        %v792 = vunpack.c.l.b16 %v448
        %v793 = vunpack.c.h.b16 %v448
        %v794 = vunpack.c.l.b16 %v449
        %v795 = vunpack.c.h.b16 %v449
        %v796 = vunpack.c.l.b16 %v450
        %v797 = vunpack.c.h.b16 %v450
        %v798 = vunpack.c.l.b16 %v451
        %v799 = vunpack.c.h.b16 %v451
        %v800 = vunpack.c.l.b16 %v452
        %v801 = vunpack.c.h.b16 %v452
        %v802 = vunpack.c.l.b16 %v453
        %v803 = vunpack.c.h.b16 %v453
        %v804 = vunpack.c.l.b16 %v454
        %v805 = vunpack.c.h.b16 %v454
        %v806 = vunpack.c.l.b16 %v455
        %v807 = vunpack.c.h.b16 %v455
        %v808 = vunpack.c.l.b16 %v456
        %v809 = vunpack.c.h.b16 %v456
        %v810 = vunpack.c.l.b16 %v457
        %v811 = vunpack.c.h.b16 %v457
        %v812 = vunpack.c.l.b16 %v458
        %v813 = vunpack.c.h.b16 %v458
        %v814 = vunpack.c.l.b16 %v459
        %v815 = vunpack.c.h.b16 %v459
        %v816 = vunpack.c.l.b16 %v460
        %v817 = vunpack.c.h.b16 %v460
        %v818 = vunpack.c.l.b16 %v461
        %v819 = vunpack.c.h.b16 %v461
        %v820 = vunpack.c.l.b16 %v462
        %v821 = vunpack.c.h.b16 %v462
        %v822 = vunpack.c.l.b16 %v463
        %v823 = vunpack.c.h.b16 %v463
        %v824 = vunpack.c.l.b16 %v464
        %v825 = vunpack.c.h.b16 %v464
        %v826 = vunpack.c.l.b16 %v465
        %v827 = vunpack.c.h.b16 %v465
        %v828 = vunpack.c.l.b16 %v466
        %v829 = vunpack.c.h.b16 %v466
        %v830 = vunpack.c.l.b16 %v467
        %v831 = vunpack.c.h.b16 %v467
        %v832 = vunpack.c.l.b16 %v468
        %v833 = vunpack.c.h.b16 %v468
        %v834 = vunpack.c.l.b16 %v469
        %v835 = vunpack.c.h.b16 %v469
        %v836 = vunpack.c.l.b16 %v470
        %v837 = vunpack.c.h.b16 %v470
        %v838 = vunpack.c.l.b16 %v471
        %v839 = vunpack.c.h.b16 %v471
        %v840 = vunpack.c.l.b16 %v472
        %v841 = vunpack.c.h.b16 %v472
        %v842 = vunpack.c.l.b16 %v473
        %v843 = vunpack.c.h.b16 %v473
        %v844 = vunpack.c.l.b16 %v474
        %v845 = vunpack.c.h.b16 %v474
        %v846 = vunpack.c.l.b16 %v475
        %v847 = vunpack.c.h.b16 %v475
        %v848 = vunpack.c.l.b16 %v476
        %v849 = vunpack.c.h.b16 %v476
        %v850 = vunpack.c.l.b16 %v477
        %v851 = vunpack.c.h.b16 %v477
        %v852 = vunpack.c.l.b16 %v478
        %v853 = vunpack.c.h.b16 %v478
        %v854 = vunpack.c.l.b16 %v479
        %v855 = vunpack.c.h.b16 %v479
        %v856 = vunpack.c.l.b16 %v480
        %v857 = vunpack.c.h.b16 %v480
        %v858 = vunpack.c.l.b16 %v481
        %v859 = vunpack.c.h.b16 %v481
        %v860 = vunpack.c.l.b16 %v482
        %v861 = vunpack.c.h.b16 %v482
        %v862 = vunpack.c.l.b16 %v483
        %v863 = vunpack.c.h.b16 %v483
        %v864 = vunpack.c.l.b16 %v484
        %v865 = vunpack.c.h.b16 %v484
        %v866 = vunpack.c.l.b16 %v485
        %v867 = vunpack.c.h.b16 %v485
        %v868 = vunpack.c.l.b16 %v486
        %v869 = vunpack.c.h.b16 %v486
        %v870 = vunpack.c.l.b16 %v487
        %v871 = vunpack.c.h.b16 %v487
        %v872 = vunpack.c.l.b16 %v488
        %v873 = vunpack.c.h.b16 %v488
        %v874 = vunpack.c.l.b16 %v489
        %v875 = vunpack.c.h.b16 %v489
        %v876 = vunpack.c.l.b16 %v490
        %v877 = vunpack.c.h.b16 %v490
        %v878 = vunpack.c.l.b16 %v491
        %v879 = vunpack.c.h.b16 %v491
        %v880 = vunpack.c.l.b16 %v492
        %v881 = vunpack.c.h.b16 %v492
        %v882 = vunpack.c.l.b16 %v493
        %v883 = vunpack.c.h.b16 %v493
        %v884 = vunpack.c.l.b16 %v494
        %v885 = vunpack.c.h.b16 %v494
        %v886 = vunpack.c.l.b16 %v495
        %v887 = vunpack.c.h.b16 %v495
        %v888 = vunpack.c.l.b16 %v496
        %v889 = vunpack.c.h.b16 %v496
        %v890 = vunpack.c.l.b16 %v497
        %v891 = vunpack.c.h.b16 %v497
        %v892 = vunpack.c.l.b16 %v498
        %v893 = vunpack.c.h.b16 %v498
        %v894 = vunpack.c.l.b16 %v499
        %v895 = vunpack.c.h.b16 %v499
        %v896 = vunpack.c.l.b16 %v500
        %v897 = vunpack.c.h.b16 %v500
        %v898 = vunpack.c.l.b16 %v501
        %v899 = vunpack.c.h.b16 %v501
        %v900 = vunpack.c.l.b16 %v502
        %v901 = vunpack.c.h.b16 %v502
        %v902 = vunpack.c.l.b16 %v503
        %v903 = vunpack.c.h.b16 %v503
        %v904 = vunpack.c.l.b16 %v504
        %v905 = vunpack.c.h.b16 %v504
        %v906 = vunpack.c.l.b16 %v505
        %v907 = vunpack.c.h.b16 %v505
        %v908 = vunpack.c.l.b16 %v506
        %v909 = vunpack.c.h.b16 %v506
        %v910 = vunpack.c.l.b16 %v507
        %v911 = vunpack.c.h.b16 %v507
        %v912 = vunpack.c.l.b16 %v508
        %v913 = vunpack.c.h.b16 %v508
        %v914 = vunpack.c.l.b16 %v509
        %v915 = vunpack.c.h.b16 %v509
        %v916 = vunpack.c.l.b16 %v510
        %v917 = vunpack.c.h.b16 %v510
        %v918 = vunpack.c.l.b16 %v511
        %v919 = vunpack.c.h.b16 %v511
        %v920 = vunpack.c.l.b16 %v512
        %v921 = vunpack.c.h.b16 %v512
        %v922 = vunpack.c.l.b16 %v513
        %v923 = vunpack.c.h.b16 %v513
        %v924 = vunpack.c.l.b16 %v514
        %v925 = vunpack.c.h.b16 %v514
        %v926 = vunpack.c.l.b16 %v515
        %v927 = vunpack.c.h.b16 %v515
        %v928 = vunpack.c.l.b16 %v516
        %v929 = vunpack.c.h.b16 %v516
        %v930 = vunpack.c.l.b16 %v517
        %v931 = vunpack.c.h.b16 %v517
        %v932 = vunpack.c.l.b16 %v518
        %v933 = vunpack.c.h.b16 %v518
        %v934 = vunpack.c.l.b16 %v519
        %v935 = vunpack.c.h.b16 %v519
        %v936 = vunpack.c.l.b16 %v520
        %v937 = vunpack.c.h.b16 %v520
        %v938 = vunpack.c.l.b16 %v521
        %v939 = vunpack.c.h.b16 %v521
        %v940 = vunpack.c.l.b16 %v522
        %v941 = vunpack.c.h.b16 %v522
        %v942 = vunpack.c.l.b16 %v523
        %v943 = vunpack.c.h.b16 %v523
        %v944 = vunpack.c.l.b16 %v524
        %v945 = vunpack.c.h.b16 %v524
        %v946 = vunpack.c.l.b16 %v525
        %v947 = vunpack.c.h.b16 %v525
        %v948 = vunpack.c.l.b16 %v526
        %v949 = vunpack.c.h.b16 %v526
        %v950 = vunpack.c.l.b16 %v527
        %v951 = vunpack.c.h.b16 %v527
        %v952 = vunpack.c.l.b16 %v528
        %v953 = vunpack.c.h.b16 %v528
        %v954 = vunpack.c.l.b16 %v529
        %v955 = vunpack.c.h.b16 %v529
        %v956 = vpack.c.b16 %v708, %v700
        %v957 = vpack.c.b16 %v709, %v701
        %v958 = vpack.c.b16 %v710, %v702
        %v959 = vpack.c.b16 %v711, %v703
        %v960 = vpack.c.b16 %v712, %v704
        %v961 = vpack.c.b16 %v713, %v705
        %v962 = vpack.c.b16 %v714, %v706
        %v963 = vpack.c.b16 %v715, %v707
        %v964 = vpack.c.b16 %v724, %v716
        %v965 = vpack.c.b16 %v725, %v717
        %v966 = vpack.c.b16 %v726, %v718
        %v967 = vpack.c.b16 %v727, %v719
        %v968 = vpack.c.b16 %v728, %v720
        %v969 = vpack.c.b16 %v729, %v721
        %v970 = vpack.c.b16 %v730, %v722
        %v971 = vpack.c.b16 %v731, %v723
        %v972 = vpack.c.b16 %v740, %v732
        %v973 = vpack.c.b16 %v741, %v733
        %v974 = vpack.c.b16 %v742, %v734
        %v975 = vpack.c.b16 %v743, %v735
        %v976 = vpack.c.b16 %v744, %v736
        %v977 = vpack.c.b16 %v745, %v737
        %v978 = vpack.c.b16 %v746, %v738
        %v979 = vpack.c.b16 %v747, %v739
        %v980 = vpack.c.b16 %v756, %v748
        %v981 = vpack.c.b16 %v757, %v749
        %v982 = vpack.c.b16 %v758, %v750
        %v983 = vpack.c.b16 %v759, %v751
        %v984 = vpack.c.b16 %v760, %v752
        %v985 = vpack.c.b16 %v761, %v753
        %v986 = vpack.c.b16 %v762, %v754
        %v987 = vpack.c.b16 %v763, %v755
        %v988 = vpack.c.b16 %v772, %v764
        %v989 = vpack.c.b16 %v773, %v765
        %v990 = vpack.c.b16 %v774, %v766
        %v991 = vpack.c.b16 %v775, %v767
        %v992 = vpack.c.b16 %v776, %v768
        %v993 = vpack.c.b16 %v777, %v769
        %v994 = vpack.c.b16 %v778, %v770
        %v995 = vpack.c.b16 %v779, %v771
        %v996 = vpack.c.b16 %v788, %v780
        %v997 = vpack.c.b16 %v789, %v781
        %v998 = vpack.c.b16 %v790, %v782
        %v999 = vpack.c.b16 %v791, %v783
        %v1000 = vpack.c.b16 %v792, %v784
        %v1001 = vpack.c.b16 %v793, %v785
        %v1002 = vpack.c.b16 %v794, %v786
        %v1003 = vpack.c.b16 %v795, %v787
        %v1004 = vpack.c.b16 %v804, %v796
        %v1005 = vpack.c.b16 %v805, %v797
        %v1006 = vpack.c.b16 %v806, %v798
        %v1007 = vpack.c.b16 %v807, %v799
        %v1008 = vpack.c.b16 %v808, %v800
        %v1009 = vpack.c.b16 %v809, %v801
        %v1010 = vpack.c.b16 %v810, %v802
        %v1011 = vpack.c.b16 %v811, %v803
        %v1012 = vpack.c.b16 %v820, %v812
        %v1013 = vpack.c.b16 %v821, %v813
        %v1014 = vpack.c.b16 %v822, %v814
        %v1015 = vpack.c.b16 %v823, %v815
        %v1016 = vpack.c.b16 %v824, %v816
        %v1017 = vpack.c.b16 %v825, %v817
        %v1018 = vpack.c.b16 %v826, %v818
        %v1019 = vpack.c.b16 %v827, %v819
        %v1020 = vpack.c.b16 %v836, %v828
        %v1021 = vpack.c.b16 %v837, %v829
        %v1022 = vpack.c.b16 %v838, %v830
        %v1023 = vpack.c.b16 %v839, %v831
        %v1024 = vpack.c.b16 %v840, %v832
        %v1025 = vpack.c.b16 %v841, %v833
        %v1026 = vpack.c.b16 %v842, %v834
        %v1027 = vpack.c.b16 %v843, %v835
        %v1028 = vpack.c.b16 %v852, %v844
        %v1029 = vpack.c.b16 %v853, %v845
        %v1030 = vpack.c.b16 %v854, %v846
        %v1031 = vpack.c.b16 %v855, %v847
        %v1032 = vpack.c.b16 %v856, %v848
        %v1033 = vpack.c.b16 %v857, %v849
        %v1034 = vpack.c.b16 %v858, %v850
        %v1035 = vpack.c.b16 %v859, %v851
        %v1036 = vpack.c.b16 %v868, %v860
        %v1037 = vpack.c.b16 %v869, %v861
        %v1038 = vpack.c.b16 %v870, %v862
        %v1039 = vpack.c.b16 %v871, %v863
        %v1040 = vpack.c.b16 %v872, %v864
        %v1041 = vpack.c.b16 %v873, %v865
        %v1042 = vpack.c.b16 %v874, %v866
        %v1043 = vpack.c.b16 %v875, %v867
        %v1044 = vpack.c.b16 %v884, %v876
        %v1045 = vpack.c.b16 %v885, %v877
        %v1046 = vpack.c.b16 %v886, %v878
        %v1047 = vpack.c.b16 %v887, %v879
        %v1048 = vpack.c.b16 %v888, %v880
        %v1049 = vpack.c.b16 %v889, %v881
        %v1050 = vpack.c.b16 %v890, %v882
        %v1051 = vpack.c.b16 %v891, %v883
        %v1052 = vpack.c.b16 %v900, %v892
        %v1053 = vpack.c.b16 %v901, %v893
        %v1054 = vpack.c.b16 %v902, %v894
        %v1055 = vpack.c.b16 %v903, %v895
        %v1056 = vpack.c.b16 %v904, %v896
        %v1057 = vpack.c.b16 %v905, %v897
        %v1058 = vpack.c.b16 %v906, %v898
        %v1059 = vpack.c.b16 %v907, %v899
        %v1060 = vpack.c.b16 %v916, %v908
        %v1061 = vpack.c.b16 %v917, %v909
        %v1062 = vpack.c.b16 %v918, %v910
        %v1063 = vpack.c.b16 %v919, %v911
        %v1064 = vpack.c.b16 %v920, %v912
        %v1065 = vpack.c.b16 %v921, %v913
        %v1066 = vpack.c.b16 %v922, %v914
        %v1067 = vpack.c.b16 %v923, %v915
        %v1068 = vpack.c.b16 %v932, %v924
        %v1069 = vpack.c.b16 %v933, %v925
        %v1070 = vpack.c.b16 %v934, %v926
        %v1071 = vpack.c.b16 %v935, %v927
        %v1072 = vpack.c.b16 %v936, %v928
        %v1073 = vpack.c.b16 %v937, %v929
        %v1074 = vpack.c.b16 %v938, %v930
        %v1075 = vpack.c.b16 %v939, %v931
        %v1076 = vpack.c.b16 %v948, %v940
        %v1077 = vpack.c.b16 %v949, %v941
        %v1078 = vpack.c.b16 %v950, %v942
        %v1079 = vpack.c.b16 %v951, %v943
        %v1080 = vpack.c.b16 %v952, %v944
        %v1081 = vpack.c.b16 %v953, %v945
        %v1082 = vpack.c.b16 %v954, %v946
        %v1083 = vpack.c.b16 %v955, %v947
        %1212 = vmatprep.subr.bf16.mxu0 %v957
        %1213 = vmatpush1.bf16.msra.mxu0 %v956
        %1214 = vmatprep.subr.bf16.mxu0 %v965
        %1215 = vmatpush1.bf16.msra.mxu0 %v964
        %1216 = vmatprep.subr.bf16.mxu0 %v973
        %1217 = vmatpush1.bf16.msra.mxu0 %v972
        %1218 = vmatprep.subr.bf16.mxu0 %v981
        %1219 = vmatpush1.bf16.msra.mxu0 %v980
        %1220 = vmatprep.subr.bf16.mxu0 %v989
        %1221 = vmatpush1.bf16.msra.mxu0 %v988
        %1222 = vmatprep.subr.bf16.mxu0 %v997
        %1223 = vmatpush1.bf16.msra.mxu0 %v996
        %1224 = vmatprep.subr.bf16.mxu0 %v1005
        %1225 = vmatpush1.bf16.msra.mxu0 %v1004
        %1226 = vmatprep.subr.bf16.mxu0 %v1013
        %1227 = vmatpush1.bf16.msra.mxu0 %v1012
        %1228 = vmatprep.subr.bf16.mxu0 %v1021
        %1229 = vmatpush1.bf16.msra.mxu0 %v1020
        %1230 = vmatprep.subr.bf16.mxu0 %v1029
        %1231 = vmatpush1.bf16.msra.mxu0 %v1028
        %1232 = vmatprep.subr.bf16.mxu0 %v1037
        %1233 = vmatpush1.bf16.msra.mxu0 %v1036
        %1234 = vmatprep.subr.bf16.mxu0 %v1045
        %1235 = vmatpush1.bf16.msra.mxu0 %v1044
        %1236 = vmatprep.subr.bf16.mxu0 %v1053
        %1237 = vmatpush1.bf16.msra.mxu0 %v1052
        %1238 = vmatprep.subr.bf16.mxu0 %v1061
        %1239 = vmatpush1.bf16.msra.mxu0 %v1060
        %1240 = vmatprep.subr.bf16.mxu0 %v1069
        %1241 = vmatpush1.bf16.msra.mxu0 %v1068
        %1242 = vmatprep.subr.bf16.mxu0 %v1077
        %1243 = vmatpush1.bf16.msra.mxu0 %v1076
        %1244 = vmatprep.mubr.bf16.mxu0 %v365
        %1245 = vmatmul.mubr.bf16.gmra.mrb[0].mxu0 %v364
        %v1246 = vpop.f32.mrb[0].mxu0
        %v1247 = vadd.f32 %v535, %v1246
        %v1248 = vpop.f32.mrb[0].mxu0
        %v1249 = vadd.f32 %v539, %v1248
        %v1250 = vpop.f32.mrb[0].mxu0
        %v1251 = vadd.f32 %v535, %v1250
        %v1252 = vpop.f32.mrb[0].mxu0
        %v1253 = vadd.f32 %v539, %v1252
        %1254 = vmatprep.mubr.bf16.mxu0 %v367
        %1255 = vmatmul.mubr.bf16.gmra.mrb[0].mxu0 %v366
        %v1256 = vpop.f32.mrb[0].mxu0
        %v1257 = vadd.f32 %v535, %v1256
        %v1258 = vpop.f32.mrb[0].mxu0
        %v1259 = vadd.f32 %v539, %v1258
        %v1260 = vpop.f32.mrb[0].mxu0
        %v1261 = vadd.f32 %v535, %v1260
        %v1262 = vpop.f32.mrb[0].mxu0
        %v1263 = vadd.f32 %v539, %v1262
        %1264 = vmatprep.mubr.bf16.mxu0 %v369
        %1265 = vmatmul.mubr.bf16.gmra.mrb[0].mxu0 %v368
        %v1266 = vpop.f32.mrb[0].mxu0
        %v1267 = vadd.f32 %v535, %v1266
        %v1268 = vpop.f32.mrb[0].mxu0
        %v1269 = vadd.f32 %v539, %v1268
        %v1270 = vpop.f32.mrb[0].mxu0
        %v1271 = vadd.f32 %v535, %v1270
        %v1272 = vpop.f32.mrb[0].mxu0
        %v1273 = vadd.f32 %v539, %v1272
        %1274 = vmatprep.mubr.bf16.mxu0 %v371
        %1275 = vmatmul.mubr.bf16.gmra.mrb[0].mxu0 %v370
        %v1276 = vpop.f32.mrb[0].mxu0
        %v1277 = vadd.f32 %v535, %v1276
        %v1278 = vpop.f32.mrb[0].mxu0
        %v1279 = vadd.f32 %v539, %v1278
        %v1280 = vpop.f32.mrb[0].mxu0
        %v1281 = vadd.f32 %v535, %v1280
        %v1282 = vpop.f32.mrb[0].mxu0
        %v1283 = vadd.f32 %v539, %v1282
        %1284 = vmatprep.mubr.bf16.mxu0 %v373
        %1285 = vmatmul.mubr.bf16.gmra.mrb[0].mxu0 %v372
        %v1286 = vpop.f32.mrb[0].mxu0
        %v1287 = vadd.f32 %v535, %v1286
        %v1288 = vpop.f32.mrb[0].mxu0
        %v1289 = vadd.f32 %v539, %v1288
        %v1290 = vpop.f32.mrb[0].mxu0
        %v1291 = vadd.f32 %v535, %v1290
        %v1292 = vpop.f32.mrb[0].mxu0
        %v1293 = vadd.f32 %v539, %v1292
        %1294 = vmatprep.mubr.bf16.mxu0 %v375
        %1295 = vmatmul.mubr.bf16.gmra.mrb[0].mxu0 %v374
        %v1296 = vpop.f32.mrb[0].mxu0
        %v1297 = vadd.f32 %v535, %v1296
        %v1298 = vpop.f32.mrb[0].mxu0
        %v1299 = vadd.f32 %v539, %v1298
        %v1300 = vpop.f32.mrb[0].mxu0
        %v1301 = vadd.f32 %v535, %v1300
        %v1302 = vpop.f32.mrb[0].mxu0
        %v1303 = vadd.f32 %v539, %v1302
        %1304 = vmatprep.mubr.bf16.mxu0 %v377
        %1305 = vmatmul.mubr.bf16.gmra.mrb[0].mxu0 %v376
        %v1306 = vpop.f32.mrb[0].mxu0
        %v1307 = vadd.f32 %v535, %v1306
        %v1308 = vpop.f32.mrb[0].mxu0
        %v1309 = vadd.f32 %v539, %v1308
        %v1310 = vpop.f32.mrb[0].mxu0
        %v1311 = vadd.f32 %v535, %v1310
        %v1312 = vpop.f32.mrb[0].mxu0
        %v1313 = vadd.f32 %v539, %v1312
        %1314 = vmatprep.mubr.bf16.mxu0 %v379
        %1315 = vmatmul.mubr.bf16.gmra.mrb[0].mxu0 %v378
        %v1316 = vpop.f32.mrb[0].mxu0
        %v1317 = vadd.f32 %v535, %v1316
        %v1318 = vpop.f32.mrb[0].mxu0
        %v1319 = vadd.f32 %v539, %v1318
        %v1320 = vpop.f32.mrb[0].mxu0
        %v1321 = vadd.f32 %v535, %v1320
        %v1322 = vpop.f32.mrb[0].mxu0
        %v1323 = vadd.f32 %v539, %v1322
        %1324 = vmatprep.mubr.bf16.mxu0 %v381
        %1325 = vmatmul.mubr.bf16.gmra.mrb[0].mxu0 %v380
        %v1326 = vpop.f32.mrb[0].mxu0
        %v1327 = vadd.f32 %v535, %v1326
        %v1328 = vpop.f32.mrb[0].mxu0
        %v1329 = vadd.f32 %v539, %v1328
        %v1330 = vpop.f32.mrb[0].mxu0
        %v1331 = vadd.f32 %v535, %v1330
        %v1332 = vpop.f32.mrb[0].mxu0
        %v1333 = vadd.f32 %v539, %v1332
        %1334 = vmatprep.mubr.bf16.mxu0 %v383
        %1335 = vmatmul.mubr.bf16.gmra.mrb[0].mxu0 %v382
        %v1336 = vpop.f32.mrb[0].mxu0
        %v1337 = vadd.f32 %v535, %v1336
        %v1338 = vpop.f32.mrb[0].mxu0
        %v1339 = vadd.f32 %v539, %v1338
        %v1340 = vpop.f32.mrb[0].mxu0
        %v1341 = vadd.f32 %v535, %v1340
        %v1342 = vpop.f32.mrb[0].mxu0
        %v1343 = vadd.f32 %v539, %v1342
        %1344 = vmatprep.mubr.bf16.mxu0 %v385
        %1345 = vmatmul.mubr.bf16.gmra.mrb[0].mxu0 %v384
        %v1346 = vpop.f32.mrb[0].mxu0
        %v1347 = vadd.f32 %v535, %v1346
        %v1348 = vpop.f32.mrb[0].mxu0
        %v1349 = vadd.f32 %v539, %v1348
        %v1350 = vpop.f32.mrb[0].mxu0
        %v1351 = vadd.f32 %v535, %v1350
        %v1352 = vpop.f32.mrb[0].mxu0
        %v1353 = vadd.f32 %v539, %v1352
        %1354 = vmatprep.mubr.bf16.mxu0 %v387
        %1355 = vmatmul.mubr.bf16.gmra.mrb[0].mxu0 %v386
        %v1356 = vpop.f32.mrb[0].mxu0
        %v1357 = vadd.f32 %v535, %v1356
        %v1358 = vpop.f32.mrb[0].mxu0
        %v1359 = vadd.f32 %v539, %v1358
        %v1360 = vpop.f32.mrb[0].mxu0
        %v1361 = vadd.f32 %v535, %v1360
        %v1362 = vpop.f32.mrb[0].mxu0
        %v1363 = vadd.f32 %v539, %v1362
        %1364 = vmatprep.mubr.bf16.mxu0 %v389
        %1365 = vmatmul.mubr.bf16.gmra.mrb[0].mxu0 %v388
        %v1366 = vpop.f32.mrb[0].mxu0
        %v1367 = vadd.f32 %v535, %v1366
        %v1368 = vpop.f32.mrb[0].mxu0
        %v1369 = vadd.f32 %v539, %v1368
        %v1370 = vpop.f32.mrb[0].mxu0
        %v1371 = vadd.f32 %v535, %v1370
        %v1372 = vpop.f32.mrb[0].mxu0
        %v1373 = vadd.f32 %v539, %v1372
        %1374 = vmatprep.mubr.bf16.mxu0 %v391
        %1375 = vmatmul.mubr.bf16.gmra.mrb[0].mxu0 %v390
        %v1376 = vpop.f32.mrb[0].mxu0
        %v1377 = vadd.f32 %v535, %v1376
        %v1378 = vpop.f32.mrb[0].mxu0
        %v1379 = vadd.f32 %v539, %v1378
        %v1380 = vpop.f32.mrb[0].mxu0
        %v1381 = vadd.f32 %v535, %v1380
        %v1382 = vpop.f32.mrb[0].mxu0
        %v1383 = vadd.f32 %v539, %v1382
        %1384 = vmatprep.mubr.bf16.mxu0 %v393
        %1385 = vmatmul.mubr.bf16.gmra.mrb[0].mxu0 %v392
        %v1386 = vpop.f32.mrb[0].mxu0
        %v1387 = vadd.f32 %v535, %v1386
        %v1388 = vpop.f32.mrb[0].mxu0
        %v1389 = vadd.f32 %v539, %v1388
        %v1390 = vpop.f32.mrb[0].mxu0
        %v1391 = vadd.f32 %v535, %v1390
        %v1392 = vpop.f32.mrb[0].mxu0
        %v1393 = vadd.f32 %v539, %v1392
        %1394 = vmatprep.mubr.bf16.mxu0 %v395
        %1395 = vmatmul.mubr.bf16.gmra.mrb[0].mxu0 %v394
        %v1396 = vpop.f32.mrb[0].mxu0
        %v1397 = vadd.f32 %v535, %v1396
        %v1398 = vpop.f32.mrb[0].mxu0
        %v1399 = vadd.f32 %v539, %v1398
        %v1400 = vpop.f32.mrb[0].mxu0
        %v1401 = vadd.f32 %v535, %v1400
        %v1402 = vpop.f32.mrb[0].mxu0
        %v1403 = vadd.f32 %v539, %v1402
        %1404 = vmatprep.mubr.bf16.mxu0 %v397
        %1405 = vmatmul.mubr.bf16.gmra.mrb[0].mxu0 %v396
        %v1406 = vpop.f32.mrb[0].mxu0
        %v1407 = vadd.f32 %v535, %v1406
        %v1408 = vpop.f32.mrb[0].mxu0
        %v1409 = vadd.f32 %v539, %v1408
        %v1410 = vpop.f32.mrb[0].mxu0
        %v1411 = vadd.f32 %v535, %v1410
        %v1412 = vpop.f32.mrb[0].mxu0
        %v1413 = vadd.f32 %v539, %v1412
        %1414 = vmatprep.mubr.bf16.mxu0 %v399
        %1415 = vmatmul.mubr.bf16.gmra.mrb[0].mxu0 %v398
        %v1416 = vpop.f32.mrb[0].mxu0
        %v1417 = vadd.f32 %v535, %v1416
        %v1418 = vpop.f32.mrb[0].mxu0
        %v1419 = vadd.f32 %v539, %v1418
        %v1420 = vpop.f32.mrb[0].mxu0
        %v1421 = vadd.f32 %v535, %v1420
        %v1422 = vpop.f32.mrb[0].mxu0
        %v1423 = vadd.f32 %v539, %v1422
        %1424 = vmatprep.mubr.bf16.mxu0 %v401
        %1425 = vmatmul.mubr.bf16.gmra.mrb[0].mxu0 %v400
        %v1426 = vpop.f32.mrb[0].mxu0
        %v1427 = vadd.f32 %v535, %v1426
        %v1428 = vpop.f32.mrb[0].mxu0
        %v1429 = vadd.f32 %v539, %v1428
        %v1430 = vpop.f32.mrb[0].mxu0
        %v1431 = vadd.f32 %v535, %v1430
        %v1432 = vpop.f32.mrb[0].mxu0
        %v1433 = vadd.f32 %v539, %v1432
        %1434 = vdwg.mxu0
        %1435 = vmatprep.subr.bf16.mxu0 %v959
        %1436 = vmatpush1.bf16.msra.mxu0 %v958
        %1437 = vmatprep.subr.bf16.mxu0 %v967
        %1438 = vmatpush1.bf16.msra.mxu0 %v966
        %1439 = vmatprep.subr.bf16.mxu0 %v975
        %1440 = vmatpush1.bf16.msra.mxu0 %v974
        %1441 = vmatprep.subr.bf16.mxu0 %v983
        %1442 = vmatpush1.bf16.msra.mxu0 %v982
        %1443 = vmatprep.subr.bf16.mxu0 %v991
        %1444 = vmatpush1.bf16.msra.mxu0 %v990
        %1445 = vmatprep.subr.bf16.mxu0 %v999
        %1446 = vmatpush1.bf16.msra.mxu0 %v998
        %1447 = vmatprep.subr.bf16.mxu0 %v1007
        %1448 = vmatpush1.bf16.msra.mxu0 %v1006
        %1449 = vmatprep.subr.bf16.mxu0 %v1015
        %1450 = vmatpush1.bf16.msra.mxu0 %v1014
        %1451 = vmatprep.subr.bf16.mxu0 %v1023
        %1452 = vmatpush1.bf16.msra.mxu0 %v1022
        %1453 = vmatprep.subr.bf16.mxu0 %v1031
        %1454 = vmatpush1.bf16.msra.mxu0 %v1030
        %1455 = vmatprep.subr.bf16.mxu0 %v1039
        %1456 = vmatpush1.bf16.msra.mxu0 %v1038
        %1457 = vmatprep.subr.bf16.mxu0 %v1047
        %1458 = vmatpush1.bf16.msra.mxu0 %v1046
        %1459 = vmatprep.subr.bf16.mxu0 %v1055
        %1460 = vmatpush1.bf16.msra.mxu0 %v1054
        %1461 = vmatprep.subr.bf16.mxu0 %v1063
        %1462 = vmatpush1.bf16.msra.mxu0 %v1062
        %1463 = vmatprep.subr.bf16.mxu0 %v1071
        %1464 = vmatpush1.bf16.msra.mxu0 %v1070
        %1465 = vmatprep.subr.bf16.mxu0 %v1079
        %1466 = vmatpush1.bf16.msra.mxu0 %v1078
        %1467 = vmatprep.mubr.bf16.mxu0 %v365
        %1468 = vmatmul.mubr.bf16.gmra.mrb[0].mxu0 %v364
        %v1469 = vpop.f32.mrb[0].mxu0
        %v1470 = vadd.f32 %v543, %v1469
        %v1471 = vpop.f32.mrb[0].mxu0
        %v1472 = vadd.f32 %v547, %v1471
        %v1473 = vpop.f32.mrb[0].mxu0
        %v1474 = vadd.f32 %v543, %v1473
        %v1475 = vpop.f32.mrb[0].mxu0
        %v1476 = vadd.f32 %v547, %v1475
        %1477 = vmatprep.mubr.bf16.mxu0 %v367
        %1478 = vmatmul.mubr.bf16.gmra.mrb[0].mxu0 %v366
        %v1479 = vpop.f32.mrb[0].mxu0
        %v1480 = vadd.f32 %v543, %v1479
        %v1481 = vpop.f32.mrb[0].mxu0
        %v1482 = vadd.f32 %v547, %v1481
        %v1483 = vpop.f32.mrb[0].mxu0
        %v1484 = vadd.f32 %v543, %v1483
        %v1485 = vpop.f32.mrb[0].mxu0
        %v1486 = vadd.f32 %v547, %v1485
        %1487 = vmatprep.mubr.bf16.mxu0 %v369
        %1488 = vmatmul.mubr.bf16.gmra.mrb[0].mxu0 %v368
        %v1489 = vpop.f32.mrb[0].mxu0
        %v1490 = vadd.f32 %v543, %v1489
        %v1491 = vpop.f32.mrb[0].mxu0
        %v1492 = vadd.f32 %v547, %v1491
        %v1493 = vpop.f32.mrb[0].mxu0
        %v1494 = vadd.f32 %v543, %v1493
        %v1495 = vpop.f32.mrb[0].mxu0
        %v1496 = vadd.f32 %v547, %v1495
        %1497 = vmatprep.mubr.bf16.mxu0 %v371
        %1498 = vmatmul.mubr.bf16.gmra.mrb[0].mxu0 %v370
        %v1499 = vpop.f32.mrb[0].mxu0
        %v1500 = vadd.f32 %v543, %v1499
        %v1501 = vpop.f32.mrb[0].mxu0
        %v1502 = vadd.f32 %v547, %v1501
        %v1503 = vpop.f32.mrb[0].mxu0
        %v1504 = vadd.f32 %v543, %v1503
        %v1505 = vpop.f32.mrb[0].mxu0
        %v1506 = vadd.f32 %v547, %v1505
        %1507 = vmatprep.mubr.bf16.mxu0 %v373
        %1508 = vmatmul.mubr.bf16.gmra.mrb[0].mxu0 %v372
        %v1509 = vpop.f32.mrb[0].mxu0
        %v1510 = vadd.f32 %v543, %v1509
        %v1511 = vpop.f32.mrb[0].mxu0
        %v1512 = vadd.f32 %v547, %v1511
        %v1513 = vpop.f32.mrb[0].mxu0
        %v1514 = vadd.f32 %v543, %v1513
        %v1515 = vpop.f32.mrb[0].mxu0
        %v1516 = vadd.f32 %v547, %v1515
        %1517 = vmatprep.mubr.bf16.mxu0 %v375
        %1518 = vmatmul.mubr.bf16.gmra.mrb[0].mxu0 %v374
        %v1519 = vpop.f32.mrb[0].mxu0
        %v1520 = vadd.f32 %v543, %v1519
        %v1521 = vpop.f32.mrb[0].mxu0
        %v1522 = vadd.f32 %v547, %v1521
        %v1523 = vpop.f32.mrb[0].mxu0
        %v1524 = vadd.f32 %v543, %v1523
        %v1525 = vpop.f32.mrb[0].mxu0
        %v1526 = vadd.f32 %v547, %v1525
        %1527 = vmatprep.mubr.bf16.mxu0 %v377
        %1528 = vmatmul.mubr.bf16.gmra.mrb[0].mxu0 %v376
        %v1529 = vpop.f32.mrb[0].mxu0
        %v1530 = vadd.f32 %v543, %v1529
        %v1531 = vpop.f32.mrb[0].mxu0
        %v1532 = vadd.f32 %v547, %v1531
        %v1533 = vpop.f32.mrb[0].mxu0
        %v1534 = vadd.f32 %v543, %v1533
        %v1535 = vpop.f32.mrb[0].mxu0
        %v1536 = vadd.f32 %v547, %v1535
        %1537 = vmatprep.mubr.bf16.mxu0 %v379
        %1538 = vmatmul.mubr.bf16.gmra.mrb[0].mxu0 %v378
        %v1539 = vpop.f32.mrb[0].mxu0
        %v1540 = vadd.f32 %v543, %v1539
        %v1541 = vpop.f32.mrb[0].mxu0
        %v1542 = vadd.f32 %v547, %v1541
        %v1543 = vpop.f32.mrb[0].mxu0
        %v1544 = vadd.f32 %v543, %v1543
        %v1545 = vpop.f32.mrb[0].mxu0
        %v1546 = vadd.f32 %v547, %v1545
        %1547 = vmatprep.mubr.bf16.mxu0 %v381
        %1548 = vmatmul.mubr.bf16.gmra.mrb[0].mxu0 %v380
        %v1549 = vpop.f32.mrb[0].mxu0
        %v1550 = vadd.f32 %v543, %v1549
        %v1551 = vpop.f32.mrb[0].mxu0
        %v1552 = vadd.f32 %v547, %v1551
        %v1553 = vpop.f32.mrb[0].mxu0
        %v1554 = vadd.f32 %v543, %v1553
        %v1555 = vpop.f32.mrb[0].mxu0
        %v1556 = vadd.f32 %v547, %v1555
        %1557 = vmatprep.mubr.bf16.mxu0 %v383
        %1558 = vmatmul.mubr.bf16.gmra.mrb[0].mxu0 %v382
        %v1559 = vpop.f32.mrb[0].mxu0
        %v1560 = vadd.f32 %v543, %v1559
        %v1561 = vpop.f32.mrb[0].mxu0
        %v1562 = vadd.f32 %v547, %v1561
        %v1563 = vpop.f32.mrb[0].mxu0
        %v1564 = vadd.f32 %v543, %v1563
        %v1565 = vpop.f32.mrb[0].mxu0
        %v1566 = vadd.f32 %v547, %v1565
        %1567 = vmatprep.mubr.bf16.mxu0 %v385
        %1568 = vmatmul.mubr.bf16.gmra.mrb[0].mxu0 %v384
        %v1569 = vpop.f32.mrb[0].mxu0
        %v1570 = vadd.f32 %v543, %v1569
        %v1571 = vpop.f32.mrb[0].mxu0
        %v1572 = vadd.f32 %v547, %v1571
        %v1573 = vpop.f32.mrb[0].mxu0
        %v1574 = vadd.f32 %v543, %v1573
        %v1575 = vpop.f32.mrb[0].mxu0
        %v1576 = vadd.f32 %v547, %v1575
        %1577 = vmatprep.mubr.bf16.mxu0 %v387
        %1578 = vmatmul.mubr.bf16.gmra.mrb[0].mxu0 %v386
        %v1579 = vpop.f32.mrb[0].mxu0
        %v1580 = vadd.f32 %v543, %v1579
        %v1581 = vpop.f32.mrb[0].mxu0
        %v1582 = vadd.f32 %v547, %v1581
        %v1583 = vpop.f32.mrb[0].mxu0
        %v1584 = vadd.f32 %v543, %v1583
        %v1585 = vpop.f32.mrb[0].mxu0
        %v1586 = vadd.f32 %v547, %v1585
        %1587 = vmatprep.mubr.bf16.mxu0 %v389
        %1588 = vmatmul.mubr.bf16.gmra.mrb[0].mxu0 %v388
        %v1589 = vpop.f32.mrb[0].mxu0
        %v1590 = vadd.f32 %v543, %v1589
        %v1591 = vpop.f32.mrb[0].mxu0
        %v1592 = vadd.f32 %v547, %v1591
        %v1593 = vpop.f32.mrb[0].mxu0
        %v1594 = vadd.f32 %v543, %v1593
        %v1595 = vpop.f32.mrb[0].mxu0
        %v1596 = vadd.f32 %v547, %v1595
        %1597 = vmatprep.mubr.bf16.mxu0 %v391
        %1598 = vmatmul.mubr.bf16.gmra.mrb[0].mxu0 %v390
        %v1599 = vpop.f32.mrb[0].mxu0
        %v1600 = vadd.f32 %v543, %v1599
        %v1601 = vpop.f32.mrb[0].mxu0
        %v1602 = vadd.f32 %v547, %v1601
        %v1603 = vpop.f32.mrb[0].mxu0
        %v1604 = vadd.f32 %v543, %v1603
        %v1605 = vpop.f32.mrb[0].mxu0
        %v1606 = vadd.f32 %v547, %v1605
        %1607 = vmatprep.mubr.bf16.mxu0 %v393
        %1608 = vmatmul.mubr.bf16.gmra.mrb[0].mxu0 %v392
        %v1609 = vpop.f32.mrb[0].mxu0
        %v1610 = vadd.f32 %v543, %v1609
        %v1611 = vpop.f32.mrb[0].mxu0
        %v1612 = vadd.f32 %v547, %v1611
        %v1613 = vpop.f32.mrb[0].mxu0
        %v1614 = vadd.f32 %v543, %v1613
        %v1615 = vpop.f32.mrb[0].mxu0
        %v1616 = vadd.f32 %v547, %v1615
        %1617 = vmatprep.mubr.bf16.mxu0 %v395
        %1618 = vmatmul.mubr.bf16.gmra.mrb[0].mxu0 %v394
        %v1619 = vpop.f32.mrb[0].mxu0
        %v1620 = vadd.f32 %v543, %v1619
        %v1621 = vpop.f32.mrb[0].mxu0
        %v1622 = vadd.f32 %v547, %v1621
        %v1623 = vpop.f32.mrb[0].mxu0
        %v1624 = vadd.f32 %v543, %v1623
        %v1625 = vpop.f32.mrb[0].mxu0
        %v1626 = vadd.f32 %v547, %v1625
        %1627 = vmatprep.mubr.bf16.mxu0 %v397
        %1628 = vmatmul.mubr.bf16.gmra.mrb[0].mxu0 %v396
        %v1629 = vpop.f32.mrb[0].mxu0
        %v1630 = vadd.f32 %v543, %v1629
        %v1631 = vpop.f32.mrb[0].mxu0
        %v1632 = vadd.f32 %v547, %v1631
        %v1633 = vpop.f32.mrb[0].mxu0
        %v1634 = vadd.f32 %v543, %v1633
        %v1635 = vpop.f32.mrb[0].mxu0
        %v1636 = vadd.f32 %v547, %v1635
        %1637 = vmatprep.mubr.bf16.mxu0 %v399
        %1638 = vmatmul.mubr.bf16.gmra.mrb[0].mxu0 %v398
        %v1639 = vpop.f32.mrb[0].mxu0
        %v1640 = vadd.f32 %v543, %v1639
        %v1641 = vpop.f32.mrb[0].mxu0
        %v1642 = vadd.f32 %v547, %v1641
        %v1643 = vpop.f32.mrb[0].mxu0
        %v1644 = vadd.f32 %v543, %v1643
        %v1645 = vpop.f32.mrb[0].mxu0
        %v1646 = vadd.f32 %v547, %v1645
        %1647 = vmatprep.mubr.bf16.mxu0 %v401
        %1648 = vmatmul.mubr.bf16.gmra.mrb[0].mxu0 %v400
        %v1649 = vpop.f32.mrb[0].mxu0
        %v1650 = vadd.f32 %v543, %v1649
        %v1651 = vpop.f32.mrb[0].mxu0
        %v1652 = vadd.f32 %v547, %v1651
        %v1653 = vpop.f32.mrb[0].mxu0
        %v1654 = vadd.f32 %v543, %v1653
        %v1655 = vpop.f32.mrb[0].mxu0
        %v1656 = vadd.f32 %v547, %v1655
        %1657 = vdwg.mxu0
        %1658 = vmatprep.subr.bf16.mxu0 %v961
        %1659 = vmatpush1.bf16.msra.mxu0 %v960
        %1660 = vmatprep.subr.bf16.mxu0 %v969
        %1661 = vmatpush1.bf16.msra.mxu0 %v968
        %1662 = vmatprep.subr.bf16.mxu0 %v977
        %1663 = vmatpush1.bf16.msra.mxu0 %v976
        %1664 = vmatprep.subr.bf16.mxu0 %v985
        %1665 = vmatpush1.bf16.msra.mxu0 %v984
        %1666 = vmatprep.subr.bf16.mxu0 %v993
        %1667 = vmatpush1.bf16.msra.mxu0 %v992
        %1668 = vmatprep.subr.bf16.mxu0 %v1001
        %1669 = vmatpush1.bf16.msra.mxu0 %v1000
        %1670 = vmatprep.subr.bf16.mxu0 %v1009
        %1671 = vmatpush1.bf16.msra.mxu0 %v1008
        %1672 = vmatprep.subr.bf16.mxu0 %v1017
        %1673 = vmatpush1.bf16.msra.mxu0 %v1016
        %1674 = vmatprep.subr.bf16.mxu0 %v1025
        %1675 = vmatpush1.bf16.msra.mxu0 %v1024
        %1676 = vmatprep.subr.bf16.mxu0 %v1033
        %1677 = vmatpush1.bf16.msra.mxu0 %v1032
        %1678 = vmatprep.subr.bf16.mxu0 %v1041
        %1679 = vmatpush1.bf16.msra.mxu0 %v1040
        %1680 = vmatprep.subr.bf16.mxu0 %v1049
        %1681 = vmatpush1.bf16.msra.mxu0 %v1048
        %1682 = vmatprep.subr.bf16.mxu0 %v1057
        %1683 = vmatpush1.bf16.msra.mxu0 %v1056
        %1684 = vmatprep.subr.bf16.mxu0 %v1065
        %1685 = vmatpush1.bf16.msra.mxu0 %v1064
        %1686 = vmatprep.subr.bf16.mxu0 %v1073
        %1687 = vmatpush1.bf16.msra.mxu0 %v1072
        %1688 = vmatprep.subr.bf16.mxu0 %v1081
        %1689 = vmatpush1.bf16.msra.mxu0 %v1080
        %1690 = vmatprep.mubr.bf16.mxu0 %v365
        %1691 = vmatmul.mubr.bf16.gmra.mrb[0].mxu0 %v364
        %v1692 = vpop.f32.mrb[0].mxu0
        %v1693 = vadd.f32 %v551, %v1692
        %v1694 = vpop.f32.mrb[0].mxu0
        %v1695 = vadd.f32 %v555, %v1694
        %v1696 = vpop.f32.mrb[0].mxu0
        %v1697 = vadd.f32 %v551, %v1696
        %v1698 = vpop.f32.mrb[0].mxu0
        %v1699 = vadd.f32 %v555, %v1698
        %1700 = vmatprep.mubr.bf16.mxu0 %v367
        %1701 = vmatmul.mubr.bf16.gmra.mrb[0].mxu0 %v366
        %v1702 = vpop.f32.mrb[0].mxu0
        %v1703 = vadd.f32 %v551, %v1702
        %v1704 = vpop.f32.mrb[0].mxu0
        %v1705 = vadd.f32 %v555, %v1704
        %v1706 = vpop.f32.mrb[0].mxu0
        %v1707 = vadd.f32 %v551, %v1706
        %v1708 = vpop.f32.mrb[0].mxu0
        %v1709 = vadd.f32 %v555, %v1708
        %1710 = vmatprep.mubr.bf16.mxu0 %v369
        %1711 = vmatmul.mubr.bf16.gmra.mrb[0].mxu0 %v368
        %v1712 = vpop.f32.mrb[0].mxu0
        %v1713 = vadd.f32 %v551, %v1712
        %v1714 = vpop.f32.mrb[0].mxu0
        %v1715 = vadd.f32 %v555, %v1714
        %v1716 = vpop.f32.mrb[0].mxu0
        %v1717 = vadd.f32 %v551, %v1716
        %v1718 = vpop.f32.mrb[0].mxu0
        %v1719 = vadd.f32 %v555, %v1718
        %1720 = vmatprep.mubr.bf16.mxu0 %v371
        %1721 = vmatmul.mubr.bf16.gmra.mrb[0].mxu0 %v370
        %v1722 = vpop.f32.mrb[0].mxu0
        %v1723 = vadd.f32 %v551, %v1722
        %v1724 = vpop.f32.mrb[0].mxu0
        %v1725 = vadd.f32 %v555, %v1724
        %v1726 = vpop.f32.mrb[0].mxu0
        %v1727 = vadd.f32 %v551, %v1726
        %v1728 = vpop.f32.mrb[0].mxu0
        %v1729 = vadd.f32 %v555, %v1728
        %1730 = vmatprep.mubr.bf16.mxu0 %v373
        %1731 = vmatmul.mubr.bf16.gmra.mrb[0].mxu0 %v372
        %v1732 = vpop.f32.mrb[0].mxu0
        %v1733 = vadd.f32 %v551, %v1732
        %v1734 = vpop.f32.mrb[0].mxu0
        %v1735 = vadd.f32 %v555, %v1734
        %v1736 = vpop.f32.mrb[0].mxu0
        %v1737 = vadd.f32 %v551, %v1736
        %v1738 = vpop.f32.mrb[0].mxu0
        %v1739 = vadd.f32 %v555, %v1738
        %1740 = vmatprep.mubr.bf16.mxu0 %v375
        %1741 = vmatmul.mubr.bf16.gmra.mrb[0].mxu0 %v374
        %v1742 = vpop.f32.mrb[0].mxu0
        %v1743 = vadd.f32 %v551, %v1742
        %v1744 = vpop.f32.mrb[0].mxu0
        %v1745 = vadd.f32 %v555, %v1744
        %v1746 = vpop.f32.mrb[0].mxu0
        %v1747 = vadd.f32 %v551, %v1746
        %v1748 = vpop.f32.mrb[0].mxu0
        %v1749 = vadd.f32 %v555, %v1748
        %1750 = vmatprep.mubr.bf16.mxu0 %v377
        %1751 = vmatmul.mubr.bf16.gmra.mrb[0].mxu0 %v376
        %v1752 = vpop.f32.mrb[0].mxu0
        %v1753 = vadd.f32 %v551, %v1752
        %v1754 = vpop.f32.mrb[0].mxu0
        %v1755 = vadd.f32 %v555, %v1754
        %v1756 = vpop.f32.mrb[0].mxu0
        %v1757 = vadd.f32 %v551, %v1756
        %v1758 = vpop.f32.mrb[0].mxu0
        %v1759 = vadd.f32 %v555, %v1758
        %1760 = vmatprep.mubr.bf16.mxu0 %v379
        %1761 = vmatmul.mubr.bf16.gmra.mrb[0].mxu0 %v378
        %v1762 = vpop.f32.mrb[0].mxu0
        %v1763 = vadd.f32 %v551, %v1762
        %v1764 = vpop.f32.mrb[0].mxu0
        %v1765 = vadd.f32 %v555, %v1764
        %v1766 = vpop.f32.mrb[0].mxu0
        %v1767 = vadd.f32 %v551, %v1766
        %v1768 = vpop.f32.mrb[0].mxu0
        %v1769 = vadd.f32 %v555, %v1768
        %1770 = vmatprep.mubr.bf16.mxu0 %v381
        %1771 = vmatmul.mubr.bf16.gmra.mrb[0].mxu0 %v380
        %v1772 = vpop.f32.mrb[0].mxu0
        %v1773 = vadd.f32 %v551, %v1772
        %v1774 = vpop.f32.mrb[0].mxu0
        %v1775 = vadd.f32 %v555, %v1774
        %v1776 = vpop.f32.mrb[0].mxu0
        %v1777 = vadd.f32 %v551, %v1776
        %v1778 = vpop.f32.mrb[0].mxu0
        %v1779 = vadd.f32 %v555, %v1778
        %1780 = vmatprep.mubr.bf16.mxu0 %v383
        %1781 = vmatmul.mubr.bf16.gmra.mrb[0].mxu0 %v382
        %v1782 = vpop.f32.mrb[0].mxu0
        %v1783 = vadd.f32 %v551, %v1782
        %v1784 = vpop.f32.mrb[0].mxu0
        %v1785 = vadd.f32 %v555, %v1784
        %v1786 = vpop.f32.mrb[0].mxu0
        %v1787 = vadd.f32 %v551, %v1786
        %v1788 = vpop.f32.mrb[0].mxu0
        %v1789 = vadd.f32 %v555, %v1788
        %1790 = vmatprep.mubr.bf16.mxu0 %v385
        %1791 = vmatmul.mubr.bf16.gmra.mrb[0].mxu0 %v384
        %v1792 = vpop.f32.mrb[0].mxu0
        %v1793 = vadd.f32 %v551, %v1792
        %v1794 = vpop.f32.mrb[0].mxu0
        %v1795 = vadd.f32 %v555, %v1794
        %v1796 = vpop.f32.mrb[0].mxu0
        %v1797 = vadd.f32 %v551, %v1796
        %v1798 = vpop.f32.mrb[0].mxu0
        %v1799 = vadd.f32 %v555, %v1798
        %1800 = vmatprep.mubr.bf16.mxu0 %v387
        %1801 = vmatmul.mubr.bf16.gmra.mrb[0].mxu0 %v386
        %v1802 = vpop.f32.mrb[0].mxu0
        %v1803 = vadd.f32 %v551, %v1802
        %v1804 = vpop.f32.mrb[0].mxu0
        %v1805 = vadd.f32 %v555, %v1804
        %v1806 = vpop.f32.mrb[0].mxu0
        %v1807 = vadd.f32 %v551, %v1806
        %v1808 = vpop.f32.mrb[0].mxu0
        %v1809 = vadd.f32 %v555, %v1808
        %1810 = vmatprep.mubr.bf16.mxu0 %v389
        %1811 = vmatmul.mubr.bf16.gmra.mrb[0].mxu0 %v388
        %v1812 = vpop.f32.mrb[0].mxu0
        %v1813 = vadd.f32 %v551, %v1812
        %v1814 = vpop.f32.mrb[0].mxu0
        %v1815 = vadd.f32 %v555, %v1814
        %v1816 = vpop.f32.mrb[0].mxu0
        %v1817 = vadd.f32 %v551, %v1816
        %v1818 = vpop.f32.mrb[0].mxu0
        %v1819 = vadd.f32 %v555, %v1818
        %1820 = vmatprep.mubr.bf16.mxu0 %v391
        %1821 = vmatmul.mubr.bf16.gmra.mrb[0].mxu0 %v390
        %v1822 = vpop.f32.mrb[0].mxu0
        %v1823 = vadd.f32 %v551, %v1822
        %v1824 = vpop.f32.mrb[0].mxu0
        %v1825 = vadd.f32 %v555, %v1824
        %v1826 = vpop.f32.mrb[0].mxu0
        %v1827 = vadd.f32 %v551, %v1826
        %v1828 = vpop.f32.mrb[0].mxu0
        %v1829 = vadd.f32 %v555, %v1828
        %1830 = vmatprep.mubr.bf16.mxu0 %v393
        %1831 = vmatmul.mubr.bf16.gmra.mrb[0].mxu0 %v392
        %v1832 = vpop.f32.mrb[0].mxu0
        %v1833 = vadd.f32 %v551, %v1832
        %v1834 = vpop.f32.mrb[0].mxu0
        %v1835 = vadd.f32 %v555, %v1834
        %v1836 = vpop.f32.mrb[0].mxu0
        %v1837 = vadd.f32 %v551, %v1836
        %v1838 = vpop.f32.mrb[0].mxu0
        %v1839 = vadd.f32 %v555, %v1838
        %1840 = vmatprep.mubr.bf16.mxu0 %v395
        %1841 = vmatmul.mubr.bf16.gmra.mrb[0].mxu0 %v394
        %v1842 = vpop.f32.mrb[0].mxu0
        %v1843 = vadd.f32 %v551, %v1842
        %v1844 = vpop.f32.mrb[0].mxu0
        %v1845 = vadd.f32 %v555, %v1844
        %v1846 = vpop.f32.mrb[0].mxu0
        %v1847 = vadd.f32 %v551, %v1846
        %v1848 = vpop.f32.mrb[0].mxu0
        %v1849 = vadd.f32 %v555, %v1848
        %1850 = vmatprep.mubr.bf16.mxu0 %v397
        %1851 = vmatmul.mubr.bf16.gmra.mrb[0].mxu0 %v396
        %v1852 = vpop.f32.mrb[0].mxu0
        %v1853 = vadd.f32 %v551, %v1852
        %v1854 = vpop.f32.mrb[0].mxu0
        %v1855 = vadd.f32 %v555, %v1854
        %v1856 = vpop.f32.mrb[0].mxu0
        %v1857 = vadd.f32 %v551, %v1856
        %v1858 = vpop.f32.mrb[0].mxu0
        %v1859 = vadd.f32 %v555, %v1858
        %1860 = vmatprep.mubr.bf16.mxu0 %v399
        %1861 = vmatmul.mubr.bf16.gmra.mrb[0].mxu0 %v398
        %v1862 = vpop.f32.mrb[0].mxu0
        %v1863 = vadd.f32 %v551, %v1862
        %v1864 = vpop.f32.mrb[0].mxu0
        %v1865 = vadd.f32 %v555, %v1864
        %v1866 = vpop.f32.mrb[0].mxu0
        %v1867 = vadd.f32 %v551, %v1866
        %v1868 = vpop.f32.mrb[0].mxu0
        %v1869 = vadd.f32 %v555, %v1868
        %1870 = vmatprep.mubr.bf16.mxu0 %v401
        %1871 = vmatmul.mubr.bf16.gmra.mrb[0].mxu0 %v400
        %v1872 = vpop.f32.mrb[0].mxu0
        %v1873 = vadd.f32 %v551, %v1872
        %v1874 = vpop.f32.mrb[0].mxu0
        %v1875 = vadd.f32 %v555, %v1874
        %v1876 = vpop.f32.mrb[0].mxu0
        %v1877 = vadd.f32 %v551, %v1876
        %v1878 = vpop.f32.mrb[0].mxu0
        %v1879 = vadd.f32 %v555, %v1878
        %1880 = vdwg.mxu0
        %1881 = vmatprep.subr.bf16.mxu0 %v963
        %1882 = vmatpush1.bf16.msra.mxu0 %v962
        %1883 = vmatprep.subr.bf16.mxu0 %v971
        %1884 = vmatpush1.bf16.msra.mxu0 %v970
        %1885 = vmatprep.subr.bf16.mxu0 %v979
        %1886 = vmatpush1.bf16.msra.mxu0 %v978
        %1887 = vmatprep.subr.bf16.mxu0 %v987
        %1888 = vmatpush1.bf16.msra.mxu0 %v986
        %1889 = vmatprep.subr.bf16.mxu0 %v995
        %1890 = vmatpush1.bf16.msra.mxu0 %v994
        %1891 = vmatprep.subr.bf16.mxu0 %v1003
        %1892 = vmatpush1.bf16.msra.mxu0 %v1002
        %1893 = vmatprep.subr.bf16.mxu0 %v1011
        %1894 = vmatpush1.bf16.msra.mxu0 %v1010
        %1895 = vmatprep.subr.bf16.mxu0 %v1019
        %1896 = vmatpush1.bf16.msra.mxu0 %v1018
        %1897 = vmatprep.subr.bf16.mxu0 %v1027
        %1898 = vmatpush1.bf16.msra.mxu0 %v1026
        %1899 = vmatprep.subr.bf16.mxu0 %v1035
        %1900 = vmatpush1.bf16.msra.mxu0 %v1034
        %1901 = vmatprep.subr.bf16.mxu0 %v1043
        %1902 = vmatpush1.bf16.msra.mxu0 %v1042
        %1903 = vmatprep.subr.bf16.mxu0 %v1051
        %1904 = vmatpush1.bf16.msra.mxu0 %v1050
        %1905 = vmatprep.subr.bf16.mxu0 %v1059
        %1906 = vmatpush1.bf16.msra.mxu0 %v1058
        %1907 = vmatprep.subr.bf16.mxu0 %v1067
        %1908 = vmatpush1.bf16.msra.mxu0 %v1066
        %1909 = vmatprep.subr.bf16.mxu0 %v1075
        %1910 = vmatpush1.bf16.msra.mxu0 %v1074
        %1911 = vmatprep.subr.bf16.mxu0 %v1083
        %1912 = vmatpush1.bf16.msra.mxu0 %v1082
        %1913 = vmatprep.mubr.bf16.mxu0 %v365
        %1914 = vmatmul.mubr.bf16.gmra.mrb[0].mxu0 %v364
        %v1915 = vpop.f32.mrb[0].mxu0
        %v1916 = vadd.f32 %v559, %v1915
        %v1917 = vpop.f32.mrb[0].mxu0
        %v1918 = vadd.f32 %v563, %v1917
        %v1919 = vpop.f32.mrb[0].mxu0
        %v1920 = vadd.f32 %v559, %v1919
        %v1921 = vpop.f32.mrb[0].mxu0
        %v1922 = vadd.f32 %v563, %v1921
        %1923 = vmatprep.mubr.bf16.mxu0 %v367
        %1924 = vmatmul.mubr.bf16.gmra.mrb[0].mxu0 %v366
        %v1925 = vpop.f32.mrb[0].mxu0
        %v1926 = vadd.f32 %v559, %v1925
        %v1927 = vpop.f32.mrb[0].mxu0
        %v1928 = vadd.f32 %v563, %v1927
        %v1929 = vpop.f32.mrb[0].mxu0
        %v1930 = vadd.f32 %v559, %v1929
        %v1931 = vpop.f32.mrb[0].mxu0
        %v1932 = vadd.f32 %v563, %v1931
        %1933 = vmatprep.mubr.bf16.mxu0 %v369
        %1934 = vmatmul.mubr.bf16.gmra.mrb[0].mxu0 %v368
        %v1935 = vpop.f32.mrb[0].mxu0
        %v1936 = vadd.f32 %v559, %v1935
        %v1937 = vpop.f32.mrb[0].mxu0
        %v1938 = vadd.f32 %v563, %v1937
        %v1939 = vpop.f32.mrb[0].mxu0
        %v1940 = vadd.f32 %v559, %v1939
        %v1941 = vpop.f32.mrb[0].mxu0
        %v1942 = vadd.f32 %v563, %v1941
        %1943 = vmatprep.mubr.bf16.mxu0 %v371
        %1944 = vmatmul.mubr.bf16.gmra.mrb[0].mxu0 %v370
        %v1945 = vpop.f32.mrb[0].mxu0
        %v1946 = vadd.f32 %v559, %v1945
        %v1947 = vpop.f32.mrb[0].mxu0
        %v1948 = vadd.f32 %v563, %v1947
        %v1949 = vpop.f32.mrb[0].mxu0
        %v1950 = vadd.f32 %v559, %v1949
        %v1951 = vpop.f32.mrb[0].mxu0
        %v1952 = vadd.f32 %v563, %v1951
        %1953 = vmatprep.mubr.bf16.mxu0 %v373
        %1954 = vmatmul.mubr.bf16.gmra.mrb[0].mxu0 %v372
        %v1955 = vpop.f32.mrb[0].mxu0
        %v1956 = vadd.f32 %v559, %v1955
        %v1957 = vpop.f32.mrb[0].mxu0
        %v1958 = vadd.f32 %v563, %v1957
        %v1959 = vpop.f32.mrb[0].mxu0
        %v1960 = vadd.f32 %v559, %v1959
        %v1961 = vpop.f32.mrb[0].mxu0
        %v1962 = vadd.f32 %v563, %v1961
        %1963 = vmatprep.mubr.bf16.mxu0 %v375
        %1964 = vmatmul.mubr.bf16.gmra.mrb[0].mxu0 %v374
        %v1965 = vpop.f32.mrb[0].mxu0
        %v1966 = vadd.f32 %v559, %v1965
        %v1967 = vpop.f32.mrb[0].mxu0
        %v1968 = vadd.f32 %v563, %v1967
        %v1969 = vpop.f32.mrb[0].mxu0
        %v1970 = vadd.f32 %v559, %v1969
        %v1971 = vpop.f32.mrb[0].mxu0
        %v1972 = vadd.f32 %v563, %v1971
        %1973 = vmatprep.mubr.bf16.mxu0 %v377
        %1974 = vmatmul.mubr.bf16.gmra.mrb[0].mxu0 %v376
        %v1975 = vpop.f32.mrb[0].mxu0
        %v1976 = vadd.f32 %v559, %v1975
        %v1977 = vpop.f32.mrb[0].mxu0
        %v1978 = vadd.f32 %v563, %v1977
        %v1979 = vpop.f32.mrb[0].mxu0
        %v1980 = vadd.f32 %v559, %v1979
        %v1981 = vpop.f32.mrb[0].mxu0
        %v1982 = vadd.f32 %v563, %v1981
        %1983 = vmatprep.mubr.bf16.mxu0 %v379
        %1984 = vmatmul.mubr.bf16.gmra.mrb[0].mxu0 %v378
        %v1985 = vpop.f32.mrb[0].mxu0
        %v1986 = vadd.f32 %v559, %v1985
        %v1987 = vpop.f32.mrb[0].mxu0
        %v1988 = vadd.f32 %v563, %v1987
        %v1989 = vpop.f32.mrb[0].mxu0
        %v1990 = vadd.f32 %v559, %v1989
        %v1991 = vpop.f32.mrb[0].mxu0
        %v1992 = vadd.f32 %v563, %v1991
        %1993 = vmatprep.mubr.bf16.mxu0 %v381
        %1994 = vmatmul.mubr.bf16.gmra.mrb[0].mxu0 %v380
        %v1995 = vpop.f32.mrb[0].mxu0
        %v1996 = vadd.f32 %v559, %v1995
        %v1997 = vpop.f32.mrb[0].mxu0
        %v1998 = vadd.f32 %v563, %v1997
        %v1999 = vpop.f32.mrb[0].mxu0
        %v2000 = vadd.f32 %v559, %v1999
        %v2001 = vpop.f32.mrb[0].mxu0
        %v2002 = vadd.f32 %v563, %v2001
        %2003 = vmatprep.mubr.bf16.mxu0 %v383
        %2004 = vmatmul.mubr.bf16.gmra.mrb[0].mxu0 %v382
        %v2005 = vpop.f32.mrb[0].mxu0
        %v2006 = vadd.f32 %v559, %v2005
        %v2007 = vpop.f32.mrb[0].mxu0
        %v2008 = vadd.f32 %v563, %v2007
        %v2009 = vpop.f32.mrb[0].mxu0
        %v2010 = vadd.f32 %v559, %v2009
        %v2011 = vpop.f32.mrb[0].mxu0
        %v2012 = vadd.f32 %v563, %v2011
        %2013 = vmatprep.mubr.bf16.mxu0 %v385
        %2014 = vmatmul.mubr.bf16.gmra.mrb[0].mxu0 %v384
        %v2015 = vpop.f32.mrb[0].mxu0
        %v2016 = vadd.f32 %v559, %v2015
        %v2017 = vpop.f32.mrb[0].mxu0
        %v2018 = vadd.f32 %v563, %v2017
        %v2019 = vpop.f32.mrb[0].mxu0
        %v2020 = vadd.f32 %v559, %v2019
        %v2021 = vpop.f32.mrb[0].mxu0
        %v2022 = vadd.f32 %v563, %v2021
        %2023 = vmatprep.mubr.bf16.mxu0 %v387
        %2024 = vmatmul.mubr.bf16.gmra.mrb[0].mxu0 %v386
        %v2025 = vpop.f32.mrb[0].mxu0
        %v2026 = vadd.f32 %v559, %v2025
        %v2027 = vpop.f32.mrb[0].mxu0
        %v2028 = vadd.f32 %v563, %v2027
        %v2029 = vpop.f32.mrb[0].mxu0
        %v2030 = vadd.f32 %v559, %v2029
        %v2031 = vpop.f32.mrb[0].mxu0
        %v2032 = vadd.f32 %v563, %v2031
        %2033 = vmatprep.mubr.bf16.mxu0 %v389
        %2034 = vmatmul.mubr.bf16.gmra.mrb[0].mxu0 %v388
        %v2035 = vpop.f32.mrb[0].mxu0
        %v2036 = vadd.f32 %v559, %v2035
        %v2037 = vpop.f32.mrb[0].mxu0
        %v2038 = vadd.f32 %v563, %v2037
        %v2039 = vpop.f32.mrb[0].mxu0
        %v2040 = vadd.f32 %v559, %v2039
        %v2041 = vpop.f32.mrb[0].mxu0
        %v2042 = vadd.f32 %v563, %v2041
        %2043 = vmatprep.mubr.bf16.mxu0 %v391
        %2044 = vmatmul.mubr.bf16.gmra.mrb[0].mxu0 %v390
        %v2045 = vpop.f32.mrb[0].mxu0
        %v2046 = vadd.f32 %v559, %v2045
        %v2047 = vpop.f32.mrb[0].mxu0
        %v2048 = vadd.f32 %v563, %v2047
        %v2049 = vpop.f32.mrb[0].mxu0
        %v2050 = vadd.f32 %v559, %v2049
        %v2051 = vpop.f32.mrb[0].mxu0
        %v2052 = vadd.f32 %v563, %v2051
        %2053 = vmatprep.mubr.bf16.mxu0 %v393
        %2054 = vmatmul.mubr.bf16.gmra.mrb[0].mxu0 %v392
        %v2055 = vpop.f32.mrb[0].mxu0
        %v2056 = vadd.f32 %v559, %v2055
        %v2057 = vpop.f32.mrb[0].mxu0
        %v2058 = vadd.f32 %v563, %v2057
        %v2059 = vpop.f32.mrb[0].mxu0
        %v2060 = vadd.f32 %v559, %v2059
        %v2061 = vpop.f32.mrb[0].mxu0
        %v2062 = vadd.f32 %v563, %v2061
        %2063 = vmatprep.mubr.bf16.mxu0 %v395
        %2064 = vmatmul.mubr.bf16.gmra.mrb[0].mxu0 %v394
        %v2065 = vpop.f32.mrb[0].mxu0
        %v2066 = vadd.f32 %v559, %v2065
        %v2067 = vpop.f32.mrb[0].mxu0
        %v2068 = vadd.f32 %v563, %v2067
        %v2069 = vpop.f32.mrb[0].mxu0
        %v2070 = vadd.f32 %v559, %v2069
        %v2071 = vpop.f32.mrb[0].mxu0
        %v2072 = vadd.f32 %v563, %v2071
        %2073 = vmatprep.mubr.bf16.mxu0 %v397
        %2074 = vmatmul.mubr.bf16.gmra.mrb[0].mxu0 %v396
        %v2075 = vpop.f32.mrb[0].mxu0
        %v2076 = vadd.f32 %v559, %v2075
        %v2077 = vpop.f32.mrb[0].mxu0
        %v2078 = vadd.f32 %v563, %v2077
        %v2079 = vpop.f32.mrb[0].mxu0
        %v2080 = vadd.f32 %v559, %v2079
        %v2081 = vpop.f32.mrb[0].mxu0
        %v2082 = vadd.f32 %v563, %v2081
        %2083 = vmatprep.mubr.bf16.mxu0 %v399
        %2084 = vmatmul.mubr.bf16.gmra.mrb[0].mxu0 %v398
        %v2085 = vpop.f32.mrb[0].mxu0
        %v2086 = vadd.f32 %v559, %v2085
        %v2087 = vpop.f32.mrb[0].mxu0
        %v2088 = vadd.f32 %v563, %v2087
        %v2089 = vpop.f32.mrb[0].mxu0
        %v2090 = vadd.f32 %v559, %v2089
        %v2091 = vpop.f32.mrb[0].mxu0
        %v2092 = vadd.f32 %v563, %v2091
        %2093 = vmatprep.mubr.bf16.mxu0 %v401
        %2094 = vmatmul.mubr.bf16.gmra.mrb[0].mxu0 %v400
        %v2095 = vpop.f32.mrb[0].mxu0
        %v2096 = vadd.f32 %v559, %v2095
        %v2097 = vpop.f32.mrb[0].mxu0
        %v2098 = vadd.f32 %v563, %v2097
        %v2099 = vpop.f32.mrb[0].mxu0
        %v2100 = vadd.f32 %v559, %v2099
        %v2101 = vpop.f32.mrb[0].mxu0
        %v2102 = vadd.f32 %v563, %v2101
        %2103 = vdwg.mxu0
        %v2104 = vmax.f32 %v1247, 0.0
        %v2105 = vmax.f32 %v1249, 0.0
        %v2106 = vmax.f32 %v1470, 0.0
        %v2107 = vmax.f32 %v1472, 0.0
        %v2108 = vmax.f32 %v1693, 0.0
        %v2109 = vmax.f32 %v1695, 0.0
        %v2110 = vmax.f32 %v1916, 0.0
        %v2111 = vmax.f32 %v1918, 0.0
        %v2112 = vmax.f32 %v1251, 0.0
        %v2113 = vmax.f32 %v1253, 0.0
        %v2114 = vmax.f32 %v1474, 0.0
        %v2115 = vmax.f32 %v1476, 0.0
        %v2116 = vmax.f32 %v1697, 0.0
        %v2117 = vmax.f32 %v1699, 0.0
        %v2118 = vmax.f32 %v1920, 0.0
        %v2119 = vmax.f32 %v1922, 0.0
        %v2120 = vmax.f32 %v1257, 0.0
        %v2121 = vmax.f32 %v1259, 0.0
        %v2122 = vmax.f32 %v1480, 0.0
        %v2123 = vmax.f32 %v1482, 0.0
        %v2124 = vmax.f32 %v1703, 0.0
        %v2125 = vmax.f32 %v1705, 0.0
        %v2126 = vmax.f32 %v1926, 0.0
        %v2127 = vmax.f32 %v1928, 0.0
        %v2128 = vmax.f32 %v1261, 0.0
        %v2129 = vmax.f32 %v1263, 0.0
        %v2130 = vmax.f32 %v1484, 0.0
        %v2131 = vmax.f32 %v1486, 0.0
        %v2132 = vmax.f32 %v1707, 0.0
        %v2133 = vmax.f32 %v1709, 0.0
        %v2134 = vmax.f32 %v1930, 0.0
        %v2135 = vmax.f32 %v1932, 0.0
        %v2136 = vmax.f32 %v1267, 0.0
        %v2137 = vmax.f32 %v1269, 0.0
        %v2138 = vmax.f32 %v1490, 0.0
        %v2139 = vmax.f32 %v1492, 0.0
        %v2140 = vmax.f32 %v1713, 0.0
        %v2141 = vmax.f32 %v1715, 0.0
        %v2142 = vmax.f32 %v1936, 0.0
        %v2143 = vmax.f32 %v1938, 0.0
        %v2144 = vmax.f32 %v1271, 0.0
        %v2145 = vmax.f32 %v1273, 0.0
        %v2146 = vmax.f32 %v1494, 0.0
        %v2147 = vmax.f32 %v1496, 0.0
        %v2148 = vmax.f32 %v1717, 0.0
        %v2149 = vmax.f32 %v1719, 0.0
        %v2150 = vmax.f32 %v1940, 0.0
        %v2151 = vmax.f32 %v1942, 0.0
        %v2152 = vmax.f32 %v1277, 0.0
        %v2153 = vmax.f32 %v1279, 0.0
        %v2154 = vmax.f32 %v1500, 0.0
        %v2155 = vmax.f32 %v1502, 0.0
        %v2156 = vmax.f32 %v1723, 0.0
        %v2157 = vmax.f32 %v1725, 0.0
        %v2158 = vmax.f32 %v1946, 0.0
        %v2159 = vmax.f32 %v1948, 0.0
        %v2160 = vmax.f32 %v1281, 0.0
        %v2161 = vmax.f32 %v1283, 0.0
        %v2162 = vmax.f32 %v1504, 0.0
        %v2163 = vmax.f32 %v1506, 0.0
        %v2164 = vmax.f32 %v1727, 0.0
        %v2165 = vmax.f32 %v1729, 0.0
        %v2166 = vmax.f32 %v1950, 0.0
        %v2167 = vmax.f32 %v1952, 0.0
        %v2168 = vmax.f32 %v1287, 0.0
        %v2169 = vmax.f32 %v1289, 0.0
        %v2170 = vmax.f32 %v1510, 0.0
        %v2171 = vmax.f32 %v1512, 0.0
        %v2172 = vmax.f32 %v1733, 0.0
        %v2173 = vmax.f32 %v1735, 0.0
        %v2174 = vmax.f32 %v1956, 0.0
        %v2175 = vmax.f32 %v1958, 0.0
        %v2176 = vmax.f32 %v1291, 0.0
        %v2177 = vmax.f32 %v1293, 0.0
        %v2178 = vmax.f32 %v1514, 0.0
        %v2179 = vmax.f32 %v1516, 0.0
        %v2180 = vmax.f32 %v1737, 0.0
        %v2181 = vmax.f32 %v1739, 0.0
        %v2182 = vmax.f32 %v1960, 0.0
        %v2183 = vmax.f32 %v1962, 0.0
        %v2184 = vmax.f32 %v1297, 0.0
        %v2185 = vmax.f32 %v1299, 0.0
        %v2186 = vmax.f32 %v1520, 0.0
        %v2187 = vmax.f32 %v1522, 0.0
        %v2188 = vmax.f32 %v1743, 0.0
        %v2189 = vmax.f32 %v1745, 0.0
        %v2190 = vmax.f32 %v1966, 0.0
        %v2191 = vmax.f32 %v1968, 0.0
        %v2192 = vmax.f32 %v1301, 0.0
        %v2193 = vmax.f32 %v1303, 0.0
        %v2194 = vmax.f32 %v1524, 0.0
        %v2195 = vmax.f32 %v1526, 0.0
        %v2196 = vmax.f32 %v1747, 0.0
        %v2197 = vmax.f32 %v1749, 0.0
        %v2198 = vmax.f32 %v1970, 0.0
        %v2199 = vmax.f32 %v1972, 0.0
        %v2200 = vmax.f32 %v1307, 0.0
        %v2201 = vmax.f32 %v1309, 0.0
        %v2202 = vmax.f32 %v1530, 0.0
        %v2203 = vmax.f32 %v1532, 0.0
        %v2204 = vmax.f32 %v1753, 0.0
        %v2205 = vmax.f32 %v1755, 0.0
        %v2206 = vmax.f32 %v1976, 0.0
        %v2207 = vmax.f32 %v1978, 0.0
        %v2208 = vmax.f32 %v1311, 0.0
        %v2209 = vmax.f32 %v1313, 0.0
        %v2210 = vmax.f32 %v1534, 0.0
        %v2211 = vmax.f32 %v1536, 0.0
        %v2212 = vmax.f32 %v1757, 0.0
        %v2213 = vmax.f32 %v1759, 0.0
        %v2214 = vmax.f32 %v1980, 0.0
        %v2215 = vmax.f32 %v1982, 0.0
        %v2216 = vmax.f32 %v1317, 0.0
        %v2217 = vmax.f32 %v1319, 0.0
        %v2218 = vmax.f32 %v1540, 0.0
        %v2219 = vmax.f32 %v1542, 0.0
        %v2220 = vmax.f32 %v1763, 0.0
        %v2221 = vmax.f32 %v1765, 0.0
        %v2222 = vmax.f32 %v1986, 0.0
        %v2223 = vmax.f32 %v1988, 0.0
        %v2224 = vmax.f32 %v1321, 0.0
        %v2225 = vmax.f32 %v1323, 0.0
        %v2226 = vmax.f32 %v1544, 0.0
        %v2227 = vmax.f32 %v1546, 0.0
        %v2228 = vmax.f32 %v1767, 0.0
        %v2229 = vmax.f32 %v1769, 0.0
        %v2230 = vmax.f32 %v1990, 0.0
        %v2231 = vmax.f32 %v1992, 0.0
        %v2232 = vmax.f32 %v1327, 0.0
        %v2233 = vmax.f32 %v1329, 0.0
        %v2234 = vmax.f32 %v1550, 0.0
        %v2235 = vmax.f32 %v1552, 0.0
        %v2236 = vmax.f32 %v1773, 0.0
        %v2237 = vmax.f32 %v1775, 0.0
        %v2238 = vmax.f32 %v1996, 0.0
        %v2239 = vmax.f32 %v1998, 0.0
        %v2240 = vmax.f32 %v1331, 0.0
        %v2241 = vmax.f32 %v1333, 0.0
        %v2242 = vmax.f32 %v1554, 0.0
        %v2243 = vmax.f32 %v1556, 0.0
        %v2244 = vmax.f32 %v1777, 0.0
        %v2245 = vmax.f32 %v1779, 0.0
        %v2246 = vmax.f32 %v2000, 0.0
        %v2247 = vmax.f32 %v2002, 0.0
        %v2248 = vmax.f32 %v1337, 0.0
        %v2249 = vmax.f32 %v1339, 0.0
        %v2250 = vmax.f32 %v1560, 0.0
        %v2251 = vmax.f32 %v1562, 0.0
        %v2252 = vmax.f32 %v1783, 0.0
        %v2253 = vmax.f32 %v1785, 0.0
        %v2254 = vmax.f32 %v2006, 0.0
        %v2255 = vmax.f32 %v2008, 0.0
        %v2256 = vmax.f32 %v1341, 0.0
        %v2257 = vmax.f32 %v1343, 0.0
        %v2258 = vmax.f32 %v1564, 0.0
        %v2259 = vmax.f32 %v1566, 0.0
        %v2260 = vmax.f32 %v1787, 0.0
        %v2261 = vmax.f32 %v1789, 0.0
        %v2262 = vmax.f32 %v2010, 0.0
        %v2263 = vmax.f32 %v2012, 0.0
        %v2264 = vmax.f32 %v1347, 0.0
        %v2265 = vmax.f32 %v1349, 0.0
        %v2266 = vmax.f32 %v1570, 0.0
        %v2267 = vmax.f32 %v1572, 0.0
        %v2268 = vmax.f32 %v1793, 0.0
        %v2269 = vmax.f32 %v1795, 0.0
        %v2270 = vmax.f32 %v2016, 0.0
        %v2271 = vmax.f32 %v2018, 0.0
        %v2272 = vmax.f32 %v1351, 0.0
        %v2273 = vmax.f32 %v1353, 0.0
        %v2274 = vmax.f32 %v1574, 0.0
        %v2275 = vmax.f32 %v1576, 0.0
        %v2276 = vmax.f32 %v1797, 0.0
        %v2277 = vmax.f32 %v1799, 0.0
        %v2278 = vmax.f32 %v2020, 0.0
        %v2279 = vmax.f32 %v2022, 0.0
        %v2280 = vmax.f32 %v1357, 0.0
        %v2281 = vmax.f32 %v1359, 0.0
        %v2282 = vmax.f32 %v1580, 0.0
        %v2283 = vmax.f32 %v1582, 0.0
        %v2284 = vmax.f32 %v1803, 0.0
        %v2285 = vmax.f32 %v1805, 0.0
        %v2286 = vmax.f32 %v2026, 0.0
        %v2287 = vmax.f32 %v2028, 0.0
        %v2288 = vmax.f32 %v1361, 0.0
        %v2289 = vmax.f32 %v1363, 0.0
        %v2290 = vmax.f32 %v1584, 0.0
        %v2291 = vmax.f32 %v1586, 0.0
        %v2292 = vmax.f32 %v1807, 0.0
        %v2293 = vmax.f32 %v1809, 0.0
        %v2294 = vmax.f32 %v2030, 0.0
        %v2295 = vmax.f32 %v2032, 0.0
        %v2296 = vmax.f32 %v1367, 0.0
        %v2297 = vmax.f32 %v1369, 0.0
        %v2298 = vmax.f32 %v1590, 0.0
        %v2299 = vmax.f32 %v1592, 0.0
        %v2300 = vmax.f32 %v1813, 0.0
        %v2301 = vmax.f32 %v1815, 0.0
        %v2302 = vmax.f32 %v2036, 0.0
        %v2303 = vmax.f32 %v2038, 0.0
        %v2304 = vmax.f32 %v1371, 0.0
        %v2305 = vmax.f32 %v1373, 0.0
        %v2306 = vmax.f32 %v1594, 0.0
        %v2307 = vmax.f32 %v1596, 0.0
        %v2308 = vmax.f32 %v1817, 0.0
        %v2309 = vmax.f32 %v1819, 0.0
        %v2310 = vmax.f32 %v2040, 0.0
        %v2311 = vmax.f32 %v2042, 0.0
        %v2312 = vmax.f32 %v1377, 0.0
        %v2313 = vmax.f32 %v1379, 0.0
        %v2314 = vmax.f32 %v1600, 0.0
        %v2315 = vmax.f32 %v1602, 0.0
        %v2316 = vmax.f32 %v1823, 0.0
        %v2317 = vmax.f32 %v1825, 0.0
        %v2318 = vmax.f32 %v2046, 0.0
        %v2319 = vmax.f32 %v2048, 0.0
        %v2320 = vmax.f32 %v1381, 0.0
        %v2321 = vmax.f32 %v1383, 0.0
        %v2322 = vmax.f32 %v1604, 0.0
        %v2323 = vmax.f32 %v1606, 0.0
        %v2324 = vmax.f32 %v1827, 0.0
        %v2325 = vmax.f32 %v1829, 0.0
        %v2326 = vmax.f32 %v2050, 0.0
        %v2327 = vmax.f32 %v2052, 0.0
        %v2328 = vmax.f32 %v1387, 0.0
        %v2329 = vmax.f32 %v1389, 0.0
        %v2330 = vmax.f32 %v1610, 0.0
        %v2331 = vmax.f32 %v1612, 0.0
        %v2332 = vmax.f32 %v1833, 0.0
        %v2333 = vmax.f32 %v1835, 0.0
        %v2334 = vmax.f32 %v2056, 0.0
        %v2335 = vmax.f32 %v2058, 0.0
        %v2336 = vmax.f32 %v1391, 0.0
        %v2337 = vmax.f32 %v1393, 0.0
        %v2338 = vmax.f32 %v1614, 0.0
        %v2339 = vmax.f32 %v1616, 0.0
        %v2340 = vmax.f32 %v1837, 0.0
        %v2341 = vmax.f32 %v1839, 0.0
        %v2342 = vmax.f32 %v2060, 0.0
        %v2343 = vmax.f32 %v2062, 0.0
        %v2344 = vmax.f32 %v1397, 0.0
        %v2345 = vmax.f32 %v1399, 0.0
        %v2346 = vmax.f32 %v1620, 0.0
        %v2347 = vmax.f32 %v1622, 0.0
        %v2348 = vmax.f32 %v1843, 0.0
        %v2349 = vmax.f32 %v1845, 0.0
        %v2350 = vmax.f32 %v2066, 0.0
        %v2351 = vmax.f32 %v2068, 0.0
        %v2352 = vmax.f32 %v1401, 0.0
        %v2353 = vmax.f32 %v1403, 0.0
        %v2354 = vmax.f32 %v1624, 0.0
        %v2355 = vmax.f32 %v1626, 0.0
        %v2356 = vmax.f32 %v1847, 0.0
        %v2357 = vmax.f32 %v1849, 0.0
        %v2358 = vmax.f32 %v2070, 0.0
        %v2359 = vmax.f32 %v2072, 0.0
        %v2360 = vmax.f32 %v1407, 0.0
        %v2361 = vmax.f32 %v1409, 0.0
        %v2362 = vmax.f32 %v1630, 0.0
        %v2363 = vmax.f32 %v1632, 0.0
        %v2364 = vmax.f32 %v1853, 0.0
        %v2365 = vmax.f32 %v1855, 0.0
        %v2366 = vmax.f32 %v2076, 0.0
        %v2367 = vmax.f32 %v2078, 0.0
        %v2368 = vmax.f32 %v1411, 0.0
        %v2369 = vmax.f32 %v1413, 0.0
        %v2370 = vmax.f32 %v1634, 0.0
        %v2371 = vmax.f32 %v1636, 0.0
        %v2372 = vmax.f32 %v1857, 0.0
        %v2373 = vmax.f32 %v1859, 0.0
        %v2374 = vmax.f32 %v2080, 0.0
        %v2375 = vmax.f32 %v2082, 0.0
        %v2376 = vmax.f32 %v1417, 0.0
        %v2377 = vmax.f32 %v1419, 0.0
        %v2378 = vmax.f32 %v1640, 0.0
        %v2379 = vmax.f32 %v1642, 0.0
        %v2380 = vmax.f32 %v1863, 0.0
        %v2381 = vmax.f32 %v1865, 0.0
        %v2382 = vmax.f32 %v2086, 0.0
        %v2383 = vmax.f32 %v2088, 0.0
        %v2384 = vmax.f32 %v1421, 0.0
        %v2385 = vmax.f32 %v1423, 0.0
        %v2386 = vmax.f32 %v1644, 0.0
        %v2387 = vmax.f32 %v1646, 0.0
        %v2388 = vmax.f32 %v1867, 0.0
        %v2389 = vmax.f32 %v1869, 0.0
        %v2390 = vmax.f32 %v2090, 0.0
        %v2391 = vmax.f32 %v2092, 0.0
        %v2392 = vmax.f32 %v1427, 0.0
        %v2393 = vmax.f32 %v1429, 0.0
        %v2394 = vmax.f32 %v1650, 0.0
        %v2395 = vmax.f32 %v1652, 0.0
        %v2396 = vmax.f32 %v1873, 0.0
        %v2397 = vmax.f32 %v1875, 0.0
        %v2398 = vmax.f32 %v2096, 0.0
        %v2399 = vmax.f32 %v2098, 0.0
        %v2400 = vmax.f32 %v1431, 0.0
        %v2401 = vmax.f32 %v1433, 0.0
        %v2402 = vmax.f32 %v1654, 0.0
        %v2403 = vmax.f32 %v1656, 0.0
        %v2404 = vmax.f32 %v1877, 0.0
        %v2405 = vmax.f32 %v1879, 0.0
        %v2406 = vmax.f32 %v2100, 0.0
        %v2407 = vmax.f32 %v2102, 0.0
        %v2408 = vpack.c.bf16 %v2112, %v2104
        %v2409 = vpack.c.bf16 %v2113, %v2105
        %v2410 = vpack.c.bf16 %v2114, %v2106
        %v2411 = vpack.c.bf16 %v2115, %v2107
        %v2412 = vpack.c.bf16 %v2116, %v2108
        %v2413 = vpack.c.bf16 %v2117, %v2109
        %v2414 = vpack.c.bf16 %v2118, %v2110
        %v2415 = vpack.c.bf16 %v2119, %v2111
        %v2416 = vpack.c.bf16 %v2128, %v2120
        %v2417 = vpack.c.bf16 %v2129, %v2121
        %v2418 = vpack.c.bf16 %v2130, %v2122
        %v2419 = vpack.c.bf16 %v2131, %v2123
        %v2420 = vpack.c.bf16 %v2132, %v2124
        %v2421 = vpack.c.bf16 %v2133, %v2125
        %v2422 = vpack.c.bf16 %v2134, %v2126
        %v2423 = vpack.c.bf16 %v2135, %v2127
        %v2424 = vpack.c.bf16 %v2144, %v2136
        %v2425 = vpack.c.bf16 %v2145, %v2137
        %v2426 = vpack.c.bf16 %v2146, %v2138
        %v2427 = vpack.c.bf16 %v2147, %v2139
        %v2428 = vpack.c.bf16 %v2148, %v2140
        %v2429 = vpack.c.bf16 %v2149, %v2141
        %v2430 = vpack.c.bf16 %v2150, %v2142
        %v2431 = vpack.c.bf16 %v2151, %v2143
        %v2432 = vpack.c.bf16 %v2160, %v2152
        %v2433 = vpack.c.bf16 %v2161, %v2153
        %v2434 = vpack.c.bf16 %v2162, %v2154
        %v2435 = vpack.c.bf16 %v2163, %v2155
        %v2436 = vpack.c.bf16 %v2164, %v2156
        %v2437 = vpack.c.bf16 %v2165, %v2157
        %v2438 = vpack.c.bf16 %v2166, %v2158
        %v2439 = vpack.c.bf16 %v2167, %v2159
        %v2440 = vpack.c.bf16 %v2176, %v2168
        %v2441 = vpack.c.bf16 %v2177, %v2169
        %v2442 = vpack.c.bf16 %v2178, %v2170
        %v2443 = vpack.c.bf16 %v2179, %v2171
        %v2444 = vpack.c.bf16 %v2180, %v2172
        %v2445 = vpack.c.bf16 %v2181, %v2173
        %v2446 = vpack.c.bf16 %v2182, %v2174
        %v2447 = vpack.c.bf16 %v2183, %v2175
        %v2448 = vpack.c.bf16 %v2192, %v2184
        %v2449 = vpack.c.bf16 %v2193, %v2185
        %v2450 = vpack.c.bf16 %v2194, %v2186
        %v2451 = vpack.c.bf16 %v2195, %v2187
        %v2452 = vpack.c.bf16 %v2196, %v2188
        %v2453 = vpack.c.bf16 %v2197, %v2189
        %v2454 = vpack.c.bf16 %v2198, %v2190
        %v2455 = vpack.c.bf16 %v2199, %v2191
        %v2456 = vpack.c.bf16 %v2208, %v2200
        %v2457 = vpack.c.bf16 %v2209, %v2201
        %v2458 = vpack.c.bf16 %v2210, %v2202
        %v2459 = vpack.c.bf16 %v2211, %v2203
        %v2460 = vpack.c.bf16 %v2212, %v2204
        %v2461 = vpack.c.bf16 %v2213, %v2205
        %v2462 = vpack.c.bf16 %v2214, %v2206
        %v2463 = vpack.c.bf16 %v2215, %v2207
        %v2464 = vpack.c.bf16 %v2224, %v2216
        %v2465 = vpack.c.bf16 %v2225, %v2217
        %v2466 = vpack.c.bf16 %v2226, %v2218
        %v2467 = vpack.c.bf16 %v2227, %v2219
        %v2468 = vpack.c.bf16 %v2228, %v2220
        %v2469 = vpack.c.bf16 %v2229, %v2221
        %v2470 = vpack.c.bf16 %v2230, %v2222
        %v2471 = vpack.c.bf16 %v2231, %v2223
        %v2472 = vpack.c.bf16 %v2240, %v2232
        %v2473 = vpack.c.bf16 %v2241, %v2233
        %v2474 = vpack.c.bf16 %v2242, %v2234
        %v2475 = vpack.c.bf16 %v2243, %v2235
        %v2476 = vpack.c.bf16 %v2244, %v2236
        %v2477 = vpack.c.bf16 %v2245, %v2237
        %v2478 = vpack.c.bf16 %v2246, %v2238
        %v2479 = vpack.c.bf16 %v2247, %v2239
        %v2480 = vpack.c.bf16 %v2256, %v2248
        %v2481 = vpack.c.bf16 %v2257, %v2249
        %v2482 = vpack.c.bf16 %v2258, %v2250
        %v2483 = vpack.c.bf16 %v2259, %v2251
        %v2484 = vpack.c.bf16 %v2260, %v2252
        %v2485 = vpack.c.bf16 %v2261, %v2253
        %v2486 = vpack.c.bf16 %v2262, %v2254
        %v2487 = vpack.c.bf16 %v2263, %v2255
        %v2488 = vpack.c.bf16 %v2272, %v2264
        %v2489 = vpack.c.bf16 %v2273, %v2265
        %v2490 = vpack.c.bf16 %v2274, %v2266
        %v2491 = vpack.c.bf16 %v2275, %v2267
        %v2492 = vpack.c.bf16 %v2276, %v2268
        %v2493 = vpack.c.bf16 %v2277, %v2269
        %v2494 = vpack.c.bf16 %v2278, %v2270
        %v2495 = vpack.c.bf16 %v2279, %v2271
        %v2496 = vpack.c.bf16 %v2288, %v2280
        %v2497 = vpack.c.bf16 %v2289, %v2281
        %v2498 = vpack.c.bf16 %v2290, %v2282
        %v2499 = vpack.c.bf16 %v2291, %v2283
        %v2500 = vpack.c.bf16 %v2292, %v2284
        %v2501 = vpack.c.bf16 %v2293, %v2285
        %v2502 = vpack.c.bf16 %v2294, %v2286
        %v2503 = vpack.c.bf16 %v2295, %v2287
        %v2504 = vpack.c.bf16 %v2304, %v2296
        %v2505 = vpack.c.bf16 %v2305, %v2297
        %v2506 = vpack.c.bf16 %v2306, %v2298
        %v2507 = vpack.c.bf16 %v2307, %v2299
        %v2508 = vpack.c.bf16 %v2308, %v2300
        %v2509 = vpack.c.bf16 %v2309, %v2301
        %v2510 = vpack.c.bf16 %v2310, %v2302
        %v2511 = vpack.c.bf16 %v2311, %v2303
        %v2512 = vpack.c.bf16 %v2320, %v2312
        %v2513 = vpack.c.bf16 %v2321, %v2313
        %v2514 = vpack.c.bf16 %v2322, %v2314
        %v2515 = vpack.c.bf16 %v2323, %v2315
        %v2516 = vpack.c.bf16 %v2324, %v2316
        %v2517 = vpack.c.bf16 %v2325, %v2317
        %v2518 = vpack.c.bf16 %v2326, %v2318
        %v2519 = vpack.c.bf16 %v2327, %v2319
        %v2520 = vpack.c.bf16 %v2336, %v2328
        %v2521 = vpack.c.bf16 %v2337, %v2329
        %v2522 = vpack.c.bf16 %v2338, %v2330
        %v2523 = vpack.c.bf16 %v2339, %v2331
        %v2524 = vpack.c.bf16 %v2340, %v2332
        %v2525 = vpack.c.bf16 %v2341, %v2333
        %v2526 = vpack.c.bf16 %v2342, %v2334
        %v2527 = vpack.c.bf16 %v2343, %v2335
        %v2528 = vpack.c.bf16 %v2352, %v2344
        %v2529 = vpack.c.bf16 %v2353, %v2345
        %v2530 = vpack.c.bf16 %v2354, %v2346
        %v2531 = vpack.c.bf16 %v2355, %v2347
        %v2532 = vpack.c.bf16 %v2356, %v2348
        %v2533 = vpack.c.bf16 %v2357, %v2349
        %v2534 = vpack.c.bf16 %v2358, %v2350
        %v2535 = vpack.c.bf16 %v2359, %v2351
        %v2536 = vpack.c.bf16 %v2368, %v2360
        %v2537 = vpack.c.bf16 %v2369, %v2361
        %v2538 = vpack.c.bf16 %v2370, %v2362
        %v2539 = vpack.c.bf16 %v2371, %v2363
        %v2540 = vpack.c.bf16 %v2372, %v2364
        %v2541 = vpack.c.bf16 %v2373, %v2365
        %v2542 = vpack.c.bf16 %v2374, %v2366
        %v2543 = vpack.c.bf16 %v2375, %v2367
        %v2544 = vpack.c.bf16 %v2384, %v2376
        %v2545 = vpack.c.bf16 %v2385, %v2377
        %v2546 = vpack.c.bf16 %v2386, %v2378
        %v2547 = vpack.c.bf16 %v2387, %v2379
        %v2548 = vpack.c.bf16 %v2388, %v2380
        %v2549 = vpack.c.bf16 %v2389, %v2381
        %v2550 = vpack.c.bf16 %v2390, %v2382
        %v2551 = vpack.c.bf16 %v2391, %v2383
        %v2552 = vpack.c.bf16 %v2400, %v2392
        %v2553 = vpack.c.bf16 %v2401, %v2393
        %v2554 = vpack.c.bf16 %v2402, %v2394
        %v2555 = vpack.c.bf16 %v2403, %v2395
        %v2556 = vpack.c.bf16 %v2404, %v2396
        %v2557 = vpack.c.bf16 %v2405, %v2397
        %v2558 = vpack.c.bf16 %v2406, %v2398
        %v2559 = vpack.c.bf16 %v2407, %v2399
        %v2560 = vld [vmem:[#allocation8] sm:$0xff]
        %v2561 = vld [vmem:[#allocation8 + $0x8] sm:$0xff]
        %v2562 = vld [vmem:[#allocation8 + $0x10] sm:$0xff]
        %v2563 = vld [vmem:[#allocation8 + $0x18] sm:$0xff]
        %v2564 = vld [vmem:[#allocation8 + $0x20] sm:$0xff]
        %v2565 = vld [vmem:[#allocation8 + $0x28] sm:$0xff]
        %v2566 = vld [vmem:[#allocation8 + $0x30] sm:$0xff]
        %v2567 = vld [vmem:[#allocation8 + $0x38] sm:$0xff]
        %v2568 = vld [vmem:[#allocation8 + $0x40] sm:$0xff]
        %v2569 = vld [vmem:[#allocation8 + $0x48] sm:$0xff]
        %v2570 = vld [vmem:[#allocation8 + $0x50] sm:$0xff]
        %v2571 = vld [vmem:[#allocation8 + $0x58] sm:$0xff]
        %v2572 = vld [vmem:[#allocation8 + $0x60] sm:$0xff]
        %v2573 = vld [vmem:[#allocation8 + $0x68] sm:$0xff]
        %v2574 = vld [vmem:[#allocation8 + $0x70] sm:$0xff]
        %v2575 = vld [vmem:[#allocation8 + $0x78] sm:$0xff]
        %v2576 = vld [vmem:[#allocation8 + $0x80] sm:$0xff]
        %v2577 = vld [vmem:[#allocation8 + $0x88] sm:$0xff]
        %v2578 = vld [vmem:[#allocation8 + $0x90] sm:$0xff]
        %v2579 = vld [vmem:[#allocation8 + $0x98] sm:$0xff]
        %v2580 = vld [vmem:[#allocation8 + $0xa0] sm:$0xff]
        %v2581 = vld [vmem:[#allocation8 + $0xa8] sm:$0xff]
        %v2582 = vld [vmem:[#allocation8 + $0xb0] sm:$0xff]
        %v2583 = vld [vmem:[#allocation8 + $0xb8] sm:$0xff]
        %v2584 = vld [vmem:[#allocation8 + $0xc0] sm:$0xff]
        %v2585 = vld [vmem:[#allocation8 + $0xc8] sm:$0xff]
        %v2586 = vld [vmem:[#allocation8 + $0xd0] sm:$0xff]
        %v2587 = vld [vmem:[#allocation8 + $0xd8] sm:$0xff]
        %v2588 = vld [vmem:[#allocation8 + $0xe0] sm:$0xff]
        %v2589 = vld [vmem:[#allocation8 + $0xe8] sm:$0xff]
        %v2590 = vld [vmem:[#allocation8 + $0xf0] sm:$0xff]
        %v2591 = vld [vmem:[#allocation8 + $0xf8] sm:$0xff]
        %v2592 = vld [vmem:[#allocation8 + $0x100] sm:$0xff]
        %v2593 = vld [vmem:[#allocation8 + $0x108] sm:$0xff]
        %v2594 = vld [vmem:[#allocation8 + $0x110] sm:$0xff]
        %v2595 = vld [vmem:[#allocation8 + $0x118] sm:$0xff]
        %v2596 = vld [vmem:[#allocation8 + $0x120] sm:$0xff]
        %v2597 = vld [vmem:[#allocation8 + $0x128] sm:$0xff]
        %v2598 = vld [vmem:[#allocation8 + $0x130] sm:$0xff]
        %v2599 = vld [vmem:[#allocation8 + $0x138] sm:$0xff]
        %v2600 = vld [vmem:[#allocation8 + $0x140] sm:$0xff]
        %v2601 = vld [vmem:[#allocation8 + $0x148] sm:$0xff]
        %v2602 = vld [vmem:[#allocation8 + $0x150] sm:$0xff]
        %v2603 = vld [vmem:[#allocation8 + $0x158] sm:$0xff]
        %v2604 = vld [vmem:[#allocation8 + $0x160] sm:$0xff]
        %v2605 = vld [vmem:[#allocation8 + $0x168] sm:$0xff]
        %v2606 = vld [vmem:[#allocation8 + $0x170] sm:$0xff]
        %v2607 = vld [vmem:[#allocation8 + $0x178] sm:$0xff]
        %v2608 = vld [vmem:[#allocation8 + $0x180] sm:$0xff]
        %v2609 = vld [vmem:[#allocation8 + $0x188] sm:$0xff]
        %v2610 = vld [vmem:[#allocation8 + $0x190] sm:$0xff]
        %v2611 = vld [vmem:[#allocation8 + $0x198] sm:$0xff]
        %v2612 = vld [vmem:[#allocation8 + $0x1a0] sm:$0xff]
        %v2613 = vld [vmem:[#allocation8 + $0x1a8] sm:$0xff]
        %v2614 = vld [vmem:[#allocation8 + $0x1b0] sm:$0xff]
        %v2615 = vld [vmem:[#allocation8 + $0x1b8] sm:$0xff]
        %v2616 = vld [vmem:[#allocation8 + $0x1c0] sm:$0xff]
        %v2617 = vld [vmem:[#allocation8 + $0x1c8] sm:$0xff]
        %v2618 = vld [vmem:[#allocation8 + $0x1d0] sm:$0xff]
        %v2619 = vld [vmem:[#allocation8 + $0x1d8] sm:$0xff]
        %v2620 = vld [vmem:[#allocation8 + $0x1e0] sm:$0xff]
        %v2621 = vld [vmem:[#allocation8 + $0x1e8] sm:$0xff]
        %v2622 = vld [vmem:[#allocation8 + $0x1f0] sm:$0xff]
        %v2623 = vld [vmem:[#allocation8 + $0x1f8] sm:$0xff]
        %v2624 = vld [vmem:[#allocation8 + $0x200] sm:$0xff]
        %v2625 = vld [vmem:[#allocation8 + $0x208] sm:$0xff]
        %v2626 = vld [vmem:[#allocation8 + $0x210] sm:$0xff]
        %v2627 = vld [vmem:[#allocation8 + $0x218] sm:$0xff]
        %v2628 = vld [vmem:[#allocation8 + $0x220] sm:$0xff]
        %v2629 = vld [vmem:[#allocation8 + $0x228] sm:$0xff]
        %v2630 = vld [vmem:[#allocation8 + $0x230] sm:$0xff]
        %v2631 = vld [vmem:[#allocation8 + $0x238] sm:$0xff]
        %v2632 = vld [vmem:[#allocation8 + $0x240] sm:$0xff]
        %v2633 = vld [vmem:[#allocation8 + $0x248] sm:$0xff]
        %v2634 = vld [vmem:[#allocation8 + $0x250] sm:$0xff]
        %v2635 = vld [vmem:[#allocation8 + $0x258] sm:$0xff]
        %v2636 = vld [vmem:[#allocation8 + $0x260] sm:$0xff]
        %v2637 = vld [vmem:[#allocation8 + $0x268] sm:$0xff]
        %v2638 = vld [vmem:[#allocation8 + $0x270] sm:$0xff]
        %v2639 = vld [vmem:[#allocation8 + $0x278] sm:$0xff]
        %v2640 = vld [vmem:[#allocation8 + $0x280] sm:$0xff]
        %v2641 = vld [vmem:[#allocation8 + $0x288] sm:$0xff]
        %v2642 = vld [vmem:[#allocation8 + $0x290] sm:$0xff]
        %v2643 = vld [vmem:[#allocation8 + $0x298] sm:$0xff]
        %v2644 = vld [vmem:[#allocation8 + $0x2a0] sm:$0xff]
        %v2645 = vld [vmem:[#allocation8 + $0x2a8] sm:$0xff]
        %v2646 = vld [vmem:[#allocation8 + $0x2b0] sm:$0xff]
        %v2647 = vld [vmem:[#allocation8 + $0x2b8] sm:$0xff]
        %v2648 = vld [vmem:[#allocation8 + $0x2c0] sm:$0xff]
        %v2649 = vld [vmem:[#allocation8 + $0x2c8] sm:$0xff]
        %v2650 = vld [vmem:[#allocation8 + $0x2d0] sm:$0xff]
        %v2651 = vld [vmem:[#allocation8 + $0x2d8] sm:$0xff]
        %v2652 = vld [vmem:[#allocation8 + $0x2e0] sm:$0xff]
        %v2653 = vld [vmem:[#allocation8 + $0x2e8] sm:$0xff]
        %v2654 = vld [vmem:[#allocation8 + $0x2f0] sm:$0xff]
        %v2655 = vld [vmem:[#allocation8 + $0x2f8] sm:$0xff]
        %v2656 = vld [vmem:[#allocation8 + $0x300] sm:$0xff]
        %v2657 = vld [vmem:[#allocation8 + $0x308] sm:$0xff]
        %v2658 = vld [vmem:[#allocation8 + $0x310] sm:$0xff]
        %v2659 = vld [vmem:[#allocation8 + $0x318] sm:$0xff]
        %v2660 = vld [vmem:[#allocation8 + $0x320] sm:$0xff]
        %v2661 = vld [vmem:[#allocation8 + $0x328] sm:$0xff]
        %v2662 = vld [vmem:[#allocation8 + $0x330] sm:$0xff]
        %v2663 = vld [vmem:[#allocation8 + $0x338] sm:$0xff]
        %v2664 = vld [vmem:[#allocation8 + $0x340] sm:$0xff]
        %v2665 = vld [vmem:[#allocation8 + $0x348] sm:$0xff]
        %v2666 = vld [vmem:[#allocation8 + $0x350] sm:$0xff]
        %v2667 = vld [vmem:[#allocation8 + $0x358] sm:$0xff]
        %v2668 = vld [vmem:[#allocation8 + $0x360] sm:$0xff]
        %v2669 = vld [vmem:[#allocation8 + $0x368] sm:$0xff]
        %v2670 = vld [vmem:[#allocation8 + $0x370] sm:$0xff]
        %v2671 = vld [vmem:[#allocation8 + $0x378] sm:$0xff]
        %v2672 = vld [vmem:[#allocation8 + $0x380] sm:$0xff]
        %v2673 = vld [vmem:[#allocation8 + $0x388] sm:$0xff]
        %v2674 = vld [vmem:[#allocation8 + $0x390] sm:$0xff]
        %v2675 = vld [vmem:[#allocation8 + $0x398] sm:$0xff]
        %v2676 = vld [vmem:[#allocation8 + $0x3a0] sm:$0xff]
        %v2677 = vld [vmem:[#allocation8 + $0x3a8] sm:$0xff]
        %v2678 = vld [vmem:[#allocation8 + $0x3b0] sm:$0xff]
        %v2679 = vld [vmem:[#allocation8 + $0x3b8] sm:$0xff]
        %v2680 = vld [vmem:[#allocation8 + $0x3c0] sm:$0xff]
        %v2681 = vld [vmem:[#allocation8 + $0x3c8] sm:$0xff]
        %v2682 = vld [vmem:[#allocation8 + $0x3d0] sm:$0xff]
        %v2683 = vld [vmem:[#allocation8 + $0x3d8] sm:$0xff]
        %v2684 = vld [vmem:[#allocation8 + $0x3e0] sm:$0xff]
        %v2685 = vld [vmem:[#allocation8 + $0x3e8] sm:$0xff]
        %v2686 = vld [vmem:[#allocation8 + $0x3f0] sm:$0xff]
        %v2687 = vld [vmem:[#allocation8 + $0x3f8] sm:$0xff]
        %v2688 = vld [vmem:[%s4] sm:$0x3]
        %v2690 = vlaneseq
        %v2691 = vshrl.u32 %v2690, 7
        %v2692 = vsub.s32 0, %v2691
        %v2693 = vrot.slane %v2688, %v2692
        %v2694 = vlaneseq
        %v2695 = vshrl.u32 %v2694, 7
        %v2696 = vsub.s32 1, %v2695
        %v2697 = vrot.slane %v2688, %v2696
        %v2828 = vunpack.c.l.b16 %v2560
        %v2829 = vunpack.c.h.b16 %v2560
        %v2830 = vunpack.c.l.b16 %v2561
        %v2831 = vunpack.c.h.b16 %v2561
        %v2832 = vunpack.c.l.b16 %v2562
        %v2833 = vunpack.c.h.b16 %v2562
        %v2834 = vunpack.c.l.b16 %v2563
        %v2835 = vunpack.c.h.b16 %v2563
        %v2836 = vunpack.c.l.b16 %v2564
        %v2837 = vunpack.c.h.b16 %v2564
        %v2838 = vunpack.c.l.b16 %v2565
        %v2839 = vunpack.c.h.b16 %v2565
        %v2840 = vunpack.c.l.b16 %v2566
        %v2841 = vunpack.c.h.b16 %v2566
        %v2842 = vunpack.c.l.b16 %v2567
        %v2843 = vunpack.c.h.b16 %v2567
        %v2844 = vunpack.c.l.b16 %v2568
        %v2845 = vunpack.c.h.b16 %v2568
        %v2846 = vunpack.c.l.b16 %v2569
        %v2847 = vunpack.c.h.b16 %v2569
        %v2848 = vunpack.c.l.b16 %v2570
        %v2849 = vunpack.c.h.b16 %v2570
        %v2850 = vunpack.c.l.b16 %v2571
        %v2851 = vunpack.c.h.b16 %v2571
        %v2852 = vunpack.c.l.b16 %v2572
        %v2853 = vunpack.c.h.b16 %v2572
        %v2854 = vunpack.c.l.b16 %v2573
        %v2855 = vunpack.c.h.b16 %v2573
        %v2856 = vunpack.c.l.b16 %v2574
        %v2857 = vunpack.c.h.b16 %v2574
        %v2858 = vunpack.c.l.b16 %v2575
        %v2859 = vunpack.c.h.b16 %v2575
        %v2860 = vunpack.c.l.b16 %v2576
        %v2861 = vunpack.c.h.b16 %v2576
        %v2862 = vunpack.c.l.b16 %v2577
        %v2863 = vunpack.c.h.b16 %v2577
        %v2864 = vunpack.c.l.b16 %v2578
        %v2865 = vunpack.c.h.b16 %v2578
        %v2866 = vunpack.c.l.b16 %v2579
        %v2867 = vunpack.c.h.b16 %v2579
        %v2868 = vunpack.c.l.b16 %v2580
        %v2869 = vunpack.c.h.b16 %v2580
        %v2870 = vunpack.c.l.b16 %v2581
        %v2871 = vunpack.c.h.b16 %v2581
        %v2872 = vunpack.c.l.b16 %v2582
        %v2873 = vunpack.c.h.b16 %v2582
        %v2874 = vunpack.c.l.b16 %v2583
        %v2875 = vunpack.c.h.b16 %v2583
        %v2876 = vunpack.c.l.b16 %v2584
        %v2877 = vunpack.c.h.b16 %v2584
        %v2878 = vunpack.c.l.b16 %v2585
        %v2879 = vunpack.c.h.b16 %v2585
        %v2880 = vunpack.c.l.b16 %v2586
        %v2881 = vunpack.c.h.b16 %v2586
        %v2882 = vunpack.c.l.b16 %v2587
        %v2883 = vunpack.c.h.b16 %v2587
        %v2884 = vunpack.c.l.b16 %v2588
        %v2885 = vunpack.c.h.b16 %v2588
        %v2886 = vunpack.c.l.b16 %v2589
        %v2887 = vunpack.c.h.b16 %v2589
        %v2888 = vunpack.c.l.b16 %v2590
        %v2889 = vunpack.c.h.b16 %v2590
        %v2890 = vunpack.c.l.b16 %v2591
        %v2891 = vunpack.c.h.b16 %v2591
        %v2892 = vunpack.c.l.b16 %v2592
        %v2893 = vunpack.c.h.b16 %v2592
        %v2894 = vunpack.c.l.b16 %v2593
        %v2895 = vunpack.c.h.b16 %v2593
        %v2896 = vunpack.c.l.b16 %v2594
        %v2897 = vunpack.c.h.b16 %v2594
        %v2898 = vunpack.c.l.b16 %v2595
        %v2899 = vunpack.c.h.b16 %v2595
        %v2900 = vunpack.c.l.b16 %v2596
        %v2901 = vunpack.c.h.b16 %v2596
        %v2902 = vunpack.c.l.b16 %v2597
        %v2903 = vunpack.c.h.b16 %v2597
        %v2904 = vunpack.c.l.b16 %v2598
        %v2905 = vunpack.c.h.b16 %v2598
        %v2906 = vunpack.c.l.b16 %v2599
        %v2907 = vunpack.c.h.b16 %v2599
        %v2908 = vunpack.c.l.b16 %v2600
        %v2909 = vunpack.c.h.b16 %v2600
        %v2910 = vunpack.c.l.b16 %v2601
        %v2911 = vunpack.c.h.b16 %v2601
        %v2912 = vunpack.c.l.b16 %v2602
        %v2913 = vunpack.c.h.b16 %v2602
        %v2914 = vunpack.c.l.b16 %v2603
        %v2915 = vunpack.c.h.b16 %v2603
        %v2916 = vunpack.c.l.b16 %v2604
        %v2917 = vunpack.c.h.b16 %v2604
        %v2918 = vunpack.c.l.b16 %v2605
        %v2919 = vunpack.c.h.b16 %v2605
        %v2920 = vunpack.c.l.b16 %v2606
        %v2921 = vunpack.c.h.b16 %v2606
        %v2922 = vunpack.c.l.b16 %v2607
        %v2923 = vunpack.c.h.b16 %v2607
        %v2924 = vunpack.c.l.b16 %v2608
        %v2925 = vunpack.c.h.b16 %v2608
        %v2926 = vunpack.c.l.b16 %v2609
        %v2927 = vunpack.c.h.b16 %v2609
        %v2928 = vunpack.c.l.b16 %v2610
        %v2929 = vunpack.c.h.b16 %v2610
        %v2930 = vunpack.c.l.b16 %v2611
        %v2931 = vunpack.c.h.b16 %v2611
        %v2932 = vunpack.c.l.b16 %v2612
        %v2933 = vunpack.c.h.b16 %v2612
        %v2934 = vunpack.c.l.b16 %v2613
        %v2935 = vunpack.c.h.b16 %v2613
        %v2936 = vunpack.c.l.b16 %v2614
        %v2937 = vunpack.c.h.b16 %v2614
        %v2938 = vunpack.c.l.b16 %v2615
        %v2939 = vunpack.c.h.b16 %v2615
        %v2940 = vunpack.c.l.b16 %v2616
        %v2941 = vunpack.c.h.b16 %v2616
        %v2942 = vunpack.c.l.b16 %v2617
        %v2943 = vunpack.c.h.b16 %v2617
        %v2944 = vunpack.c.l.b16 %v2618
        %v2945 = vunpack.c.h.b16 %v2618
        %v2946 = vunpack.c.l.b16 %v2619
        %v2947 = vunpack.c.h.b16 %v2619
        %v2948 = vunpack.c.l.b16 %v2620
        %v2949 = vunpack.c.h.b16 %v2620
        %v2950 = vunpack.c.l.b16 %v2621
        %v2951 = vunpack.c.h.b16 %v2621
        %v2952 = vunpack.c.l.b16 %v2622
        %v2953 = vunpack.c.h.b16 %v2622
        %v2954 = vunpack.c.l.b16 %v2623
        %v2955 = vunpack.c.h.b16 %v2623
        %v2956 = vunpack.c.l.b16 %v2624
        %v2957 = vunpack.c.h.b16 %v2624
        %v2958 = vunpack.c.l.b16 %v2625
        %v2959 = vunpack.c.h.b16 %v2625
        %v2960 = vunpack.c.l.b16 %v2626
        %v2961 = vunpack.c.h.b16 %v2626
        %v2962 = vunpack.c.l.b16 %v2627
        %v2963 = vunpack.c.h.b16 %v2627
        %v2964 = vunpack.c.l.b16 %v2628
        %v2965 = vunpack.c.h.b16 %v2628
        %v2966 = vunpack.c.l.b16 %v2629
        %v2967 = vunpack.c.h.b16 %v2629
        %v2968 = vunpack.c.l.b16 %v2630
        %v2969 = vunpack.c.h.b16 %v2630
        %v2970 = vunpack.c.l.b16 %v2631
        %v2971 = vunpack.c.h.b16 %v2631
        %v2972 = vunpack.c.l.b16 %v2632
        %v2973 = vunpack.c.h.b16 %v2632
        %v2974 = vunpack.c.l.b16 %v2633
        %v2975 = vunpack.c.h.b16 %v2633
        %v2976 = vunpack.c.l.b16 %v2634
        %v2977 = vunpack.c.h.b16 %v2634
        %v2978 = vunpack.c.l.b16 %v2635
        %v2979 = vunpack.c.h.b16 %v2635
        %v2980 = vunpack.c.l.b16 %v2636
        %v2981 = vunpack.c.h.b16 %v2636
        %v2982 = vunpack.c.l.b16 %v2637
        %v2983 = vunpack.c.h.b16 %v2637
        %v2984 = vunpack.c.l.b16 %v2638
        %v2985 = vunpack.c.h.b16 %v2638
        %v2986 = vunpack.c.l.b16 %v2639
        %v2987 = vunpack.c.h.b16 %v2639
        %v2988 = vunpack.c.l.b16 %v2640
        %v2989 = vunpack.c.h.b16 %v2640
        %v2990 = vunpack.c.l.b16 %v2641
        %v2991 = vunpack.c.h.b16 %v2641
        %v2992 = vunpack.c.l.b16 %v2642
        %v2993 = vunpack.c.h.b16 %v2642
        %v2994 = vunpack.c.l.b16 %v2643
        %v2995 = vunpack.c.h.b16 %v2643
        %v2996 = vunpack.c.l.b16 %v2644
        %v2997 = vunpack.c.h.b16 %v2644
        %v2998 = vunpack.c.l.b16 %v2645
        %v2999 = vunpack.c.h.b16 %v2645
        %v3000 = vunpack.c.l.b16 %v2646
        %v3001 = vunpack.c.h.b16 %v2646
        %v3002 = vunpack.c.l.b16 %v2647
        %v3003 = vunpack.c.h.b16 %v2647
        %v3004 = vunpack.c.l.b16 %v2648
        %v3005 = vunpack.c.h.b16 %v2648
        %v3006 = vunpack.c.l.b16 %v2649
        %v3007 = vunpack.c.h.b16 %v2649
        %v3008 = vunpack.c.l.b16 %v2650
        %v3009 = vunpack.c.h.b16 %v2650
        %v3010 = vunpack.c.l.b16 %v2651
        %v3011 = vunpack.c.h.b16 %v2651
        %v3012 = vunpack.c.l.b16 %v2652
        %v3013 = vunpack.c.h.b16 %v2652
        %v3014 = vunpack.c.l.b16 %v2653
        %v3015 = vunpack.c.h.b16 %v2653
        %v3016 = vunpack.c.l.b16 %v2654
        %v3017 = vunpack.c.h.b16 %v2654
        %v3018 = vunpack.c.l.b16 %v2655
        %v3019 = vunpack.c.h.b16 %v2655
        %v3020 = vunpack.c.l.b16 %v2656
        %v3021 = vunpack.c.h.b16 %v2656
        %v3022 = vunpack.c.l.b16 %v2657
        %v3023 = vunpack.c.h.b16 %v2657
        %v3024 = vunpack.c.l.b16 %v2658
        %v3025 = vunpack.c.h.b16 %v2658
        %v3026 = vunpack.c.l.b16 %v2659
        %v3027 = vunpack.c.h.b16 %v2659
        %v3028 = vunpack.c.l.b16 %v2660
        %v3029 = vunpack.c.h.b16 %v2660
        %v3030 = vunpack.c.l.b16 %v2661
        %v3031 = vunpack.c.h.b16 %v2661
        %v3032 = vunpack.c.l.b16 %v2662
        %v3033 = vunpack.c.h.b16 %v2662
        %v3034 = vunpack.c.l.b16 %v2663
        %v3035 = vunpack.c.h.b16 %v2663
        %v3036 = vunpack.c.l.b16 %v2664
        %v3037 = vunpack.c.h.b16 %v2664
        %v3038 = vunpack.c.l.b16 %v2665
        %v3039 = vunpack.c.h.b16 %v2665
        %v3040 = vunpack.c.l.b16 %v2666
        %v3041 = vunpack.c.h.b16 %v2666
        %v3042 = vunpack.c.l.b16 %v2667
        %v3043 = vunpack.c.h.b16 %v2667
        %v3044 = vunpack.c.l.b16 %v2668
        %v3045 = vunpack.c.h.b16 %v2668
        %v3046 = vunpack.c.l.b16 %v2669
        %v3047 = vunpack.c.h.b16 %v2669
        %v3048 = vunpack.c.l.b16 %v2670
        %v3049 = vunpack.c.h.b16 %v2670
        %v3050 = vunpack.c.l.b16 %v2671
        %v3051 = vunpack.c.h.b16 %v2671
        %v3052 = vunpack.c.l.b16 %v2672
        %v3053 = vunpack.c.h.b16 %v2672
        %v3054 = vunpack.c.l.b16 %v2673
        %v3055 = vunpack.c.h.b16 %v2673
        %v3056 = vunpack.c.l.b16 %v2674
        %v3057 = vunpack.c.h.b16 %v2674
        %v3058 = vunpack.c.l.b16 %v2675
        %v3059 = vunpack.c.h.b16 %v2675
        %v3060 = vunpack.c.l.b16 %v2676
        %v3061 = vunpack.c.h.b16 %v2676
        %v3062 = vunpack.c.l.b16 %v2677
        %v3063 = vunpack.c.h.b16 %v2677
        %v3064 = vunpack.c.l.b16 %v2678
        %v3065 = vunpack.c.h.b16 %v2678
        %v3066 = vunpack.c.l.b16 %v2679
        %v3067 = vunpack.c.h.b16 %v2679
        %v3068 = vunpack.c.l.b16 %v2680
        %v3069 = vunpack.c.h.b16 %v2680
        %v3070 = vunpack.c.l.b16 %v2681
        %v3071 = vunpack.c.h.b16 %v2681
        %v3072 = vunpack.c.l.b16 %v2682
        %v3073 = vunpack.c.h.b16 %v2682
        %v3074 = vunpack.c.l.b16 %v2683
        %v3075 = vunpack.c.h.b16 %v2683
        %v3076 = vunpack.c.l.b16 %v2684
        %v3077 = vunpack.c.h.b16 %v2684
        %v3078 = vunpack.c.l.b16 %v2685
        %v3079 = vunpack.c.h.b16 %v2685
        %v3080 = vunpack.c.l.b16 %v2686
        %v3081 = vunpack.c.h.b16 %v2686
        %v3082 = vunpack.c.l.b16 %v2687
        %v3083 = vunpack.c.h.b16 %v2687
        %v3084 = vpack.c.b16 %v2830, %v2828
        %v3085 = vpack.c.b16 %v2831, %v2829
        %v3086 = vpack.c.b16 %v2834, %v2832
        %v3087 = vpack.c.b16 %v2835, %v2833
        %v3088 = vpack.c.b16 %v2838, %v2836
        %v3089 = vpack.c.b16 %v2839, %v2837
        %v3090 = vpack.c.b16 %v2842, %v2840
        %v3091 = vpack.c.b16 %v2843, %v2841
        %v3092 = vpack.c.b16 %v2846, %v2844
        %v3093 = vpack.c.b16 %v2847, %v2845
        %v3094 = vpack.c.b16 %v2850, %v2848
        %v3095 = vpack.c.b16 %v2851, %v2849
        %v3096 = vpack.c.b16 %v2854, %v2852
        %v3097 = vpack.c.b16 %v2855, %v2853
        %v3098 = vpack.c.b16 %v2858, %v2856
        %v3099 = vpack.c.b16 %v2859, %v2857
        %v3100 = vpack.c.b16 %v2862, %v2860
        %v3101 = vpack.c.b16 %v2863, %v2861
        %v3102 = vpack.c.b16 %v2866, %v2864
        %v3103 = vpack.c.b16 %v2867, %v2865
        %v3104 = vpack.c.b16 %v2870, %v2868
        %v3105 = vpack.c.b16 %v2871, %v2869
        %v3106 = vpack.c.b16 %v2874, %v2872
        %v3107 = vpack.c.b16 %v2875, %v2873
        %v3108 = vpack.c.b16 %v2878, %v2876
        %v3109 = vpack.c.b16 %v2879, %v2877
        %v3110 = vpack.c.b16 %v2882, %v2880
        %v3111 = vpack.c.b16 %v2883, %v2881
        %v3112 = vpack.c.b16 %v2886, %v2884
        %v3113 = vpack.c.b16 %v2887, %v2885
        %v3114 = vpack.c.b16 %v2890, %v2888
        %v3115 = vpack.c.b16 %v2891, %v2889
        %v3116 = vpack.c.b16 %v2894, %v2892
        %v3117 = vpack.c.b16 %v2895, %v2893
        %v3118 = vpack.c.b16 %v2898, %v2896
        %v3119 = vpack.c.b16 %v2899, %v2897
        %v3120 = vpack.c.b16 %v2902, %v2900
        %v3121 = vpack.c.b16 %v2903, %v2901
        %v3122 = vpack.c.b16 %v2906, %v2904
        %v3123 = vpack.c.b16 %v2907, %v2905
        %v3124 = vpack.c.b16 %v2910, %v2908
        %v3125 = vpack.c.b16 %v2911, %v2909
        %v3126 = vpack.c.b16 %v2914, %v2912
        %v3127 = vpack.c.b16 %v2915, %v2913
        %v3128 = vpack.c.b16 %v2918, %v2916
        %v3129 = vpack.c.b16 %v2919, %v2917
        %v3130 = vpack.c.b16 %v2922, %v2920
        %v3131 = vpack.c.b16 %v2923, %v2921
        %v3132 = vpack.c.b16 %v2926, %v2924
        %v3133 = vpack.c.b16 %v2927, %v2925
        %v3134 = vpack.c.b16 %v2930, %v2928
        %v3135 = vpack.c.b16 %v2931, %v2929
        %v3136 = vpack.c.b16 %v2934, %v2932
        %v3137 = vpack.c.b16 %v2935, %v2933
        %v3138 = vpack.c.b16 %v2938, %v2936
        %v3139 = vpack.c.b16 %v2939, %v2937
        %v3140 = vpack.c.b16 %v2942, %v2940
        %v3141 = vpack.c.b16 %v2943, %v2941
        %v3142 = vpack.c.b16 %v2946, %v2944
        %v3143 = vpack.c.b16 %v2947, %v2945
        %v3144 = vpack.c.b16 %v2950, %v2948
        %v3145 = vpack.c.b16 %v2951, %v2949
        %v3146 = vpack.c.b16 %v2954, %v2952
        %v3147 = vpack.c.b16 %v2955, %v2953
        %v3148 = vpack.c.b16 %v2958, %v2956
        %v3149 = vpack.c.b16 %v2959, %v2957
        %v3150 = vpack.c.b16 %v2962, %v2960
        %v3151 = vpack.c.b16 %v2963, %v2961
        %v3152 = vpack.c.b16 %v2966, %v2964
        %v3153 = vpack.c.b16 %v2967, %v2965
        %v3154 = vpack.c.b16 %v2970, %v2968
        %v3155 = vpack.c.b16 %v2971, %v2969
        %v3156 = vpack.c.b16 %v2974, %v2972
        %v3157 = vpack.c.b16 %v2975, %v2973
        %v3158 = vpack.c.b16 %v2978, %v2976
        %v3159 = vpack.c.b16 %v2979, %v2977
        %v3160 = vpack.c.b16 %v2982, %v2980
        %v3161 = vpack.c.b16 %v2983, %v2981
        %v3162 = vpack.c.b16 %v2986, %v2984
        %v3163 = vpack.c.b16 %v2987, %v2985
        %v3164 = vpack.c.b16 %v2990, %v2988
        %v3165 = vpack.c.b16 %v2991, %v2989
        %v3166 = vpack.c.b16 %v2994, %v2992
        %v3167 = vpack.c.b16 %v2995, %v2993
        %v3168 = vpack.c.b16 %v2998, %v2996
        %v3169 = vpack.c.b16 %v2999, %v2997
        %v3170 = vpack.c.b16 %v3002, %v3000
        %v3171 = vpack.c.b16 %v3003, %v3001
        %v3172 = vpack.c.b16 %v3006, %v3004
        %v3173 = vpack.c.b16 %v3007, %v3005
        %v3174 = vpack.c.b16 %v3010, %v3008
        %v3175 = vpack.c.b16 %v3011, %v3009
        %v3176 = vpack.c.b16 %v3014, %v3012
        %v3177 = vpack.c.b16 %v3015, %v3013
        %v3178 = vpack.c.b16 %v3018, %v3016
        %v3179 = vpack.c.b16 %v3019, %v3017
        %v3180 = vpack.c.b16 %v3022, %v3020
        %v3181 = vpack.c.b16 %v3023, %v3021
        %v3182 = vpack.c.b16 %v3026, %v3024
        %v3183 = vpack.c.b16 %v3027, %v3025
        %v3184 = vpack.c.b16 %v3030, %v3028
        %v3185 = vpack.c.b16 %v3031, %v3029
        %v3186 = vpack.c.b16 %v3034, %v3032
        %v3187 = vpack.c.b16 %v3035, %v3033
        %v3188 = vpack.c.b16 %v3038, %v3036
        %v3189 = vpack.c.b16 %v3039, %v3037
        %v3190 = vpack.c.b16 %v3042, %v3040
        %v3191 = vpack.c.b16 %v3043, %v3041
        %v3192 = vpack.c.b16 %v3046, %v3044
        %v3193 = vpack.c.b16 %v3047, %v3045
        %v3194 = vpack.c.b16 %v3050, %v3048
        %v3195 = vpack.c.b16 %v3051, %v3049
        %v3196 = vpack.c.b16 %v3054, %v3052
        %v3197 = vpack.c.b16 %v3055, %v3053
        %v3198 = vpack.c.b16 %v3058, %v3056
        %v3199 = vpack.c.b16 %v3059, %v3057
        %v3200 = vpack.c.b16 %v3062, %v3060
        %v3201 = vpack.c.b16 %v3063, %v3061
        %v3202 = vpack.c.b16 %v3066, %v3064
        %v3203 = vpack.c.b16 %v3067, %v3065
        %v3204 = vpack.c.b16 %v3070, %v3068
        %v3205 = vpack.c.b16 %v3071, %v3069
        %v3206 = vpack.c.b16 %v3074, %v3072
        %v3207 = vpack.c.b16 %v3075, %v3073
        %v3208 = vpack.c.b16 %v3078, %v3076
        %v3209 = vpack.c.b16 %v3079, %v3077
        %v3210 = vpack.c.b16 %v3082, %v3080
        %v3211 = vpack.c.b16 %v3083, %v3081
        %3340 = vmatprep.subr.bf16.mxu0 %v3085
        %3341 = vmatpush1.bf16.msra.mxu0 %v3084
        %3342 = vmatprep.subr.bf16.mxu0 %v3087
        %3343 = vmatpush1.bf16.msra.mxu0 %v3086
        %3344 = vmatprep.subr.bf16.mxu0 %v3089
        %3345 = vmatpush1.bf16.msra.mxu0 %v3088
        %3346 = vmatprep.subr.bf16.mxu0 %v3091
        %3347 = vmatpush1.bf16.msra.mxu0 %v3090
        %3348 = vmatprep.subr.bf16.mxu0 %v3093
        %3349 = vmatpush1.bf16.msra.mxu0 %v3092
        %3350 = vmatprep.subr.bf16.mxu0 %v3095
        %3351 = vmatpush1.bf16.msra.mxu0 %v3094
        %3352 = vmatprep.subr.bf16.mxu0 %v3097
        %3353 = vmatpush1.bf16.msra.mxu0 %v3096
        %3354 = vmatprep.subr.bf16.mxu0 %v3099
        %3355 = vmatpush1.bf16.msra.mxu0 %v3098
        %3356 = vmatprep.subr.bf16.mxu0 %v3101
        %3357 = vmatpush1.bf16.msra.mxu0 %v3100
        %3358 = vmatprep.subr.bf16.mxu0 %v3103
        %3359 = vmatpush1.bf16.msra.mxu0 %v3102
        %3360 = vmatprep.subr.bf16.mxu0 %v3105
        %3361 = vmatpush1.bf16.msra.mxu0 %v3104
        %3362 = vmatprep.subr.bf16.mxu0 %v3107
        %3363 = vmatpush1.bf16.msra.mxu0 %v3106
        %3364 = vmatprep.subr.bf16.mxu0 %v3109
        %3365 = vmatpush1.bf16.msra.mxu0 %v3108
        %3366 = vmatprep.subr.bf16.mxu0 %v3111
        %3367 = vmatpush1.bf16.msra.mxu0 %v3110
        %3368 = vmatprep.subr.bf16.mxu0 %v3113
        %3369 = vmatpush1.bf16.msra.mxu0 %v3112
        %3370 = vmatprep.subr.bf16.mxu0 %v3115
        %3371 = vmatpush1.bf16.msra.mxu0 %v3114
        %3372 = vmatprep.mubr.bf16.mxu0 %v2409
        %3373 = vmatmul.mubr.bf16.gmra.mrb[0].mxu0 %v2408
        %v3374 = vpop.f32.mrb[0].mxu0
        %v3375 = vadd.f32 %v2693, %v3374
        %v3376 = vpop.f32.mrb[0].mxu0
        %v3377 = vadd.f32 %v2697, %v3376
        %v3378 = vpop.f32.mrb[0].mxu0
        %v3379 = vadd.f32 %v2693, %v3378
        %v3380 = vpop.f32.mrb[0].mxu0
        %v3381 = vadd.f32 %v2697, %v3380
        %3382 = vmatprep.mubr.bf16.mxu0 %v2417
        %3383 = vmatmul.mubr.bf16.gmra.mrb[0].mxu0 %v2416
        %v3384 = vpop.f32.mrb[0].mxu0
        %v3385 = vadd.f32 %v2693, %v3384
        %v3386 = vpop.f32.mrb[0].mxu0
        %v3387 = vadd.f32 %v2697, %v3386
        %v3388 = vpop.f32.mrb[0].mxu0
        %v3389 = vadd.f32 %v2693, %v3388
        %v3390 = vpop.f32.mrb[0].mxu0
        %v3391 = vadd.f32 %v2697, %v3390
        %3392 = vmatprep.mubr.bf16.mxu0 %v2425
        %3393 = vmatmul.mubr.bf16.gmra.mrb[0].mxu0 %v2424
        %v3394 = vpop.f32.mrb[0].mxu0
        %v3395 = vadd.f32 %v2693, %v3394
        %v3396 = vpop.f32.mrb[0].mxu0
        %v3397 = vadd.f32 %v2697, %v3396
        %v3398 = vpop.f32.mrb[0].mxu0
        %v3399 = vadd.f32 %v2693, %v3398
        %v3400 = vpop.f32.mrb[0].mxu0
        %v3401 = vadd.f32 %v2697, %v3400
        %3402 = vmatprep.mubr.bf16.mxu0 %v2433
        %3403 = vmatmul.mubr.bf16.gmra.mrb[0].mxu0 %v2432
        %v3404 = vpop.f32.mrb[0].mxu0
        %v3405 = vadd.f32 %v2693, %v3404
        %v3406 = vpop.f32.mrb[0].mxu0
        %v3407 = vadd.f32 %v2697, %v3406
        %v3408 = vpop.f32.mrb[0].mxu0
        %v3409 = vadd.f32 %v2693, %v3408
        %v3410 = vpop.f32.mrb[0].mxu0
        %v3411 = vadd.f32 %v2697, %v3410
        %3412 = vmatprep.mubr.bf16.mxu0 %v2441
        %3413 = vmatmul.mubr.bf16.gmra.mrb[0].mxu0 %v2440
        %v3414 = vpop.f32.mrb[0].mxu0
        %v3415 = vadd.f32 %v2693, %v3414
        %v3416 = vpop.f32.mrb[0].mxu0
        %v3417 = vadd.f32 %v2697, %v3416
        %v3418 = vpop.f32.mrb[0].mxu0
        %v3419 = vadd.f32 %v2693, %v3418
        %v3420 = vpop.f32.mrb[0].mxu0
        %v3421 = vadd.f32 %v2697, %v3420
        %3422 = vmatprep.mubr.bf16.mxu0 %v2449
        %3423 = vmatmul.mubr.bf16.gmra.mrb[0].mxu0 %v2448
        %v3424 = vpop.f32.mrb[0].mxu0
        %v3425 = vadd.f32 %v2693, %v3424
        %v3426 = vpop.f32.mrb[0].mxu0
        %v3427 = vadd.f32 %v2697, %v3426
        %v3428 = vpop.f32.mrb[0].mxu0
        %v3429 = vadd.f32 %v2693, %v3428
        %v3430 = vpop.f32.mrb[0].mxu0
        %v3431 = vadd.f32 %v2697, %v3430
        %3432 = vmatprep.mubr.bf16.mxu0 %v2457
        %3433 = vmatmul.mubr.bf16.gmra.mrb[0].mxu0 %v2456
        %v3434 = vpop.f32.mrb[0].mxu0
        %v3435 = vadd.f32 %v2693, %v3434
        %v3436 = vpop.f32.mrb[0].mxu0
        %v3437 = vadd.f32 %v2697, %v3436
        %v3438 = vpop.f32.mrb[0].mxu0
        %v3439 = vadd.f32 %v2693, %v3438
        %v3440 = vpop.f32.mrb[0].mxu0
        %v3441 = vadd.f32 %v2697, %v3440
        %3442 = vmatprep.mubr.bf16.mxu0 %v2465
        %3443 = vmatmul.mubr.bf16.gmra.mrb[0].mxu0 %v2464
        %v3444 = vpop.f32.mrb[0].mxu0
        %v3445 = vadd.f32 %v2693, %v3444
        %v3446 = vpop.f32.mrb[0].mxu0
        %v3447 = vadd.f32 %v2697, %v3446
        %v3448 = vpop.f32.mrb[0].mxu0
        %v3449 = vadd.f32 %v2693, %v3448
        %v3450 = vpop.f32.mrb[0].mxu0
        %v3451 = vadd.f32 %v2697, %v3450
        %3452 = vmatprep.mubr.bf16.mxu0 %v2473
        %3453 = vmatmul.mubr.bf16.gmra.mrb[0].mxu0 %v2472
        %v3454 = vpop.f32.mrb[0].mxu0
        %v3455 = vadd.f32 %v2693, %v3454
        %v3456 = vpop.f32.mrb[0].mxu0
        %v3457 = vadd.f32 %v2697, %v3456
        %v3458 = vpop.f32.mrb[0].mxu0
        %v3459 = vadd.f32 %v2693, %v3458
        %v3460 = vpop.f32.mrb[0].mxu0
        %v3461 = vadd.f32 %v2697, %v3460
        %3462 = vmatprep.mubr.bf16.mxu0 %v2481
        %3463 = vmatmul.mubr.bf16.gmra.mrb[0].mxu0 %v2480
        %v3464 = vpop.f32.mrb[0].mxu0
        %v3465 = vadd.f32 %v2693, %v3464
        %v3466 = vpop.f32.mrb[0].mxu0
        %v3467 = vadd.f32 %v2697, %v3466
        %v3468 = vpop.f32.mrb[0].mxu0
        %v3469 = vadd.f32 %v2693, %v3468
        %v3470 = vpop.f32.mrb[0].mxu0
        %v3471 = vadd.f32 %v2697, %v3470
        %3472 = vmatprep.mubr.bf16.mxu0 %v2489
        %3473 = vmatmul.mubr.bf16.gmra.mrb[0].mxu0 %v2488
        %v3474 = vpop.f32.mrb[0].mxu0
        %v3475 = vadd.f32 %v2693, %v3474
        %v3476 = vpop.f32.mrb[0].mxu0
        %v3477 = vadd.f32 %v2697, %v3476
        %v3478 = vpop.f32.mrb[0].mxu0
        %v3479 = vadd.f32 %v2693, %v3478
        %v3480 = vpop.f32.mrb[0].mxu0
        %v3481 = vadd.f32 %v2697, %v3480
        %3482 = vmatprep.mubr.bf16.mxu0 %v2497
        %3483 = vmatmul.mubr.bf16.gmra.mrb[0].mxu0 %v2496
        %v3484 = vpop.f32.mrb[0].mxu0
        %v3485 = vadd.f32 %v2693, %v3484
        %v3486 = vpop.f32.mrb[0].mxu0
        %v3487 = vadd.f32 %v2697, %v3486
        %v3488 = vpop.f32.mrb[0].mxu0
        %v3489 = vadd.f32 %v2693, %v3488
        %v3490 = vpop.f32.mrb[0].mxu0
        %v3491 = vadd.f32 %v2697, %v3490
        %3492 = vmatprep.mubr.bf16.mxu0 %v2505
        %3493 = vmatmul.mubr.bf16.gmra.mrb[0].mxu0 %v2504
        %v3494 = vpop.f32.mrb[0].mxu0
        %v3495 = vadd.f32 %v2693, %v3494
        %v3496 = vpop.f32.mrb[0].mxu0
        %v3497 = vadd.f32 %v2697, %v3496
        %v3498 = vpop.f32.mrb[0].mxu0
        %v3499 = vadd.f32 %v2693, %v3498
        %v3500 = vpop.f32.mrb[0].mxu0
        %v3501 = vadd.f32 %v2697, %v3500
        %3502 = vmatprep.mubr.bf16.mxu0 %v2513
        %3503 = vmatmul.mubr.bf16.gmra.mrb[0].mxu0 %v2512
        %v3504 = vpop.f32.mrb[0].mxu0
        %v3505 = vadd.f32 %v2693, %v3504
        %v3506 = vpop.f32.mrb[0].mxu0
        %v3507 = vadd.f32 %v2697, %v3506
        %v3508 = vpop.f32.mrb[0].mxu0
        %v3509 = vadd.f32 %v2693, %v3508
        %v3510 = vpop.f32.mrb[0].mxu0
        %v3511 = vadd.f32 %v2697, %v3510
        %3512 = vmatprep.mubr.bf16.mxu0 %v2521
        %3513 = vmatmul.mubr.bf16.gmra.mrb[0].mxu0 %v2520
        %v3514 = vpop.f32.mrb[0].mxu0
        %v3515 = vadd.f32 %v2693, %v3514
        %v3516 = vpop.f32.mrb[0].mxu0
        %v3517 = vadd.f32 %v2697, %v3516
        %v3518 = vpop.f32.mrb[0].mxu0
        %v3519 = vadd.f32 %v2693, %v3518
        %v3520 = vpop.f32.mrb[0].mxu0
        %v3521 = vadd.f32 %v2697, %v3520
        %3522 = vmatprep.mubr.bf16.mxu0 %v2529
        %3523 = vmatmul.mubr.bf16.gmra.mrb[0].mxu0 %v2528
        %v3524 = vpop.f32.mrb[0].mxu0
        %v3525 = vadd.f32 %v2693, %v3524
        %v3526 = vpop.f32.mrb[0].mxu0
        %v3527 = vadd.f32 %v2697, %v3526
        %v3528 = vpop.f32.mrb[0].mxu0
        %v3529 = vadd.f32 %v2693, %v3528
        %v3530 = vpop.f32.mrb[0].mxu0
        %v3531 = vadd.f32 %v2697, %v3530
        %3532 = vmatprep.mubr.bf16.mxu0 %v2537
        %3533 = vmatmul.mubr.bf16.gmra.mrb[0].mxu0 %v2536
        %v3534 = vpop.f32.mrb[0].mxu0
        %v3535 = vadd.f32 %v2693, %v3534
        %v3536 = vpop.f32.mrb[0].mxu0
        %v3537 = vadd.f32 %v2697, %v3536
        %v3538 = vpop.f32.mrb[0].mxu0
        %v3539 = vadd.f32 %v2693, %v3538
        %v3540 = vpop.f32.mrb[0].mxu0
        %v3541 = vadd.f32 %v2697, %v3540
        %3542 = vmatprep.mubr.bf16.mxu0 %v2545
        %3543 = vmatmul.mubr.bf16.gmra.mrb[0].mxu0 %v2544
        %v3544 = vpop.f32.mrb[0].mxu0
        %v3545 = vadd.f32 %v2693, %v3544
        %v3546 = vpop.f32.mrb[0].mxu0
        %v3547 = vadd.f32 %v2697, %v3546
        %v3548 = vpop.f32.mrb[0].mxu0
        %v3549 = vadd.f32 %v2693, %v3548
        %v3550 = vpop.f32.mrb[0].mxu0
        %v3551 = vadd.f32 %v2697, %v3550
        %3552 = vmatprep.mubr.bf16.mxu0 %v2553
        %3553 = vmatmul.mubr.bf16.gmra.mrb[0].mxu0 %v2552
        %v3554 = vpop.f32.mrb[0].mxu0
        %v3555 = vadd.f32 %v2693, %v3554
        %v3556 = vpop.f32.mrb[0].mxu0
        %v3557 = vadd.f32 %v2697, %v3556
        %v3558 = vpop.f32.mrb[0].mxu0
        %v3559 = vadd.f32 %v2693, %v3558
        %v3560 = vpop.f32.mrb[0].mxu0
        %v3561 = vadd.f32 %v2697, %v3560
        %3562 = vdwg.mxu0
        %3563 = vmatprep.subr.bf16.mxu0 %v3117
        %3564 = vmatpush1.bf16.msra.mxu0 %v3116
        %3565 = vmatprep.subr.bf16.mxu0 %v3119
        %3566 = vmatpush1.bf16.msra.mxu0 %v3118
        %3567 = vmatprep.subr.bf16.mxu0 %v3121
        %3568 = vmatpush1.bf16.msra.mxu0 %v3120
        %3569 = vmatprep.subr.bf16.mxu0 %v3123
        %3570 = vmatpush1.bf16.msra.mxu0 %v3122
        %3571 = vmatprep.subr.bf16.mxu0 %v3125
        %3572 = vmatpush1.bf16.msra.mxu0 %v3124
        %3573 = vmatprep.subr.bf16.mxu0 %v3127
        %3574 = vmatpush1.bf16.msra.mxu0 %v3126
        %3575 = vmatprep.subr.bf16.mxu0 %v3129
        %3576 = vmatpush1.bf16.msra.mxu0 %v3128
        %3577 = vmatprep.subr.bf16.mxu0 %v3131
        %3578 = vmatpush1.bf16.msra.mxu0 %v3130
        %3579 = vmatprep.subr.bf16.mxu0 %v3133
        %3580 = vmatpush1.bf16.msra.mxu0 %v3132
        %3581 = vmatprep.subr.bf16.mxu0 %v3135
        %3582 = vmatpush1.bf16.msra.mxu0 %v3134
        %3583 = vmatprep.subr.bf16.mxu0 %v3137
        %3584 = vmatpush1.bf16.msra.mxu0 %v3136
        %3585 = vmatprep.subr.bf16.mxu0 %v3139
        %3586 = vmatpush1.bf16.msra.mxu0 %v3138
        %3587 = vmatprep.subr.bf16.mxu0 %v3141
        %3588 = vmatpush1.bf16.msra.mxu0 %v3140
        %3589 = vmatprep.subr.bf16.mxu0 %v3143
        %3590 = vmatpush1.bf16.msra.mxu0 %v3142
        %3591 = vmatprep.subr.bf16.mxu0 %v3145
        %3592 = vmatpush1.bf16.msra.mxu0 %v3144
        %3593 = vmatprep.subr.bf16.mxu0 %v3147
        %3594 = vmatpush1.bf16.msra.mxu0 %v3146
        %3595 = vmatprep.mubr.bf16.mxu0 %v2411
        %3596 = vmatmul.mubr.bf16.gmra.mrb[0].mxu0 %v2410
        %v3597 = vpop.f32.mrb[0].mxu0
        %v3598 = vadd.f32 %v3375, %v3597
        %v3599 = vpop.f32.mrb[0].mxu0
        %v3600 = vadd.f32 %v3377, %v3599
        %v3601 = vpop.f32.mrb[0].mxu0
        %v3602 = vadd.f32 %v3379, %v3601
        %v3603 = vpop.f32.mrb[0].mxu0
        %v3604 = vadd.f32 %v3381, %v3603
        %3605 = vmatprep.mubr.bf16.mxu0 %v2419
        %3606 = vmatmul.mubr.bf16.gmra.mrb[0].mxu0 %v2418
        %v3607 = vpop.f32.mrb[0].mxu0
        %v3608 = vadd.f32 %v3385, %v3607
        %v3609 = vpop.f32.mrb[0].mxu0
        %v3610 = vadd.f32 %v3387, %v3609
        %v3611 = vpop.f32.mrb[0].mxu0
        %v3612 = vadd.f32 %v3389, %v3611
        %v3613 = vpop.f32.mrb[0].mxu0
        %v3614 = vadd.f32 %v3391, %v3613
        %3615 = vmatprep.mubr.bf16.mxu0 %v2427
        %3616 = vmatmul.mubr.bf16.gmra.mrb[0].mxu0 %v2426
        %v3617 = vpop.f32.mrb[0].mxu0
        %v3618 = vadd.f32 %v3395, %v3617
        %v3619 = vpop.f32.mrb[0].mxu0
        %v3620 = vadd.f32 %v3397, %v3619
        %v3621 = vpop.f32.mrb[0].mxu0
        %v3622 = vadd.f32 %v3399, %v3621
        %v3623 = vpop.f32.mrb[0].mxu0
        %v3624 = vadd.f32 %v3401, %v3623
        %3625 = vmatprep.mubr.bf16.mxu0 %v2435
        %3626 = vmatmul.mubr.bf16.gmra.mrb[0].mxu0 %v2434
        %v3627 = vpop.f32.mrb[0].mxu0
        %v3628 = vadd.f32 %v3405, %v3627
        %v3629 = vpop.f32.mrb[0].mxu0
        %v3630 = vadd.f32 %v3407, %v3629
        %v3631 = vpop.f32.mrb[0].mxu0
        %v3632 = vadd.f32 %v3409, %v3631
        %v3633 = vpop.f32.mrb[0].mxu0
        %v3634 = vadd.f32 %v3411, %v3633
        %3635 = vmatprep.mubr.bf16.mxu0 %v2443
        %3636 = vmatmul.mubr.bf16.gmra.mrb[0].mxu0 %v2442
        %v3637 = vpop.f32.mrb[0].mxu0
        %v3638 = vadd.f32 %v3415, %v3637
        %v3639 = vpop.f32.mrb[0].mxu0
        %v3640 = vadd.f32 %v3417, %v3639
        %v3641 = vpop.f32.mrb[0].mxu0
        %v3642 = vadd.f32 %v3419, %v3641
        %v3643 = vpop.f32.mrb[0].mxu0
        %v3644 = vadd.f32 %v3421, %v3643
        %3645 = vmatprep.mubr.bf16.mxu0 %v2451
        %3646 = vmatmul.mubr.bf16.gmra.mrb[0].mxu0 %v2450
        %v3647 = vpop.f32.mrb[0].mxu0
        %v3648 = vadd.f32 %v3425, %v3647
        %v3649 = vpop.f32.mrb[0].mxu0
        %v3650 = vadd.f32 %v3427, %v3649
        %v3651 = vpop.f32.mrb[0].mxu0
        %v3652 = vadd.f32 %v3429, %v3651
        %v3653 = vpop.f32.mrb[0].mxu0
        %v3654 = vadd.f32 %v3431, %v3653
        %3655 = vmatprep.mubr.bf16.mxu0 %v2459
        %3656 = vmatmul.mubr.bf16.gmra.mrb[0].mxu0 %v2458
        %v3657 = vpop.f32.mrb[0].mxu0
        %v3658 = vadd.f32 %v3435, %v3657
        %v3659 = vpop.f32.mrb[0].mxu0
        %v3660 = vadd.f32 %v3437, %v3659
        %v3661 = vpop.f32.mrb[0].mxu0
        %v3662 = vadd.f32 %v3439, %v3661
        %v3663 = vpop.f32.mrb[0].mxu0
        %v3664 = vadd.f32 %v3441, %v3663
        %3665 = vmatprep.mubr.bf16.mxu0 %v2467
        %3666 = vmatmul.mubr.bf16.gmra.mrb[0].mxu0 %v2466
        %v3667 = vpop.f32.mrb[0].mxu0
        %v3668 = vadd.f32 %v3445, %v3667
        %v3669 = vpop.f32.mrb[0].mxu0
        %v3670 = vadd.f32 %v3447, %v3669
        %v3671 = vpop.f32.mrb[0].mxu0
        %v3672 = vadd.f32 %v3449, %v3671
        %v3673 = vpop.f32.mrb[0].mxu0
        %v3674 = vadd.f32 %v3451, %v3673
        %3675 = vmatprep.mubr.bf16.mxu0 %v2475
        %3676 = vmatmul.mubr.bf16.gmra.mrb[0].mxu0 %v2474
        %v3677 = vpop.f32.mrb[0].mxu0
        %v3678 = vadd.f32 %v3455, %v3677
        %v3679 = vpop.f32.mrb[0].mxu0
        %v3680 = vadd.f32 %v3457, %v3679
        %v3681 = vpop.f32.mrb[0].mxu0
        %v3682 = vadd.f32 %v3459, %v3681
        %v3683 = vpop.f32.mrb[0].mxu0
        %v3684 = vadd.f32 %v3461, %v3683
        %3685 = vmatprep.mubr.bf16.mxu0 %v2483
        %3686 = vmatmul.mubr.bf16.gmra.mrb[0].mxu0 %v2482
        %v3687 = vpop.f32.mrb[0].mxu0
        %v3688 = vadd.f32 %v3465, %v3687
        %v3689 = vpop.f32.mrb[0].mxu0
        %v3690 = vadd.f32 %v3467, %v3689
        %v3691 = vpop.f32.mrb[0].mxu0
        %v3692 = vadd.f32 %v3469, %v3691
        %v3693 = vpop.f32.mrb[0].mxu0
        %v3694 = vadd.f32 %v3471, %v3693
        %3695 = vmatprep.mubr.bf16.mxu0 %v2491
        %3696 = vmatmul.mubr.bf16.gmra.mrb[0].mxu0 %v2490
        %v3697 = vpop.f32.mrb[0].mxu0
        %v3698 = vadd.f32 %v3475, %v3697
        %v3699 = vpop.f32.mrb[0].mxu0
        %v3700 = vadd.f32 %v3477, %v3699
        %v3701 = vpop.f32.mrb[0].mxu0
        %v3702 = vadd.f32 %v3479, %v3701
        %v3703 = vpop.f32.mrb[0].mxu0
        %v3704 = vadd.f32 %v3481, %v3703
        %3705 = vmatprep.mubr.bf16.mxu0 %v2499
        %3706 = vmatmul.mubr.bf16.gmra.mrb[0].mxu0 %v2498
        %v3707 = vpop.f32.mrb[0].mxu0
        %v3708 = vadd.f32 %v3485, %v3707
        %v3709 = vpop.f32.mrb[0].mxu0
        %v3710 = vadd.f32 %v3487, %v3709
        %v3711 = vpop.f32.mrb[0].mxu0
        %v3712 = vadd.f32 %v3489, %v3711
        %v3713 = vpop.f32.mrb[0].mxu0
        %v3714 = vadd.f32 %v3491, %v3713
        %3715 = vmatprep.mubr.bf16.mxu0 %v2507
        %3716 = vmatmul.mubr.bf16.gmra.mrb[0].mxu0 %v2506
        %v3717 = vpop.f32.mrb[0].mxu0
        %v3718 = vadd.f32 %v3495, %v3717
        %v3719 = vpop.f32.mrb[0].mxu0
        %v3720 = vadd.f32 %v3497, %v3719
        %v3721 = vpop.f32.mrb[0].mxu0
        %v3722 = vadd.f32 %v3499, %v3721
        %v3723 = vpop.f32.mrb[0].mxu0
        %v3724 = vadd.f32 %v3501, %v3723
        %3725 = vmatprep.mubr.bf16.mxu0 %v2515
        %3726 = vmatmul.mubr.bf16.gmra.mrb[0].mxu0 %v2514
        %v3727 = vpop.f32.mrb[0].mxu0
        %v3728 = vadd.f32 %v3505, %v3727
        %v3729 = vpop.f32.mrb[0].mxu0
        %v3730 = vadd.f32 %v3507, %v3729
        %v3731 = vpop.f32.mrb[0].mxu0
        %v3732 = vadd.f32 %v3509, %v3731
        %v3733 = vpop.f32.mrb[0].mxu0
        %v3734 = vadd.f32 %v3511, %v3733
        %3735 = vmatprep.mubr.bf16.mxu0 %v2523
        %3736 = vmatmul.mubr.bf16.gmra.mrb[0].mxu0 %v2522
        %v3737 = vpop.f32.mrb[0].mxu0
        %v3738 = vadd.f32 %v3515, %v3737
        %v3739 = vpop.f32.mrb[0].mxu0
        %v3740 = vadd.f32 %v3517, %v3739
        %v3741 = vpop.f32.mrb[0].mxu0
        %v3742 = vadd.f32 %v3519, %v3741
        %v3743 = vpop.f32.mrb[0].mxu0
        %v3744 = vadd.f32 %v3521, %v3743
        %3745 = vmatprep.mubr.bf16.mxu0 %v2531
        %3746 = vmatmul.mubr.bf16.gmra.mrb[0].mxu0 %v2530
        %v3747 = vpop.f32.mrb[0].mxu0
        %v3748 = vadd.f32 %v3525, %v3747
        %v3749 = vpop.f32.mrb[0].mxu0
        %v3750 = vadd.f32 %v3527, %v3749
        %v3751 = vpop.f32.mrb[0].mxu0
        %v3752 = vadd.f32 %v3529, %v3751
        %v3753 = vpop.f32.mrb[0].mxu0
        %v3754 = vadd.f32 %v3531, %v3753
        %3755 = vmatprep.mubr.bf16.mxu0 %v2539
        %3756 = vmatmul.mubr.bf16.gmra.mrb[0].mxu0 %v2538
        %v3757 = vpop.f32.mrb[0].mxu0
        %v3758 = vadd.f32 %v3535, %v3757
        %v3759 = vpop.f32.mrb[0].mxu0
        %v3760 = vadd.f32 %v3537, %v3759
        %v3761 = vpop.f32.mrb[0].mxu0
        %v3762 = vadd.f32 %v3539, %v3761
        %v3763 = vpop.f32.mrb[0].mxu0
        %v3764 = vadd.f32 %v3541, %v3763
        %3765 = vmatprep.mubr.bf16.mxu0 %v2547
        %3766 = vmatmul.mubr.bf16.gmra.mrb[0].mxu0 %v2546
        %v3767 = vpop.f32.mrb[0].mxu0
        %v3768 = vadd.f32 %v3545, %v3767
        %v3769 = vpop.f32.mrb[0].mxu0
        %v3770 = vadd.f32 %v3547, %v3769
        %v3771 = vpop.f32.mrb[0].mxu0
        %v3772 = vadd.f32 %v3549, %v3771
        %v3773 = vpop.f32.mrb[0].mxu0
        %v3774 = vadd.f32 %v3551, %v3773
        %3775 = vmatprep.mubr.bf16.mxu0 %v2555
        %3776 = vmatmul.mubr.bf16.gmra.mrb[0].mxu0 %v2554
        %v3777 = vpop.f32.mrb[0].mxu0
        %v3778 = vadd.f32 %v3555, %v3777
        %v3779 = vpop.f32.mrb[0].mxu0
        %v3780 = vadd.f32 %v3557, %v3779
        %v3781 = vpop.f32.mrb[0].mxu0
        %v3782 = vadd.f32 %v3559, %v3781
        %v3783 = vpop.f32.mrb[0].mxu0
        %v3784 = vadd.f32 %v3561, %v3783
        %3785 = vdwg.mxu0
        %3786 = vmatprep.subr.bf16.mxu0 %v3149
        %3787 = vmatpush1.bf16.msra.mxu0 %v3148
        %3788 = vmatprep.subr.bf16.mxu0 %v3151
        %3789 = vmatpush1.bf16.msra.mxu0 %v3150
        %3790 = vmatprep.subr.bf16.mxu0 %v3153
        %3791 = vmatpush1.bf16.msra.mxu0 %v3152
        %3792 = vmatprep.subr.bf16.mxu0 %v3155
        %3793 = vmatpush1.bf16.msra.mxu0 %v3154
        %3794 = vmatprep.subr.bf16.mxu0 %v3157
        %3795 = vmatpush1.bf16.msra.mxu0 %v3156
        %3796 = vmatprep.subr.bf16.mxu0 %v3159
        %3797 = vmatpush1.bf16.msra.mxu0 %v3158
        %3798 = vmatprep.subr.bf16.mxu0 %v3161
        %3799 = vmatpush1.bf16.msra.mxu0 %v3160
        %3800 = vmatprep.subr.bf16.mxu0 %v3163
        %3801 = vmatpush1.bf16.msra.mxu0 %v3162
        %3802 = vmatprep.subr.bf16.mxu0 %v3165
        %3803 = vmatpush1.bf16.msra.mxu0 %v3164
        %3804 = vmatprep.subr.bf16.mxu0 %v3167
        %3805 = vmatpush1.bf16.msra.mxu0 %v3166
        %3806 = vmatprep.subr.bf16.mxu0 %v3169
        %3807 = vmatpush1.bf16.msra.mxu0 %v3168
        %3808 = vmatprep.subr.bf16.mxu0 %v3171
        %3809 = vmatpush1.bf16.msra.mxu0 %v3170
        %3810 = vmatprep.subr.bf16.mxu0 %v3173
        %3811 = vmatpush1.bf16.msra.mxu0 %v3172
        %3812 = vmatprep.subr.bf16.mxu0 %v3175
        %3813 = vmatpush1.bf16.msra.mxu0 %v3174
        %3814 = vmatprep.subr.bf16.mxu0 %v3177
        %3815 = vmatpush1.bf16.msra.mxu0 %v3176
        %3816 = vmatprep.subr.bf16.mxu0 %v3179
        %3817 = vmatpush1.bf16.msra.mxu0 %v3178
        %3818 = vmatprep.mubr.bf16.mxu0 %v2413
        %3819 = vmatmul.mubr.bf16.gmra.mrb[0].mxu0 %v2412
        %v3820 = vpop.f32.mrb[0].mxu0
        %v3821 = vadd.f32 %v3598, %v3820
        %v3822 = vpop.f32.mrb[0].mxu0
        %v3823 = vadd.f32 %v3600, %v3822
        %v3824 = vpop.f32.mrb[0].mxu0
        %v3825 = vadd.f32 %v3602, %v3824
        %v3826 = vpop.f32.mrb[0].mxu0
        %v3827 = vadd.f32 %v3604, %v3826
        %3828 = vmatprep.mubr.bf16.mxu0 %v2421
        %3829 = vmatmul.mubr.bf16.gmra.mrb[0].mxu0 %v2420
        %v3830 = vpop.f32.mrb[0].mxu0
        %v3831 = vadd.f32 %v3608, %v3830
        %v3832 = vpop.f32.mrb[0].mxu0
        %v3833 = vadd.f32 %v3610, %v3832
        %v3834 = vpop.f32.mrb[0].mxu0
        %v3835 = vadd.f32 %v3612, %v3834
        %v3836 = vpop.f32.mrb[0].mxu0
        %v3837 = vadd.f32 %v3614, %v3836
        %3838 = vmatprep.mubr.bf16.mxu0 %v2429
        %3839 = vmatmul.mubr.bf16.gmra.mrb[0].mxu0 %v2428
        %v3840 = vpop.f32.mrb[0].mxu0
        %v3841 = vadd.f32 %v3618, %v3840
        %v3842 = vpop.f32.mrb[0].mxu0
        %v3843 = vadd.f32 %v3620, %v3842
        %v3844 = vpop.f32.mrb[0].mxu0
        %v3845 = vadd.f32 %v3622, %v3844
        %v3846 = vpop.f32.mrb[0].mxu0
        %v3847 = vadd.f32 %v3624, %v3846
        %3848 = vmatprep.mubr.bf16.mxu0 %v2437
        %3849 = vmatmul.mubr.bf16.gmra.mrb[0].mxu0 %v2436
        %v3850 = vpop.f32.mrb[0].mxu0
        %v3851 = vadd.f32 %v3628, %v3850
        %v3852 = vpop.f32.mrb[0].mxu0
        %v3853 = vadd.f32 %v3630, %v3852
        %v3854 = vpop.f32.mrb[0].mxu0
        %v3855 = vadd.f32 %v3632, %v3854
        %v3856 = vpop.f32.mrb[0].mxu0
        %v3857 = vadd.f32 %v3634, %v3856
        %3858 = vmatprep.mubr.bf16.mxu0 %v2445
        %3859 = vmatmul.mubr.bf16.gmra.mrb[0].mxu0 %v2444
        %v3860 = vpop.f32.mrb[0].mxu0
        %v3861 = vadd.f32 %v3638, %v3860
        %v3862 = vpop.f32.mrb[0].mxu0
        %v3863 = vadd.f32 %v3640, %v3862
        %v3864 = vpop.f32.mrb[0].mxu0
        %v3865 = vadd.f32 %v3642, %v3864
        %v3866 = vpop.f32.mrb[0].mxu0
        %v3867 = vadd.f32 %v3644, %v3866
        %3868 = vmatprep.mubr.bf16.mxu0 %v2453
        %3869 = vmatmul.mubr.bf16.gmra.mrb[0].mxu0 %v2452
        %v3870 = vpop.f32.mrb[0].mxu0
        %v3871 = vadd.f32 %v3648, %v3870
        %v3872 = vpop.f32.mrb[0].mxu0
        %v3873 = vadd.f32 %v3650, %v3872
        %v3874 = vpop.f32.mrb[0].mxu0
        %v3875 = vadd.f32 %v3652, %v3874
        %v3876 = vpop.f32.mrb[0].mxu0
        %v3877 = vadd.f32 %v3654, %v3876
        %3878 = vmatprep.mubr.bf16.mxu0 %v2461
        %3879 = vmatmul.mubr.bf16.gmra.mrb[0].mxu0 %v2460
        %v3880 = vpop.f32.mrb[0].mxu0
        %v3881 = vadd.f32 %v3658, %v3880
        %v3882 = vpop.f32.mrb[0].mxu0
        %v3883 = vadd.f32 %v3660, %v3882
        %v3884 = vpop.f32.mrb[0].mxu0
        %v3885 = vadd.f32 %v3662, %v3884
        %v3886 = vpop.f32.mrb[0].mxu0
        %v3887 = vadd.f32 %v3664, %v3886
        %3888 = vmatprep.mubr.bf16.mxu0 %v2469
        %3889 = vmatmul.mubr.bf16.gmra.mrb[0].mxu0 %v2468
        %v3890 = vpop.f32.mrb[0].mxu0
        %v3891 = vadd.f32 %v3668, %v3890
        %v3892 = vpop.f32.mrb[0].mxu0
        %v3893 = vadd.f32 %v3670, %v3892
        %v3894 = vpop.f32.mrb[0].mxu0
        %v3895 = vadd.f32 %v3672, %v3894
        %v3896 = vpop.f32.mrb[0].mxu0
        %v3897 = vadd.f32 %v3674, %v3896
        %3898 = vmatprep.mubr.bf16.mxu0 %v2477
        %3899 = vmatmul.mubr.bf16.gmra.mrb[0].mxu0 %v2476
        %v3900 = vpop.f32.mrb[0].mxu0
        %v3901 = vadd.f32 %v3678, %v3900
        %v3902 = vpop.f32.mrb[0].mxu0
        %v3903 = vadd.f32 %v3680, %v3902
        %v3904 = vpop.f32.mrb[0].mxu0
        %v3905 = vadd.f32 %v3682, %v3904
        %v3906 = vpop.f32.mrb[0].mxu0
        %v3907 = vadd.f32 %v3684, %v3906
        %3908 = vmatprep.mubr.bf16.mxu0 %v2485
        %3909 = vmatmul.mubr.bf16.gmra.mrb[0].mxu0 %v2484
        %v3910 = vpop.f32.mrb[0].mxu0
        %v3911 = vadd.f32 %v3688, %v3910
        %v3912 = vpop.f32.mrb[0].mxu0
        %v3913 = vadd.f32 %v3690, %v3912
        %v3914 = vpop.f32.mrb[0].mxu0
        %v3915 = vadd.f32 %v3692, %v3914
        %v3916 = vpop.f32.mrb[0].mxu0
        %v3917 = vadd.f32 %v3694, %v3916
        %3918 = vmatprep.mubr.bf16.mxu0 %v2493
        %3919 = vmatmul.mubr.bf16.gmra.mrb[0].mxu0 %v2492
        %v3920 = vpop.f32.mrb[0].mxu0
        %v3921 = vadd.f32 %v3698, %v3920
        %v3922 = vpop.f32.mrb[0].mxu0
        %v3923 = vadd.f32 %v3700, %v3922
        %v3924 = vpop.f32.mrb[0].mxu0
        %v3925 = vadd.f32 %v3702, %v3924
        %v3926 = vpop.f32.mrb[0].mxu0
        %v3927 = vadd.f32 %v3704, %v3926
        %3928 = vmatprep.mubr.bf16.mxu0 %v2501
        %3929 = vmatmul.mubr.bf16.gmra.mrb[0].mxu0 %v2500
        %v3930 = vpop.f32.mrb[0].mxu0
        %v3931 = vadd.f32 %v3708, %v3930
        %v3932 = vpop.f32.mrb[0].mxu0
        %v3933 = vadd.f32 %v3710, %v3932
        %v3934 = vpop.f32.mrb[0].mxu0
        %v3935 = vadd.f32 %v3712, %v3934
        %v3936 = vpop.f32.mrb[0].mxu0
        %v3937 = vadd.f32 %v3714, %v3936
        %3938 = vmatprep.mubr.bf16.mxu0 %v2509
        %3939 = vmatmul.mubr.bf16.gmra.mrb[0].mxu0 %v2508
        %v3940 = vpop.f32.mrb[0].mxu0
        %v3941 = vadd.f32 %v3718, %v3940
        %v3942 = vpop.f32.mrb[0].mxu0
        %v3943 = vadd.f32 %v3720, %v3942
        %v3944 = vpop.f32.mrb[0].mxu0
        %v3945 = vadd.f32 %v3722, %v3944
        %v3946 = vpop.f32.mrb[0].mxu0
        %v3947 = vadd.f32 %v3724, %v3946
        %3948 = vmatprep.mubr.bf16.mxu0 %v2517
        %3949 = vmatmul.mubr.bf16.gmra.mrb[0].mxu0 %v2516
        %v3950 = vpop.f32.mrb[0].mxu0
        %v3951 = vadd.f32 %v3728, %v3950
        %v3952 = vpop.f32.mrb[0].mxu0
        %v3953 = vadd.f32 %v3730, %v3952
        %v3954 = vpop.f32.mrb[0].mxu0
        %v3955 = vadd.f32 %v3732, %v3954
        %v3956 = vpop.f32.mrb[0].mxu0
        %v3957 = vadd.f32 %v3734, %v3956
        %3958 = vmatprep.mubr.bf16.mxu0 %v2525
        %3959 = vmatmul.mubr.bf16.gmra.mrb[0].mxu0 %v2524
        %v3960 = vpop.f32.mrb[0].mxu0
        %v3961 = vadd.f32 %v3738, %v3960
        %v3962 = vpop.f32.mrb[0].mxu0
        %v3963 = vadd.f32 %v3740, %v3962
        %v3964 = vpop.f32.mrb[0].mxu0
        %v3965 = vadd.f32 %v3742, %v3964
        %v3966 = vpop.f32.mrb[0].mxu0
        %v3967 = vadd.f32 %v3744, %v3966
        %3968 = vmatprep.mubr.bf16.mxu0 %v2533
        %3969 = vmatmul.mubr.bf16.gmra.mrb[0].mxu0 %v2532
        %v3970 = vpop.f32.mrb[0].mxu0
        %v3971 = vadd.f32 %v3748, %v3970
        %v3972 = vpop.f32.mrb[0].mxu0
        %v3973 = vadd.f32 %v3750, %v3972
        %v3974 = vpop.f32.mrb[0].mxu0
        %v3975 = vadd.f32 %v3752, %v3974
        %v3976 = vpop.f32.mrb[0].mxu0
        %v3977 = vadd.f32 %v3754, %v3976
        %3978 = vmatprep.mubr.bf16.mxu0 %v2541
        %3979 = vmatmul.mubr.bf16.gmra.mrb[0].mxu0 %v2540
        %v3980 = vpop.f32.mrb[0].mxu0
        %v3981 = vadd.f32 %v3758, %v3980
        %v3982 = vpop.f32.mrb[0].mxu0
        %v3983 = vadd.f32 %v3760, %v3982
        %v3984 = vpop.f32.mrb[0].mxu0
        %v3985 = vadd.f32 %v3762, %v3984
        %v3986 = vpop.f32.mrb[0].mxu0
        %v3987 = vadd.f32 %v3764, %v3986
        %3988 = vmatprep.mubr.bf16.mxu0 %v2549
        %3989 = vmatmul.mubr.bf16.gmra.mrb[0].mxu0 %v2548
        %v3990 = vpop.f32.mrb[0].mxu0
        %v3991 = vadd.f32 %v3768, %v3990
        %v3992 = vpop.f32.mrb[0].mxu0
        %v3993 = vadd.f32 %v3770, %v3992
        %v3994 = vpop.f32.mrb[0].mxu0
        %v3995 = vadd.f32 %v3772, %v3994
        %v3996 = vpop.f32.mrb[0].mxu0
        %v3997 = vadd.f32 %v3774, %v3996
        %3998 = vmatprep.mubr.bf16.mxu0 %v2557
        %3999 = vmatmul.mubr.bf16.gmra.mrb[0].mxu0 %v2556
        %v4000 = vpop.f32.mrb[0].mxu0
        %v4001 = vadd.f32 %v3778, %v4000
        %v4002 = vpop.f32.mrb[0].mxu0
        %v4003 = vadd.f32 %v3780, %v4002
        %v4004 = vpop.f32.mrb[0].mxu0
        %v4005 = vadd.f32 %v3782, %v4004
        %v4006 = vpop.f32.mrb[0].mxu0
        %v4007 = vadd.f32 %v3784, %v4006
        %4008 = vdwg.mxu0
        %4009 = vmatprep.subr.bf16.mxu0 %v3181
        %4010 = vmatpush1.bf16.msra.mxu0 %v3180
        %4011 = vmatprep.subr.bf16.mxu0 %v3183
        %4012 = vmatpush1.bf16.msra.mxu0 %v3182
        %4013 = vmatprep.subr.bf16.mxu0 %v3185
        %4014 = vmatpush1.bf16.msra.mxu0 %v3184
        %4015 = vmatprep.subr.bf16.mxu0 %v3187
        %4016 = vmatpush1.bf16.msra.mxu0 %v3186
        %4017 = vmatprep.subr.bf16.mxu0 %v3189
        %4018 = vmatpush1.bf16.msra.mxu0 %v3188
        %4019 = vmatprep.subr.bf16.mxu0 %v3191
        %4020 = vmatpush1.bf16.msra.mxu0 %v3190
        %4021 = vmatprep.subr.bf16.mxu0 %v3193
        %4022 = vmatpush1.bf16.msra.mxu0 %v3192
        %4023 = vmatprep.subr.bf16.mxu0 %v3195
        %4024 = vmatpush1.bf16.msra.mxu0 %v3194
        %4025 = vmatprep.subr.bf16.mxu0 %v3197
        %4026 = vmatpush1.bf16.msra.mxu0 %v3196
        %4027 = vmatprep.subr.bf16.mxu0 %v3199
        %4028 = vmatpush1.bf16.msra.mxu0 %v3198
        %4029 = vmatprep.subr.bf16.mxu0 %v3201
        %4030 = vmatpush1.bf16.msra.mxu0 %v3200
        %4031 = vmatprep.subr.bf16.mxu0 %v3203
        %4032 = vmatpush1.bf16.msra.mxu0 %v3202
        %4033 = vmatprep.subr.bf16.mxu0 %v3205
        %4034 = vmatpush1.bf16.msra.mxu0 %v3204
        %4035 = vmatprep.subr.bf16.mxu0 %v3207
        %4036 = vmatpush1.bf16.msra.mxu0 %v3206
        %4037 = vmatprep.subr.bf16.mxu0 %v3209
        %4038 = vmatpush1.bf16.msra.mxu0 %v3208
        %4039 = vmatprep.subr.bf16.mxu0 %v3211
        %4040 = vmatpush1.bf16.msra.mxu0 %v3210
        %4041 = vmatprep.mubr.bf16.mxu0 %v2415
        %4042 = vmatmul.mubr.bf16.gmra.mrb[0].mxu0 %v2414
        %v4043 = vpop.f32.mrb[0].mxu0
        %v4044 = vadd.f32 %v3821, %v4043
        %v4045 = vpop.f32.mrb[0].mxu0
        %v4046 = vadd.f32 %v3823, %v4045
        %v4047 = vpop.f32.mrb[0].mxu0
        %v4048 = vadd.f32 %v3825, %v4047
        %v4049 = vpop.f32.mrb[0].mxu0
        %v4050 = vadd.f32 %v3827, %v4049
        %4051 = vmatprep.mubr.bf16.mxu0 %v2423
        %4052 = vmatmul.mubr.bf16.gmra.mrb[0].mxu0 %v2422
        %v4053 = vpop.f32.mrb[0].mxu0
        %v4054 = vadd.f32 %v3831, %v4053
        %v4055 = vpop.f32.mrb[0].mxu0
        %v4056 = vadd.f32 %v3833, %v4055
        %v4057 = vpop.f32.mrb[0].mxu0
        %v4058 = vadd.f32 %v3835, %v4057
        %v4059 = vpop.f32.mrb[0].mxu0
        %v4060 = vadd.f32 %v3837, %v4059
        %4061 = vmatprep.mubr.bf16.mxu0 %v2431
        %4062 = vmatmul.mubr.bf16.gmra.mrb[0].mxu0 %v2430
        %v4063 = vpop.f32.mrb[0].mxu0
        %v4064 = vadd.f32 %v3841, %v4063
        %v4065 = vpop.f32.mrb[0].mxu0
        %v4066 = vadd.f32 %v3843, %v4065
        %v4067 = vpop.f32.mrb[0].mxu0
        %v4068 = vadd.f32 %v3845, %v4067
        %v4069 = vpop.f32.mrb[0].mxu0
        %v4070 = vadd.f32 %v3847, %v4069
        %4071 = vmatprep.mubr.bf16.mxu0 %v2439
        %4072 = vmatmul.mubr.bf16.gmra.mrb[0].mxu0 %v2438
        %v4073 = vpop.f32.mrb[0].mxu0
        %v4074 = vadd.f32 %v3851, %v4073
        %v4075 = vpop.f32.mrb[0].mxu0
        %v4076 = vadd.f32 %v3853, %v4075
        %v4077 = vpop.f32.mrb[0].mxu0
        %v4078 = vadd.f32 %v3855, %v4077
        %v4079 = vpop.f32.mrb[0].mxu0
        %v4080 = vadd.f32 %v3857, %v4079
        %4081 = vmatprep.mubr.bf16.mxu0 %v2447
        %4082 = vmatmul.mubr.bf16.gmra.mrb[0].mxu0 %v2446
        %v4083 = vpop.f32.mrb[0].mxu0
        %v4084 = vadd.f32 %v3861, %v4083
        %v4085 = vpop.f32.mrb[0].mxu0
        %v4086 = vadd.f32 %v3863, %v4085
        %v4087 = vpop.f32.mrb[0].mxu0
        %v4088 = vadd.f32 %v3865, %v4087
        %v4089 = vpop.f32.mrb[0].mxu0
        %v4090 = vadd.f32 %v3867, %v4089
        %4091 = vmatprep.mubr.bf16.mxu0 %v2455
        %4092 = vmatmul.mubr.bf16.gmra.mrb[0].mxu0 %v2454
        %v4093 = vpop.f32.mrb[0].mxu0
        %v4094 = vadd.f32 %v3871, %v4093
        %v4095 = vpop.f32.mrb[0].mxu0
        %v4096 = vadd.f32 %v3873, %v4095
        %v4097 = vpop.f32.mrb[0].mxu0
        %v4098 = vadd.f32 %v3875, %v4097
        %v4099 = vpop.f32.mrb[0].mxu0
        %v4100 = vadd.f32 %v3877, %v4099
        %4101 = vmatprep.mubr.bf16.mxu0 %v2463
        %4102 = vmatmul.mubr.bf16.gmra.mrb[0].mxu0 %v2462
        %v4103 = vpop.f32.mrb[0].mxu0
        %v4104 = vadd.f32 %v3881, %v4103
        %v4105 = vpop.f32.mrb[0].mxu0
        %v4106 = vadd.f32 %v3883, %v4105
        %v4107 = vpop.f32.mrb[0].mxu0
        %v4108 = vadd.f32 %v3885, %v4107
        %v4109 = vpop.f32.mrb[0].mxu0
        %v4110 = vadd.f32 %v3887, %v4109
        %4111 = vmatprep.mubr.bf16.mxu0 %v2471
        %4112 = vmatmul.mubr.bf16.gmra.mrb[0].mxu0 %v2470
        %v4113 = vpop.f32.mrb[0].mxu0
        %v4114 = vadd.f32 %v3891, %v4113
        %v4115 = vpop.f32.mrb[0].mxu0
        %v4116 = vadd.f32 %v3893, %v4115
        %v4117 = vpop.f32.mrb[0].mxu0
        %v4118 = vadd.f32 %v3895, %v4117
        %v4119 = vpop.f32.mrb[0].mxu0
        %v4120 = vadd.f32 %v3897, %v4119
        %4121 = vmatprep.mubr.bf16.mxu0 %v2479
        %4122 = vmatmul.mubr.bf16.gmra.mrb[0].mxu0 %v2478
        %v4123 = vpop.f32.mrb[0].mxu0
        %v4124 = vadd.f32 %v3901, %v4123
        %v4125 = vpop.f32.mrb[0].mxu0
        %v4126 = vadd.f32 %v3903, %v4125
        %v4127 = vpop.f32.mrb[0].mxu0
        %v4128 = vadd.f32 %v3905, %v4127
        %v4129 = vpop.f32.mrb[0].mxu0
        %v4130 = vadd.f32 %v3907, %v4129
        %4131 = vmatprep.mubr.bf16.mxu0 %v2487
        %4132 = vmatmul.mubr.bf16.gmra.mrb[0].mxu0 %v2486
        %v4133 = vpop.f32.mrb[0].mxu0
        %v4134 = vadd.f32 %v3911, %v4133
        %v4135 = vpop.f32.mrb[0].mxu0
        %v4136 = vadd.f32 %v3913, %v4135
        %v4137 = vpop.f32.mrb[0].mxu0
        %v4138 = vadd.f32 %v3915, %v4137
        %v4139 = vpop.f32.mrb[0].mxu0
        %v4140 = vadd.f32 %v3917, %v4139
        %4141 = vmatprep.mubr.bf16.mxu0 %v2495
        %4142 = vmatmul.mubr.bf16.gmra.mrb[0].mxu0 %v2494
        %v4143 = vpop.f32.mrb[0].mxu0
        %v4144 = vadd.f32 %v3921, %v4143
        %v4145 = vpop.f32.mrb[0].mxu0
        %v4146 = vadd.f32 %v3923, %v4145
        %v4147 = vpop.f32.mrb[0].mxu0
        %v4148 = vadd.f32 %v3925, %v4147
        %v4149 = vpop.f32.mrb[0].mxu0
        %v4150 = vadd.f32 %v3927, %v4149
        %4151 = vmatprep.mubr.bf16.mxu0 %v2503
        %4152 = vmatmul.mubr.bf16.gmra.mrb[0].mxu0 %v2502
        %v4153 = vpop.f32.mrb[0].mxu0
        %v4154 = vadd.f32 %v3931, %v4153
        %v4155 = vpop.f32.mrb[0].mxu0
        %v4156 = vadd.f32 %v3933, %v4155
        %v4157 = vpop.f32.mrb[0].mxu0
        %v4158 = vadd.f32 %v3935, %v4157
        %v4159 = vpop.f32.mrb[0].mxu0
        %v4160 = vadd.f32 %v3937, %v4159
        %4161 = vmatprep.mubr.bf16.mxu0 %v2511
        %4162 = vmatmul.mubr.bf16.gmra.mrb[0].mxu0 %v2510
        %v4163 = vpop.f32.mrb[0].mxu0
        %v4164 = vadd.f32 %v3941, %v4163
        %v4165 = vpop.f32.mrb[0].mxu0
        %v4166 = vadd.f32 %v3943, %v4165
        %v4167 = vpop.f32.mrb[0].mxu0
        %v4168 = vadd.f32 %v3945, %v4167
        %v4169 = vpop.f32.mrb[0].mxu0
        %v4170 = vadd.f32 %v3947, %v4169
        %4171 = vmatprep.mubr.bf16.mxu0 %v2519
        %4172 = vmatmul.mubr.bf16.gmra.mrb[0].mxu0 %v2518
        %v4173 = vpop.f32.mrb[0].mxu0
        %v4174 = vadd.f32 %v3951, %v4173
        %v4175 = vpop.f32.mrb[0].mxu0
        %v4176 = vadd.f32 %v3953, %v4175
        %v4177 = vpop.f32.mrb[0].mxu0
        %v4178 = vadd.f32 %v3955, %v4177
        %v4179 = vpop.f32.mrb[0].mxu0
        %v4180 = vadd.f32 %v3957, %v4179
        %4181 = vmatprep.mubr.bf16.mxu0 %v2527
        %4182 = vmatmul.mubr.bf16.gmra.mrb[0].mxu0 %v2526
        %v4183 = vpop.f32.mrb[0].mxu0
        %v4184 = vadd.f32 %v3961, %v4183
        %v4185 = vpop.f32.mrb[0].mxu0
        %v4186 = vadd.f32 %v3963, %v4185
        %v4187 = vpop.f32.mrb[0].mxu0
        %v4188 = vadd.f32 %v3965, %v4187
        %v4189 = vpop.f32.mrb[0].mxu0
        %v4190 = vadd.f32 %v3967, %v4189
        %4191 = vmatprep.mubr.bf16.mxu0 %v2535
        %4192 = vmatmul.mubr.bf16.gmra.mrb[0].mxu0 %v2534
        %v4193 = vpop.f32.mrb[0].mxu0
        %v4194 = vadd.f32 %v3971, %v4193
        %v4195 = vpop.f32.mrb[0].mxu0
        %v4196 = vadd.f32 %v3973, %v4195
        %v4197 = vpop.f32.mrb[0].mxu0
        %v4198 = vadd.f32 %v3975, %v4197
        %v4199 = vpop.f32.mrb[0].mxu0
        %v4200 = vadd.f32 %v3977, %v4199
        %4201 = vmatprep.mubr.bf16.mxu0 %v2543
        %4202 = vmatmul.mubr.bf16.gmra.mrb[0].mxu0 %v2542
        %v4203 = vpop.f32.mrb[0].mxu0
        %v4204 = vadd.f32 %v3981, %v4203
        %v4205 = vpop.f32.mrb[0].mxu0
        %v4206 = vadd.f32 %v3983, %v4205
        %v4207 = vpop.f32.mrb[0].mxu0
        %v4208 = vadd.f32 %v3985, %v4207
        %v4209 = vpop.f32.mrb[0].mxu0
        %v4210 = vadd.f32 %v3987, %v4209
        %4211 = vmatprep.mubr.bf16.mxu0 %v2551
        %4212 = vmatmul.mubr.bf16.gmra.mrb[0].mxu0 %v2550
        %v4213 = vpop.f32.mrb[0].mxu0
        %v4214 = vadd.f32 %v3991, %v4213
        %v4215 = vpop.f32.mrb[0].mxu0
        %v4216 = vadd.f32 %v3993, %v4215
        %v4217 = vpop.f32.mrb[0].mxu0
        %v4218 = vadd.f32 %v3995, %v4217
        %v4219 = vpop.f32.mrb[0].mxu0
        %v4220 = vadd.f32 %v3997, %v4219
        %4221 = vmatprep.mubr.bf16.mxu0 %v2559
        %4222 = vmatmul.mubr.bf16.gmra.mrb[0].mxu0 %v2558
        %v4223 = vpop.f32.mrb[0].mxu0
        %v4224 = vadd.f32 %v4001, %v4223
        %v4225 = vpop.f32.mrb[0].mxu0
        %v4226 = vadd.f32 %v4003, %v4225
        %v4227 = vpop.f32.mrb[0].mxu0
        %v4228 = vadd.f32 %v4005, %v4227
        %v4229 = vpop.f32.mrb[0].mxu0
        %v4230 = vadd.f32 %v4007, %v4229
        %4231 = vdwg.mxu0
        %4232 = vst [vmem:[%s285] sm:$0xff] %v4044
        %4233 = vst [vmem:[%s285 + $0x8] sm:$0xff] %v4046
        %4234 = vst [vmem:[%s285 + $0x10] sm:$0xff] %v4048
        %4235 = vst [vmem:[%s285 + $0x18] sm:$0xff] %v4050
        %4236 = vst [vmem:[%s285 + $0x20] sm:$0xff] %v4054
        %4237 = vst [vmem:[%s285 + $0x28] sm:$0xff] %v4056
        %4238 = vst [vmem:[%s285 + $0x30] sm:$0xff] %v4058
        %4239 = vst [vmem:[%s285 + $0x38] sm:$0xff] %v4060
        %4240 = vst [vmem:[%s285 + $0x40] sm:$0xff] %v4064
        %4241 = vst [vmem:[%s285 + $0x48] sm:$0xff] %v4066
        %4242 = vst [vmem:[%s285 + $0x50] sm:$0xff] %v4068
        %4243 = vst [vmem:[%s285 + $0x58] sm:$0xff] %v4070
        %4244 = vst [vmem:[%s285 + $0x60] sm:$0xff] %v4074
        %4245 = vst [vmem:[%s285 + $0x68] sm:$0xff] %v4076
        %4246 = vst [vmem:[%s285 + $0x70] sm:$0xff] %v4078
        %4247 = vst [vmem:[%s285 + $0x78] sm:$0xff] %v4080
        %4248 = vst [vmem:[%s285 + $0x80] sm:$0xff] %v4084
        %4249 = vst [vmem:[%s285 + $0x88] sm:$0xff] %v4086
        %4250 = vst [vmem:[%s285 + $0x90] sm:$0xff] %v4088
        %4251 = vst [vmem:[%s285 + $0x98] sm:$0xff] %v4090
        %4252 = vst [vmem:[%s285 + $0xa0] sm:$0xff] %v4094
        %4253 = vst [vmem:[%s285 + $0xa8] sm:$0xff] %v4096
        %4254 = vst [vmem:[%s285 + $0xb0] sm:$0xff] %v4098
        %4255 = vst [vmem:[%s285 + $0xb8] sm:$0xff] %v4100
        %4256 = vst [vmem:[%s285 + $0xc0] sm:$0xff] %v4104
        %4257 = vst [vmem:[%s285 + $0xc8] sm:$0xff] %v4106
        %4258 = vst [vmem:[%s285 + $0xd0] sm:$0xff] %v4108
        %4259 = vst [vmem:[%s285 + $0xd8] sm:$0xff] %v4110
        %4260 = vst [vmem:[%s285 + $0xe0] sm:$0xff] %v4114
        %4261 = vst [vmem:[%s285 + $0xe8] sm:$0xff] %v4116
        %4262 = vst [vmem:[%s285 + $0xf0] sm:$0xff] %v4118
        %4263 = vst [vmem:[%s285 + $0xf8] sm:$0xff] %v4120
        %4264 = vst [vmem:[%s285 + $0x100] sm:$0xff] %v4124
        %4265 = vst [vmem:[%s285 + $0x108] sm:$0xff] %v4126
        %4266 = vst [vmem:[%s285 + $0x110] sm:$0xff] %v4128
        %4267 = vst [vmem:[%s285 + $0x118] sm:$0xff] %v4130
        %4268 = vst [vmem:[%s285 + $0x120] sm:$0xff] %v4134
        %4269 = vst [vmem:[%s285 + $0x128] sm:$0xff] %v4136
        %4270 = vst [vmem:[%s285 + $0x130] sm:$0xff] %v4138
        %4271 = vst [vmem:[%s285 + $0x138] sm:$0xff] %v4140
        %4272 = vst [vmem:[%s285 + $0x140] sm:$0xff] %v4144
        %4273 = vst [vmem:[%s285 + $0x148] sm:$0xff] %v4146
        %4274 = vst [vmem:[%s285 + $0x150] sm:$0xff] %v4148
        %4275 = vst [vmem:[%s285 + $0x158] sm:$0xff] %v4150
        %4276 = vst [vmem:[%s285 + $0x160] sm:$0xff] %v4154
        %4277 = vst [vmem:[%s285 + $0x168] sm:$0xff] %v4156
        %4278 = vst [vmem:[%s285 + $0x170] sm:$0xff] %v4158
        %4279 = vst [vmem:[%s285 + $0x178] sm:$0xff] %v4160
        %4280 = vst [vmem:[%s285 + $0x180] sm:$0xff] %v4164
        %4281 = vst [vmem:[%s285 + $0x188] sm:$0xff] %v4166
        %4282 = vst [vmem:[%s285 + $0x190] sm:$0xff] %v4168
        %4283 = vst [vmem:[%s285 + $0x198] sm:$0xff] %v4170
        %4284 = vst [vmem:[%s285 + $0x1a0] sm:$0xff] %v4174
        %4285 = vst [vmem:[%s285 + $0x1a8] sm:$0xff] %v4176
        %4286 = vst [vmem:[%s285 + $0x1b0] sm:$0xff] %v4178
        %4287 = vst [vmem:[%s285 + $0x1b8] sm:$0xff] %v4180
        %4288 = vst [vmem:[%s285 + $0x1c0] sm:$0xff] %v4184
        %4289 = vst [vmem:[%s285 + $0x1c8] sm:$0xff] %v4186
        %4290 = vst [vmem:[%s285 + $0x1d0] sm:$0xff] %v4188
        %4291 = vst [vmem:[%s285 + $0x1d8] sm:$0xff] %v4190
        %4292 = vst [vmem:[%s285 + $0x1e0] sm:$0xff] %v4194
        %4293 = vst [vmem:[%s285 + $0x1e8] sm:$0xff] %v4196
        %4294 = vst [vmem:[%s285 + $0x1f0] sm:$0xff] %v4198
        %4295 = vst [vmem:[%s285 + $0x1f8] sm:$0xff] %v4200
        %4296 = vst [vmem:[%s285 + $0x200] sm:$0xff] %v4204
        %4297 = vst [vmem:[%s285 + $0x208] sm:$0xff] %v4206
        %4298 = vst [vmem:[%s285 + $0x210] sm:$0xff] %v4208
        %4299 = vst [vmem:[%s285 + $0x218] sm:$0xff] %v4210
        %4300 = vst [vmem:[%s285 + $0x220] sm:$0xff] %v4214
        %4301 = vst [vmem:[%s285 + $0x228] sm:$0xff] %v4216
        %4302 = vst [vmem:[%s285 + $0x230] sm:$0xff] %v4218
        %4303 = vst [vmem:[%s285 + $0x238] sm:$0xff] %v4220
        %4304 = vst [vmem:[%s285 + $0x240] sm:$0xff] %v4224
        %4305 = vst [vmem:[%s285 + $0x248] sm:$0xff] %v4226
        %4306 = vst [vmem:[%s285 + $0x250] sm:$0xff] %v4228
        %4307 = vst [vmem:[%s285 + $0x258] sm:$0xff] %v4230
        %s4308 = sand.u32 %s142, 1
        %s4309 = scalar_lea.sflag [#allocation4], %s4308
        %s4310 = sand.u32 %s142, 1
        %s4311 = smul.addr %s4310, 608
        %s4312 = scalar_lea.vmem [#allocation10], %s4311
        // Predicated region
        $region57: #{tpu_custom_call.1} parent=39 // pred_check
          %p4313 = pneg %p152
        $region58: #{tpu_custom_call.1} parent=39 // pred_check_branch
          %4315 = sbr.rel (%p4313) target = $region60
        $region59: #{tpu_custom_call.1} parent=39 // pred_region
          %s4316 = smul.u32 38, %s24
          %s4318 = ssub.s32 9728, 9728
          %4319 = vsyncadd %s4309, %s4318
          %s4320 = smul.addr %s4316, 2
          %s4321 = smul.addr %s4320, 128
          %s4322 = scalar_lea.hbm %s5, %s4321
          %s4323 = sshll.u32 %s4312, 4
          %s4324 = int_to_ptr.vmem [resolvable:$true] %s4323
          %4329 = dma.vmem_to_hbm [thread:$0]  %s4324, 9728, %s4322, %s4309, 256, 256, 16
        $region60: #{tpu_custom_call.1} parent=39 // pred_fallthru
          _
      $region40: #{tpu_custom_call.1} parent=5 // pred_fallthru
        _
      %p4330 = scmp.le.s32.totalorder 2, %s19
      // Predicated region
      $region61: #{tpu_custom_call.1} parent=5 // pred_check
        %p4331 = pneg %p4330
      $region62: #{tpu_custom_call.1} parent=5 // pred_check_branch
        %4333 = sbr.rel (%p4331) target = $region64
      $region63: #{tpu_custom_call.1} parent=5 // pred_region
        %s4334 = ssub.s32 %s19, 2
        // Predicated region
        $region65: #{tpu_custom_call.1} parent=63 // pred_check
          %p4335 = pneg %p158
        $region66: #{tpu_custom_call.1} parent=63 // pred_check_branch
          %4337 = sbr.rel (%p4335) target = $region68
        $region67: #{tpu_custom_call.1} parent=63 // pred_region
          %s4338 = sand.u32 %s143, 1
          %s4339 = scalar_lea.sflag [#allocation4], %s4338
          %s4340 = sand.u32 %s143, 1
          %s4341 = smul.addr %s4340, 608
          %s4342 = scalar_lea.vmem [#allocation10], %s4341
          %4343 = dma.done %s4339, 9728
        $region68: #{tpu_custom_call.1} parent=63 // pred_fallthru
          _
      $region64: #{tpu_custom_call.1} parent=5 // pred_fallthru
        _
    $region6: #{tpu_custom_call.1} parent=1 // loop_footer
      %s23 = sadd.s32 1, %s19
    $region7: #{tpu_custom_call.1} parent=1 // loop_footer_branch
      %18 = sbr.rel target = $region3
    $region8: #{tpu_custom_call.1} parent=1 // loop_exit
      _
    %4344 = vsyncpa [#allocation3], 1
    %s4345 = scalar_lea.sflag [#allocation3], 1
    %4346 = vsyncpa %s4345, 1
    %4347 = vsyncpa [#allocation6], 1
    %4348 = vsyncpa [#allocation9], 1
    %4349 = vsyncpa [#allocation4], 1
    %s4350 = scalar_lea.sflag [#allocation4], 1
    %4351 = vsyncpa %s4350, 1

</llo_original>
